<compile_context>
chip_gen: v7x
topology: tpu7x:2x2x1
jax: 0.10.0
libtpu: 0.0.40
codegen_flags: <defaults>
</compile_context>

<pallas_src>
import functools

import jax
import jax.numpy as jnp
from jax import lax
from jax.experimental import pallas as pl
from jax.experimental.pallas import tpu as pltpu

# ---- model config (matches the module's __init__ at small scale) ----
VOCAB = 32
EMBED_DIM = 32
HIDDEN = 32
NUM_LAYERS = 2
BIDIRECTIONAL = True
NUM_CLASSES = 16
DROPOUT = 0.1          # nn.Dropout / LSTM inter-layer dropout are identity in eval mode
BATCH = 4
SEQ = 8

B_PAD = 8              # pad batch to one full sublane group
C_PAD = 128            # pad classifier output to one full lane group (unmasked vst)


# ---------------- fused Pallas kernel ----------------
def _seq_classifier_kernel(tok_ref, len_ref, table_ref,
                           slab0_ref, slab1_ref, slabfc_ref,
                           out_ref, seq_ref, *, T, B, H, V, E):
    """Whole SeqClassifier forward in one kernel.

    tok_ref : (T*B, 1) i32   tokens, time-major flattened (row = t*B + b)
    len_ref : (B, 1)   i32   sequence lengths (0 for padded batch rows)
    table   : (V, E)   f32   embedding table
    slab0   : (8 + E  + 2H, 8H)  [bias row | merged W_ih | block W_hh] for layer 0
    slab1   : (8 + 2H + 2H, 8H)  same for layer 1
    slabfc  : (2H + 8, C_PAD)    [W_fc rows (kernel [h_fwd|h_bwd] order) | bias row]
    out_ref : (B, C_PAD)
    seq_ref : (T*B, 2H) VMEM scratch; layer-0 output sequence, time-ordered [fwd|bwd]

    Gate-major column layout everywhere: [ i | f | o | g ], each block 2H wide with
    the forward direction in the first H lanes and the backward in the second H.
    """
    f32 = jnp.float32
    TB = T * B
    H2 = 2 * H
    G = 8 * H

    lens = len_ref[...]                                                    # (B, 1) i32

    # hoisted column-type masks (built once, reused by every step of both layers)
    is_fwd_state = lax.broadcasted_iota(jnp.int32, (1, H2), 1) < H         # (1, 2H)
    is_fwd_gate = (lax.broadcasted_iota(jnp.int32, (1, G), 1) % H2) < H    # (1, 8H)

    # hoisted per-step validity masks (packed-sequence semantics), shared by layers
    valid = [lens > jnp.where(is_fwd_state, s, T - 1 - s) for s in range(T)]

    # ---- embedding gather fused as a one-hot matmul (table stays VMEM-resident) ----
    lane_ids = lax.broadcasted_iota(jnp.int32, (TB, V), 1)
    onehot = (tok_ref[...] == lane_ids).astype(f32)                        # (TB, V)
    emb = jnp.dot(onehot, table_ref[...], preferred_element_type=f32)      # (TB, E)

    def run_layer(P, whh, collect):
        """Fused bidirectional LSTM recurrence.  Combined state = [h_fwd | h_bwd]."""
        # TODO(synk): W_hh could be held stationary in the MXU across the unrolled
        # steps via pltpu.matmul_push_rhs/acc_lhs/pop; kept as jnp.dot for robustness.
        h = jnp.zeros((B, H2), f32)
        c = jnp.zeros((B, H2), f32)
        for s in range(T):                     # fully unrolled; all indices static
            sb = T - 1 - s                     # time processed by the backward half
            # single dense projection + one lane-select: fwd slots want time s,
            # bwd slots want time sb (bias already folded into P)
            xp = jnp.where(is_fwd_gate,
                           P[s * B:(s + 1) * B, :],
                           P[sb * B:(sb + 1) * B, :])                      # (B, 8H)
            gates = xp + jnp.dot(h, whh, preferred_element_type=f32)       # (B, 8H)
            sig = jax.nn.sigmoid(gates[:, 0:3 * H2])   # i|f|o in one 192-lane EUP call
            g_act = jnp.tanh(gates[:, 3 * H2:G])       # g in one 64-lane EUP call
            i_g = sig[:, 0:H2]
            f_g = sig[:, H2:2 * H2]
            o_g = sig[:, 2 * H2:3 * H2]
            c_new = f_g * c + i_g * g_act
            h_new = o_g * jnp.tanh(c_new)
            v = valid[s]
            h = jnp.where(v, h_new, h)         # packed-sequence masking
            c = jnp.where(v, c_new, c)
            if collect:
                y = jnp.where(v, h_new, 0.0)
                # layer-0 outputs land in time order: fwd half at time s, bwd half
                # at time sb (stores are off the recurrence's critical path)
                seq_ref[pl.ds(s * B, B), pl.ds(0, H)] = y[:, 0:H]
                seq_ref[pl.ds(sb * B, B), pl.ds(H, H)] = y[:, H:H2]
        return h

    # ---- layer 0 (hoisted input projection over all T*B rows) ----
    b0 = slab0_ref[pl.ds(0, 1), :]
    wih0 = slab0_ref[pl.ds(8, E), :]
    whh0 = slab0_ref[pl.ds(8 + E, H2), :]
    P0 = jnp.dot(emb, wih0, preferred_element_type=f32) + b0               # (TB, 8H)
    run_layer(P0, whh0, True)

    # ---- layer 1 (input = layer-0 output sequence from VMEM scratch) ----
    b1 = slab1_ref[pl.ds(0, 1), :]
    wih1 = slab1_ref[pl.ds(8, H2), :]
    whh1 = slab1_ref[pl.ds(8 + H2, H2), :]
    P1 = jnp.dot(seq_ref[...], wih1, preferred_element_type=f32) + b1      # (TB, 8H)
    h1 = run_layer(P1, whh1, False)            # final hidden: [h_fwd | h_bwd]

    # ---- FC head: Dropout (eval: identity) -> Linear -> SiLU ----
    # TODO(synk): train-mode dropout (RNG masks) not implemented; eval semantics only.
    wfc = slabfc_ref[pl.ds(0, H2), :]
    bfc = slabfc_ref[pl.ds(H2, 1), :]
    z = jnp.dot(h1, wfc, preferred_element_type=f32) + bfc                 # (B, C_PAD)
    out_ref[...] = z * jax.nn.sigmoid(z)


# ---------------- wrappers ----------------
def _build_call(T):
    kernel = functools.partial(_seq_classifier_kernel, T=T, B=B_PAD, H=HIDDEN,
                               V=VOCAB, E=EMBED_DIM)
    return pl.pallas_call(
        kernel,
        out_shape=jax.ShapeDtypeStruct((B_PAD, C_PAD), jnp.float32),
        in_specs=[pl.BlockSpec(memory_space=pltpu.MemorySpace.VMEM)] * 6,
        out_specs=pl.BlockSpec(memory_space=pltpu.MemorySpace.VMEM),
        scratch_shapes=[pltpu.VMEM((T * B_PAD, 2 * HIDDEN), jnp.float32)],
    )


@jax.jit
def seq_classifier_forward(kparams, tokens, seq_len):
    B, T = tokens.shape
    # pad batch to a full sublane group (zero tokens, zero lengths -> state stays 0)
    tok = jnp.zeros((B_PAD, T), jnp.int32).at[:B, :].set(tokens.astype(jnp.int32))
    lens = jnp.zeros((B_PAD,), jnp.int32).at[:B].set(seq_len.astype(jnp.int32))
    tok_col = tok.T.reshape(T * B_PAD, 1)                    # time-major flattened
    out = _build_call(T)(
        tok_col, lens[:, None], kparams["table"],
        kparams["slab0"], kparams["slab1"], kparams["slabfc"])
    return out[:B, :NUM_CLASSES]


def prepare_params(params):
    """One-time re-layout of PyTorch-style LSTM/FC params into kernel-ready slabs."""
    H = HIDDEN
    H2 = 2 * H
    G = 8 * H
    perm = (0, 1, 3, 2)   # torch gate order [i f g o] -> kernel order [i f o g]

    def gate_major(w_t, direction):
        # w_t: (I, 4H) with torch gate column blocks [i|f|g|o] -> (I, 8H) gate-major,
        # this direction's H-wide slots filled, the other direction's slots zero.
        inp = w_t.shape[0]
        out = jnp.zeros((inp, G), jnp.float32)
        off = direction * H
        for tg in range(4):
            ng = perm[tg]
            out = out.at[:, H2 * ng + off: H2 * ng + off + H].set(
                w_t[:, tg * H:(tg + 1) * H])
        return out

    def bias_gate_major(b_f, b_b):
        out = jnp.zeros((G,), jnp.float32)
        for tg in range(4):
            ng = perm[tg]
            out = out.at[H2 * ng: H2 * ng + H].set(b_f[tg * H:(tg + 1) * H])
            out = out.at[H2 * ng + H: H2 * (ng + 1)].set(b_b[tg * H:(tg + 1) * H])
        return out

    kp = {"table": jnp.asarray(params["embeddings"], jnp.float32)}
    for layer in range(NUM_LAYERS):
        pf = params["lstm"][(layer, 0)]
        pb = params["lstm"][(layer, 1)]
        # merged dense input weights (fwd slots from fwd dir, bwd slots from bwd dir)
        wih = (gate_major(jnp.transpose(pf["w_ih"]), 0)
               + gate_major(jnp.transpose(pb["w_ih"]), 1))               # (I, 8H)
        whh = jnp.concatenate(
            [gate_major(jnp.transpose(pf["w_hh"]), 0),   # rows 0:H act on h_fwd
             gate_major(jnp.transpose(pb["w_hh"]), 1)],  # rows H:2H act on h_bwd
            axis=0)                                                       # (2H, 8H)
        bias = bias_gate_major(pf["b_ih"] + pf["b_hh"], pb["b_ih"] + pb["b_hh"])
        bias_rows = jnp.zeros((8, G), jnp.float32).at[0].set(bias)
        kp[f"slab{layer}"] = jnp.concatenate([bias_rows, wih, whh], axis=0)

    fcT = jnp.transpose(jnp.asarray(params["fc_w"], jnp.float32))         # (2H, C)
    # torch fc input is [h_bwd | h_fwd] (h[-1]=bwd, h[-2]=fwd); kernel final state is
    # [h_fwd | h_bwd] -> swap row halves so the kernel dot matches.
    wfc = jnp.concatenate([fcT[H:H2], fcT[0:H]], axis=0)                  # (2H, C)
    C = wfc.shape[1]
    wfc_p = jnp.zeros((H2, C_PAD), jnp.float32).at[:, :C].set(wfc)
    bfc_p = jnp.zeros((8, C_PAD), jnp.float32).at[0, :C].set(
        jnp.asarray(params["fc_b"], jnp.float32))
    kp["slabfc"] = jnp.concatenate([wfc_p, bfc_p], axis=0)                # (2H+8, 128)
    return kp


# ---------------- pure-JAX reference (for correctness check) ----------------
def _lstm_direction_ref(x_seq, lengths, w_ih, w_hh, b_ih, b_hh, reverse):
    T, B, _ = x_seq.shape
    H = w_hh.shape[1]
    wih_t, whh_t = w_ih.T, w_hh.T
    b = b_ih + b_hh

    def step(carry, t):
        h, c = carry
        gates = x_seq[t] @ wih_t + h @ whh_t + b
        i = jax.nn.sigmoid(gates[:, :H])
        f = jax.nn.sigmoid(gates[:, H:2 * H])
        g = jnp.tanh(gates[:, 2 * H:3 * H])
        o = jax.nn.sigmoid(gates[:, 3 * H:])
        c_new = f * c + i * g
        h_new = o * jnp.tanh(c_new)
        valid = lengths[:, None] > t
        h = jnp.where(valid, h_new, h)
        c = jnp.where(valid, c_new, c)
        return (h, c), jnp.where(valid, h_new, 0.0)

    ts = jnp.arange(T - 1, -1, -1) if reverse else jnp.arange(T)
    (h, _), outs = lax.scan(step, (jnp.zeros((B, H)), jnp.zeros((B, H))), ts)
    return (outs[::-1] if reverse else outs), h


def seq_classifier_ref(params, tokens, seq_len):
    x = jnp.transpose(params["embeddings"][tokens], (1, 0, 2))
    lengths = seq_len.astype(jnp.int32)
    directions = [False, True] if BIDIRECTIONAL else [False]
    layer_in = x
    h_layer = None
    for layer in range(NUM_LAYERS):
        outs, h_layer = [], []
        for d_idx, rev in enumerate(directions):
            p = params["lstm"][(layer, d_idx)]
            o, h = _lstm_direction_ref(layer_in, lengths,
                                       p["w_ih"], p["w_hh"], p["b_ih"], p["b_hh"], rev)
            outs.append(o)
            h_layer.append(h)
        layer_in = jnp.concatenate(outs, axis=-1) if len(outs) > 1 else outs[0]
    h_cat = jnp.concatenate([h_layer[1], h_layer[0]], axis=-1) if BIDIRECTIONAL else h_layer[0]
    z = h_cat @ params["fc_w"].T + params["fc_b"]
    return z * jax.nn.sigmoid(z)


# ---------------- deterministic parameter init ----------------
def init_params(key):
    keys = jax.random.split(key, 4 + 4 * NUM_LAYERS * (2 if BIDIRECTIONAL else 1))
    ki = iter(keys)
    params = {
        "embeddings": jax.random.normal(next(ki), (VOCAB, EMBED_DIM), jnp.float32) * 0.1,
        "fc_w": jax.random.normal(next(ki), (NUM_CLASSES, (2 if BIDIRECTIONAL else 1) * HIDDEN),
                                  jnp.float32) * 0.1,
        "fc_b": jax.random.normal(next(ki), (NUM_CLASSES,), jnp.float32) * 0.1,
        "lstm": {},
    }
    for layer in range(NUM_LAYERS):
        in_dim = EMBED_DIM if layer == 0 else (2 if BIDIRECTIONAL else 1) * HIDDEN
        for d_idx in range(2 if BIDIRECTIONAL else 1):
            params["lstm"][(layer, d_idx)] = {
                "w_ih": jax.random.normal(next(ki), (4 * HIDDEN, in_dim), jnp.float32) * 0.1,
                "w_hh": jax.random.normal(next(ki), (4 * HIDDEN, HIDDEN), jnp.float32) * 0.1,
                "b_ih": jax.random.normal(next(ki), (4 * HIDDEN,), jnp.float32) * 0.1,
                "b_hh": jax.random.normal(next(ki), (4 * HIDDEN,), jnp.float32) * 0.1,
            }
    return params


if __name__ == "__main__":
    root = jax.random.PRNGKey(0)
    k_param, k_tok = jax.random.split(root)
    params = init_params(k_param)
    kparams = prepare_params(params)   # one-time weight re-layout (outside the hot path)

    tokens = jax.random.randint(k_tok, (BATCH, SEQ), 0, VOCAB, dtype=jnp.int32)
    seq_len = jnp.array([SEQ, 5, 3, 6], dtype=jnp.int32)   # variable lengths (<= SEQ)
    # zero-out padded positions of the token ids (as a padded batch would be)
    tokens = jnp.where(jnp.arange(SEQ)[None, :] < seq_len[:, None], tokens, 0)

    out = jax.block_until_ready(seq_classifier_forward(kparams, tokens, seq_len))
    ref = jax.block_until_ready(seq_classifier_ref(params, tokens, seq_len))

    assert out.shape == (BATCH, NUM_CLASSES)
    assert jnp.allclose(out, ref, rtol=1e-3, atol=1e-3), "Pallas output mismatch vs JAX reference"
    print("KERNEL_OK")
</pallas_src>

<mosaic_0001>
module attributes {stable_mosaic.version = 11 : i64} {
  func.func @_seq_classifier_kernel(%arg0: memref<64x1xi32, #tpu.memory_space<vmem>>, %arg1: memref<8x1xi32, #tpu.memory_space<vmem>>, %arg2: memref<32x32xf32, #tpu.memory_space<vmem>>, %arg3: memref<104x256xf32, #tpu.memory_space<vmem>>, %arg4: memref<136x256xf32, #tpu.memory_space<vmem>>, %arg5: memref<72x128xf32, #tpu.memory_space<vmem>>, %arg6: memref<8x128xf32, #tpu.memory_space<vmem>>, %arg7: memref<64x64xf32, #tpu.memory_space<vmem>>) attributes {dimension_semantics = [], scalar_prefetch = 0 : i64, scratch_operands = 1 : i64, tpu.core_type = #tpu.core_type<tc>} {
    %c0 = arith.constant 0 : index
    %c0_0 = arith.constant 0 : index
    %0 = vector.load %arg1[%c0, %c0_0] : memref<8x1xi32, #tpu.memory_space<vmem>>, vector<8x1xi32>
    %1 = tpu.iota {dimensions = array<i32: 1>} : vector<1x64xi32>
    %c32_i32 = arith.constant 32 : i32
    %2 = vector.broadcast %c32_i32 : i32 to vector<1x64xi32>
    %3 = arith.cmpi slt, %1, %2 : vector<1x64xi32>
    %4 = tpu.iota {dimensions = array<i32: 1>} : vector<1x256xi32>
    %c64_i32 = arith.constant 64 : i32
    %c0_i32 = arith.constant 0 : i32
    %5 = arith.cmpi eq, %c64_i32, %c0_i32 : i32
    %c1_i32 = arith.constant 1 : i32
    %6 = arith.select %5, %c1_i32, %c64_i32 : i32
    %7 = vector.broadcast %6 : i32 to vector<1x256xi32>
    %8 = arith.remsi %4, %7 : vector<1x256xi32>
    %c0_i32_1 = arith.constant 0 : i32
    %9 = vector.broadcast %c0_i32_1 : i32 to vector<1x256xi32>
    %10 = arith.cmpi ne, %8, %9 : vector<1x256xi32>
    %c0_i32_2 = arith.constant 0 : i32
    %11 = vector.broadcast %c0_i32_2 : i32 to vector<1x256xi32>
    %12 = arith.cmpi slt, %8, %11 : vector<1x256xi32>
    %c0_i32_3 = arith.constant 0 : i32
    %13 = arith.cmpi slt, %6, %c0_i32_3 : i32
    %14 = vector.broadcast %13 : i1 to vector<1x256xi1>
    %15 = vector.broadcast %14 : vector<1x256xi1> to vector<1x256xi1>
    %16 = arith.xori %12, %15 : vector<1x256xi1>
    %17 = arith.andi %16, %10 : vector<1x256xi1>
    %18 = vector.broadcast %6 : i32 to vector<1x256xi32>
    %19 = arith.addi %8, %18 : vector<1x256xi32>
    %20 = arith.select %17, %19, %8 : vector<1x256xi1>, vector<1x256xi32>
    %c32_i32_4 = arith.constant 32 : i32
    %21 = vector.broadcast %c32_i32_4 : i32 to vector<1x256xi32>
    %22 = arith.cmpi slt, %20, %21 : vector<1x256xi32>
    %c0_i32_5 = arith.constant 0 : i32
    %c7_i32 = arith.constant 7 : i32
    %23 = vector.broadcast %c0_i32_5 : i32 to vector<1x64xi32>
    %24 = vector.broadcast %c7_i32 : i32 to vector<1x64xi32>
    %25 = arith.select %3, %23, %24 : vector<1x64xi1>, vector<1x64xi32>
    %26 = vector.broadcast %0 : vector<8x1xi32> to vector<8x64xi32>
    %27 = vector.broadcast %25 : vector<1x64xi32> to vector<8x64xi32>
    %28 = arith.cmpi sgt, %26, %27 : vector<8x64xi32>
    %c1_i32_6 = arith.constant 1 : i32
    %c6_i32 = arith.constant 6 : i32
    %29 = vector.broadcast %c1_i32_6 : i32 to vector<1x64xi32>
    %30 = vector.broadcast %c6_i32 : i32 to vector<1x64xi32>
    %31 = arith.select %3, %29, %30 : vector<1x64xi1>, vector<1x64xi32>
    %32 = vector.broadcast %0 : vector<8x1xi32> to vector<8x64xi32>
    %33 = vector.broadcast %31 : vector<1x64xi32> to vector<8x64xi32>
    %34 = arith.cmpi sgt, %32, %33 : vector<8x64xi32>
    %c2_i32 = arith.constant 2 : i32
    %c5_i32 = arith.constant 5 : i32
    %35 = vector.broadcast %c2_i32 : i32 to vector<1x64xi32>
    %36 = vector.broadcast %c5_i32 : i32 to vector<1x64xi32>
    %37 = arith.select %3, %35, %36 : vector<1x64xi1>, vector<1x64xi32>
    %38 = vector.broadcast %0 : vector<8x1xi32> to vector<8x64xi32>
    %39 = vector.broadcast %37 : vector<1x64xi32> to vector<8x64xi32>
    %40 = arith.cmpi sgt, %38, %39 : vector<8x64xi32>
    %c3_i32 = arith.constant 3 : i32
    %c4_i32 = arith.constant 4 : i32
    %41 = vector.broadcast %c3_i32 : i32 to vector<1x64xi32>
    %42 = vector.broadcast %c4_i32 : i32 to vector<1x64xi32>
    %43 = arith.select %3, %41, %42 : vector<1x64xi1>, vector<1x64xi32>
    %44 = vector.broadcast %0 : vector<8x1xi32> to vector<8x64xi32>
    %45 = vector.broadcast %43 : vector<1x64xi32> to vector<8x64xi32>
    %46 = arith.cmpi sgt, %44, %45 : vector<8x64xi32>
    %c4_i32_7 = arith.constant 4 : i32
    %c3_i32_8 = arith.constant 3 : i32
    %47 = vector.broadcast %c4_i32_7 : i32 to vector<1x64xi32>
    %48 = vector.broadcast %c3_i32_8 : i32 to vector<1x64xi32>
    %49 = arith.select %3, %47, %48 : vector<1x64xi1>, vector<1x64xi32>
    %50 = vector.broadcast %0 : vector<8x1xi32> to vector<8x64xi32>
    %51 = vector.broadcast %49 : vector<1x64xi32> to vector<8x64xi32>
    %52 = arith.cmpi sgt, %50, %51 : vector<8x64xi32>
    %c5_i32_9 = arith.constant 5 : i32
    %c2_i32_10 = arith.constant 2 : i32
    %53 = vector.broadcast %c5_i32_9 : i32 to vector<1x64xi32>
    %54 = vector.broadcast %c2_i32_10 : i32 to vector<1x64xi32>
    %55 = arith.select %3, %53, %54 : vector<1x64xi1>, vector<1x64xi32>
    %56 = vector.broadcast %0 : vector<8x1xi32> to vector<8x64xi32>
    %57 = vector.broadcast %55 : vector<1x64xi32> to vector<8x64xi32>
    %58 = arith.cmpi sgt, %56, %57 : vector<8x64xi32>
    %c6_i32_11 = arith.constant 6 : i32
    %c1_i32_12 = arith.constant 1 : i32
    %59 = vector.broadcast %c6_i32_11 : i32 to vector<1x64xi32>
    %60 = vector.broadcast %c1_i32_12 : i32 to vector<1x64xi32>
    %61 = arith.select %3, %59, %60 : vector<1x64xi1>, vector<1x64xi32>
    %62 = vector.broadcast %0 : vector<8x1xi32> to vector<8x64xi32>
    %63 = vector.broadcast %61 : vector<1x64xi32> to vector<8x64xi32>
    %64 = arith.cmpi sgt, %62, %63 : vector<8x64xi32>
    %c7_i32_13 = arith.constant 7 : i32
    %c0_i32_14 = arith.constant 0 : i32
    %65 = vector.broadcast %c7_i32_13 : i32 to vector<1x64xi32>
    %66 = vector.broadcast %c0_i32_14 : i32 to vector<1x64xi32>
    %67 = arith.select %3, %65, %66 : vector<1x64xi1>, vector<1x64xi32>
    %68 = vector.broadcast %0 : vector<8x1xi32> to vector<8x64xi32>
    %69 = vector.broadcast %67 : vector<1x64xi32> to vector<8x64xi32>
    %70 = arith.cmpi sgt, %68, %69 : vector<8x64xi32>
    %71 = tpu.iota {dimensions = array<i32: 1>} : vector<64x32xi32>
    %c0_15 = arith.constant 0 : index
    %c0_16 = arith.constant 0 : index
    %72 = vector.load %arg0[%c0_15, %c0_16] : memref<64x1xi32, #tpu.memory_space<vmem>>, vector<64x1xi32>
    %73 = vector.broadcast %72 : vector<64x1xi32> to vector<64x32xi32>
    %74 = arith.cmpi eq, %73, %71 : vector<64x32xi32>
    %75 = arith.extui %74 : vector<64x32xi1> to vector<64x32xi32>
    %76 = arith.sitofp %75 : vector<64x32xi32> to vector<64x32xf32>
    %c0_17 = arith.constant 0 : index
    %c0_18 = arith.constant 0 : index
    %77 = vector.load %arg2[%c0_17, %c0_18] : memref<32x32xf32, #tpu.memory_space<vmem>>, vector<32x32xf32>
    %cst = arith.constant dense<0.000000e+00> : vector<64x32xf32>
    %78 = tpu.matmul %76, %77, %cst {dimension_numbers = #tpu.dot_dimension_numbers<[1], [0], [0], [1], [0, 0, 1, 1], [], []>} : vector<64x32xf32>, vector<32x32xf32>, vector<64x32xf32> -> vector<64x32xf32>
    %c0_19 = arith.constant 0 : index
    %c0_20 = arith.constant 0 : index
    %79 = vector.load %arg3[%c0_19, %c0_20] : memref<104x256xf32, #tpu.memory_space<vmem>>, vector<1x256xf32>
    %c8 = arith.constant 8 : index
    %c0_21 = arith.constant 0 : index
    %80 = vector.load %arg3[%c8, %c0_21] : memref<104x256xf32, #tpu.memory_space<vmem>>, vector<32x256xf32>
    %c40 = arith.constant 40 : index
    %c0_22 = arith.constant 0 : index
    %81 = vector.load %arg3[%c40, %c0_22] : memref<104x256xf32, #tpu.memory_space<vmem>>, vector<64x256xf32>
    %cst_23 = arith.constant dense<0.000000e+00> : vector<64x256xf32>
    %82 = tpu.matmul %78, %80, %cst_23 {dimension_numbers = #tpu.dot_dimension_numbers<[1], [0], [0], [1], [0, 0, 1, 1], [], []>} : vector<64x32xf32>, vector<32x256xf32>, vector<64x256xf32> -> vector<64x256xf32>
    %83 = vector.broadcast %79 : vector<1x256xf32> to vector<64x256xf32>
    %84 = arith.addf %82, %83 : vector<64x256xf32>
    %cst_24 = arith.constant 0.000000e+00 : f32
    %85 = vector.broadcast %cst_24 : f32 to vector<8x64xf32>
    %cst_25 = arith.constant 0.000000e+00 : f32
    %86 = vector.broadcast %cst_25 : f32 to vector<8x64xf32>
    %87 = vector.extract_strided_slice %84 {offsets = [0, 0], sizes = [8, 256], strides = [1, 1]} : vector<64x256xf32> to vector<8x256xf32>
    %88 = vector.extract_strided_slice %84 {offsets = [56, 0], sizes = [8, 256], strides = [1, 1]} : vector<64x256xf32> to vector<8x256xf32>
    %89 = vector.shape_cast %22 : vector<1x256xi1> to vector<1x256xi1>
    %90 = vector.broadcast %89 : vector<1x256xi1> to vector<8x256xi1>
    %91 = arith.select %90, %87, %88 : vector<8x256xi1>, vector<8x256xf32>
    %cst_26 = arith.constant dense<0.000000e+00> : vector<8x256xf32>
    %92 = tpu.matmul %85, %81, %cst_26 {dimension_numbers = #tpu.dot_dimension_numbers<[1], [0], [0], [1], [0, 0, 1, 1], [], []>} : vector<8x64xf32>, vector<64x256xf32>, vector<8x256xf32> -> vector<8x256xf32>
    %93 = arith.addf %91, %92 : vector<8x256xf32>
    %94 = vector.extract_strided_slice %93 {offsets = [0, 0], sizes = [8, 192], strides = [1, 1]} : vector<8x256xf32> to vector<8x192xf32>
    %95 = arith.negf %94 : vector<8x192xf32>
    %96 = math.exp %95 : vector<8x192xf32>
    %cst_27 = arith.constant 1.000000e+00 : f32
    %97 = vector.broadcast %cst_27 : f32 to vector<8x192xf32>
    %98 = arith.addf %97, %96 : vector<8x192xf32>
    %99 = arith.divf %97, %98 : vector<8x192xf32>
    %100 = vector.extract_strided_slice %93 {offsets = [0, 192], sizes = [8, 64], strides = [1, 1]} : vector<8x256xf32> to vector<8x64xf32>
    %101 = math.tanh %100 : vector<8x64xf32>
    %102 = vector.extract_strided_slice %99 {offsets = [0, 0], sizes = [8, 64], strides = [1, 1]} : vector<8x192xf32> to vector<8x64xf32>
    %103 = vector.extract_strided_slice %99 {offsets = [0, 64], sizes = [8, 64], strides = [1, 1]} : vector<8x192xf32> to vector<8x64xf32>
    %104 = vector.extract_strided_slice %99 {offsets = [0, 128], sizes = [8, 64], strides = [1, 1]} : vector<8x192xf32> to vector<8x64xf32>
    %105 = arith.mulf %103, %86 : vector<8x64xf32>
    %106 = arith.mulf %102, %101 : vector<8x64xf32>
    %107 = arith.addf %105, %106 : vector<8x64xf32>
    %108 = math.tanh %107 : vector<8x64xf32>
    %109 = arith.mulf %104, %108 : vector<8x64xf32>
    %110 = arith.select %28, %109, %85 : vector<8x64xi1>, vector<8x64xf32>
    %111 = arith.select %28, %107, %86 : vector<8x64xi1>, vector<8x64xf32>
    %cst_28 = arith.constant 0.000000e+00 : f32
    %112 = vector.broadcast %cst_28 : f32 to vector<8x64xf32>
    %113 = arith.select %28, %109, %112 : vector<8x64xi1>, vector<8x64xf32>
    %114 = vector.extract_strided_slice %113 {offsets = [0, 0], sizes = [8, 32], strides = [1, 1]} : vector<8x64xf32> to vector<8x32xf32>
    %c0_29 = arith.constant 0 : index
    %c0_30 = arith.constant 0 : index
    %115 = vector.load %arg7[%c0_29, %c0_30] : memref<64x64xf32, #tpu.memory_space<vmem>>, vector<8x32xf32>
    tpu.vector_store %arg7[%c0_29, %c0_30], %114 {strides = array<i32>} : memref<64x64xf32, #tpu.memory_space<vmem>>, vector<8x32xf32>,
    %116 = vector.extract_strided_slice %113 {offsets = [0, 32], sizes = [8, 32], strides = [1, 1]} : vector<8x64xf32> to vector<8x32xf32>
    %c56 = arith.constant 56 : index
    %c32 = arith.constant 32 : index
    %117 = vector.load %arg7[%c56, %c32] : memref<64x64xf32, #tpu.memory_space<vmem>>, vector<8x32xf32>
    tpu.vector_store %arg7[%c56, %c32], %116 {strides = array<i32>} : memref<64x64xf32, #tpu.memory_space<vmem>>, vector<8x32xf32>,
    %118 = vector.extract_strided_slice %84 {offsets = [8, 0], sizes = [8, 256], strides = [1, 1]} : vector<64x256xf32> to vector<8x256xf32>
    %119 = vector.extract_strided_slice %84 {offsets = [48, 0], sizes = [8, 256], strides = [1, 1]} : vector<64x256xf32> to vector<8x256xf32>
    %120 = vector.shape_cast %22 : vector<1x256xi1> to vector<1x256xi1>
    %121 = vector.broadcast %120 : vector<1x256xi1> to vector<8x256xi1>
    %122 = arith.select %121, %118, %119 : vector<8x256xi1>, vector<8x256xf32>
    %cst_31 = arith.constant dense<0.000000e+00> : vector<8x256xf32>
    %123 = tpu.matmul %110, %81, %cst_31 {dimension_numbers = #tpu.dot_dimension_numbers<[1], [0], [0], [1], [0, 0, 1, 1], [], []>} : vector<8x64xf32>, vector<64x256xf32>, vector<8x256xf32> -> vector<8x256xf32>
    %124 = arith.addf %122, %123 : vector<8x256xf32>
    %125 = vector.extract_strided_slice %124 {offsets = [0, 0], sizes = [8, 192], strides = [1, 1]} : vector<8x256xf32> to vector<8x192xf32>
    %126 = arith.negf %125 : vector<8x192xf32>
    %127 = math.exp %126 : vector<8x192xf32>
    %cst_32 = arith.constant 1.000000e+00 : f32
    %128 = vector.broadcast %cst_32 : f32 to vector<8x192xf32>
    %129 = arith.addf %128, %127 : vector<8x192xf32>
    %130 = arith.divf %128, %129 : vector<8x192xf32>
    %131 = vector.extract_strided_slice %124 {offsets = [0, 192], sizes = [8, 64], strides = [1, 1]} : vector<8x256xf32> to vector<8x64xf32>
    %132 = math.tanh %131 : vector<8x64xf32>
    %133 = vector.extract_strided_slice %130 {offsets = [0, 0], sizes = [8, 64], strides = [1, 1]} : vector<8x192xf32> to vector<8x64xf32>
    %134 = vector.extract_strided_slice %130 {offsets = [0, 64], sizes = [8, 64], strides = [1, 1]} : vector<8x192xf32> to vector<8x64xf32>
    %135 = vector.extract_strided_slice %130 {offsets = [0, 128], sizes = [8, 64], strides = [1, 1]} : vector<8x192xf32> to vector<8x64xf32>
    %136 = arith.mulf %134, %111 : vector<8x64xf32>
    %137 = arith.mulf %133, %132 : vector<8x64xf32>
    %138 = arith.addf %136, %137 : vector<8x64xf32>
    %139 = math.tanh %138 : vector<8x64xf32>
    %140 = arith.mulf %135, %139 : vector<8x64xf32>
    %141 = arith.select %34, %140, %110 : vector<8x64xi1>, vector<8x64xf32>
    %142 = arith.select %34, %138, %111 : vector<8x64xi1>, vector<8x64xf32>
    %cst_33 = arith.constant 0.000000e+00 : f32
    %143 = vector.broadcast %cst_33 : f32 to vector<8x64xf32>
    %144 = arith.select %34, %140, %143 : vector<8x64xi1>, vector<8x64xf32>
    %145 = vector.extract_strided_slice %144 {offsets = [0, 0], sizes = [8, 32], strides = [1, 1]} : vector<8x64xf32> to vector<8x32xf32>
    %c8_34 = arith.constant 8 : index
    %c0_35 = arith.constant 0 : index
    %146 = vector.load %arg7[%c8_34, %c0_35] : memref<64x64xf32, #tpu.memory_space<vmem>>, vector<8x32xf32>
    tpu.vector_store %arg7[%c8_34, %c0_35], %145 {strides = array<i32>} : memref<64x64xf32, #tpu.memory_space<vmem>>, vector<8x32xf32>,
    %147 = vector.extract_strided_slice %144 {offsets = [0, 32], sizes = [8, 32], strides = [1, 1]} : vector<8x64xf32> to vector<8x32xf32>
    %c48 = arith.constant 48 : index
    %c32_36 = arith.constant 32 : index
    %148 = vector.load %arg7[%c48, %c32_36] : memref<64x64xf32, #tpu.memory_space<vmem>>, vector<8x32xf32>
    tpu.vector_store %arg7[%c48, %c32_36], %147 {strides = array<i32>} : memref<64x64xf32, #tpu.memory_space<vmem>>, vector<8x32xf32>,
    %149 = vector.extract_strided_slice %84 {offsets = [16, 0], sizes = [8, 256], strides = [1, 1]} : vector<64x256xf32> to vector<8x256xf32>
    %150 = vector.extract_strided_slice %84 {offsets = [40, 0], sizes = [8, 256], strides = [1, 1]} : vector<64x256xf32> to vector<8x256xf32>
    %151 = vector.shape_cast %22 : vector<1x256xi1> to vector<1x256xi1>
    %152 = vector.broadcast %151 : vector<1x256xi1> to vector<8x256xi1>
    %153 = arith.select %152, %149, %150 : vector<8x256xi1>, vector<8x256xf32>
    %cst_37 = arith.constant dense<0.000000e+00> : vector<8x256xf32>
    %154 = tpu.matmul %141, %81, %cst_37 {dimension_numbers = #tpu.dot_dimension_numbers<[1], [0], [0], [1], [0, 0, 1, 1], [], []>} : vector<8x64xf32>, vector<64x256xf32>, vector<8x256xf32> -> vector<8x256xf32>
    %155 = arith.addf %153, %154 : vector<8x256xf32>
    %156 = vector.extract_strided_slice %155 {offsets = [0, 0], sizes = [8, 192], strides = [1, 1]} : vector<8x256xf32> to vector<8x192xf32>
    %157 = arith.negf %156 : vector<8x192xf32>
    %158 = math.exp %157 : vector<8x192xf32>
    %cst_38 = arith.constant 1.000000e+00 : f32
    %159 = vector.broadcast %cst_38 : f32 to vector<8x192xf32>
    %160 = arith.addf %159, %158 : vector<8x192xf32>
    %161 = arith.divf %159, %160 : vector<8x192xf32>
    %162 = vector.extract_strided_slice %155 {offsets = [0, 192], sizes = [8, 64], strides = [1, 1]} : vector<8x256xf32> to vector<8x64xf32>
    %163 = math.tanh %162 : vector<8x64xf32>
    %164 = vector.extract_strided_slice %161 {offsets = [0, 0], sizes = [8, 64], strides = [1, 1]} : vector<8x192xf32> to vector<8x64xf32>
    %165 = vector.extract_strided_slice %161 {offsets = [0, 64], sizes = [8, 64], strides = [1, 1]} : vector<8x192xf32> to vector<8x64xf32>
    %166 = vector.extract_strided_slice %161 {offsets = [0, 128], sizes = [8, 64], strides = [1, 1]} : vector<8x192xf32> to vector<8x64xf32>
    %167 = arith.mulf %165, %142 : vector<8x64xf32>
    %168 = arith.mulf %164, %163 : vector<8x64xf32>
    %169 = arith.addf %167, %168 : vector<8x64xf32>
    %170 = math.tanh %169 : vector<8x64xf32>
    %171 = arith.mulf %166, %170 : vector<8x64xf32>
    %172 = arith.select %40, %171, %141 : vector<8x64xi1>, vector<8x64xf32>
    %173 = arith.select %40, %169, %142 : vector<8x64xi1>, vector<8x64xf32>
    %cst_39 = arith.constant 0.000000e+00 : f32
    %174 = vector.broadcast %cst_39 : f32 to vector<8x64xf32>
    %175 = arith.select %40, %171, %174 : vector<8x64xi1>, vector<8x64xf32>
    %176 = vector.extract_strided_slice %175 {offsets = [0, 0], sizes = [8, 32], strides = [1, 1]} : vector<8x64xf32> to vector<8x32xf32>
    %c16 = arith.constant 16 : index
    %c0_40 = arith.constant 0 : index
    %177 = vector.load %arg7[%c16, %c0_40] : memref<64x64xf32, #tpu.memory_space<vmem>>, vector<8x32xf32>
    tpu.vector_store %arg7[%c16, %c0_40], %176 {strides = array<i32>} : memref<64x64xf32, #tpu.memory_space<vmem>>, vector<8x32xf32>,
    %178 = vector.extract_strided_slice %175 {offsets = [0, 32], sizes = [8, 32], strides = [1, 1]} : vector<8x64xf32> to vector<8x32xf32>
    %c40_41 = arith.constant 40 : index
    %c32_42 = arith.constant 32 : index
    %179 = vector.load %arg7[%c40_41, %c32_42] : memref<64x64xf32, #tpu.memory_space<vmem>>, vector<8x32xf32>
    tpu.vector_store %arg7[%c40_41, %c32_42], %178 {strides = array<i32>} : memref<64x64xf32, #tpu.memory_space<vmem>>, vector<8x32xf32>,
    %180 = vector.extract_strided_slice %84 {offsets = [24, 0], sizes = [8, 256], strides = [1, 1]} : vector<64x256xf32> to vector<8x256xf32>
    %181 = vector.extract_strided_slice %84 {offsets = [32, 0], sizes = [8, 256], strides = [1, 1]} : vector<64x256xf32> to vector<8x256xf32>
    %182 = vector.shape_cast %22 : vector<1x256xi1> to vector<1x256xi1>
    %183 = vector.broadcast %182 : vector<1x256xi1> to vector<8x256xi1>
    %184 = arith.select %183, %180, %181 : vector<8x256xi1>, vector<8x256xf32>
    %cst_43 = arith.constant dense<0.000000e+00> : vector<8x256xf32>
    %185 = tpu.matmul %172, %81, %cst_43 {dimension_numbers = #tpu.dot_dimension_numbers<[1], [0], [0], [1], [0, 0, 1, 1], [], []>} : vector<8x64xf32>, vector<64x256xf32>, vector<8x256xf32> -> vector<8x256xf32>
    %186 = arith.addf %184, %185 : vector<8x256xf32>
    %187 = vector.extract_strided_slice %186 {offsets = [0, 0], sizes = [8, 192], strides = [1, 1]} : vector<8x256xf32> to vector<8x192xf32>
    %188 = arith.negf %187 : vector<8x192xf32>
    %189 = math.exp %188 : vector<8x192xf32>
    %cst_44 = arith.constant 1.000000e+00 : f32
    %190 = vector.broadcast %cst_44 : f32 to vector<8x192xf32>
    %191 = arith.addf %190, %189 : vector<8x192xf32>
    %192 = arith.divf %190, %191 : vector<8x192xf32>
    %193 = vector.extract_strided_slice %186 {offsets = [0, 192], sizes = [8, 64], strides = [1, 1]} : vector<8x256xf32> to vector<8x64xf32>
    %194 = math.tanh %193 : vector<8x64xf32>
    %195 = vector.extract_strided_slice %192 {offsets = [0, 0], sizes = [8, 64], strides = [1, 1]} : vector<8x192xf32> to vector<8x64xf32>
    %196 = vector.extract_strided_slice %192 {offsets = [0, 64], sizes = [8, 64], strides = [1, 1]} : vector<8x192xf32> to vector<8x64xf32>
    %197 = vector.extract_strided_slice %192 {offsets = [0, 128], sizes = [8, 64], strides = [1, 1]} : vector<8x192xf32> to vector<8x64xf32>
    %198 = arith.mulf %196, %173 : vector<8x64xf32>
    %199 = arith.mulf %195, %194 : vector<8x64xf32>
    %200 = arith.addf %198, %199 : vector<8x64xf32>
    %201 = math.tanh %200 : vector<8x64xf32>
    %202 = arith.mulf %197, %201 : vector<8x64xf32>
    %203 = arith.select %46, %202, %172 : vector<8x64xi1>, vector<8x64xf32>
    %204 = arith.select %46, %200, %173 : vector<8x64xi1>, vector<8x64xf32>
    %cst_45 = arith.constant 0.000000e+00 : f32
    %205 = vector.broadcast %cst_45 : f32 to vector<8x64xf32>
    %206 = arith.select %46, %202, %205 : vector<8x64xi1>, vector<8x64xf32>
    %207 = vector.extract_strided_slice %206 {offsets = [0, 0], sizes = [8, 32], strides = [1, 1]} : vector<8x64xf32> to vector<8x32xf32>
    %c24 = arith.constant 24 : index
    %c0_46 = arith.constant 0 : index
    %208 = vector.load %arg7[%c24, %c0_46] : memref<64x64xf32, #tpu.memory_space<vmem>>, vector<8x32xf32>
    tpu.vector_store %arg7[%c24, %c0_46], %207 {strides = array<i32>} : memref<64x64xf32, #tpu.memory_space<vmem>>, vector<8x32xf32>,
    %209 = vector.extract_strided_slice %206 {offsets = [0, 32], sizes = [8, 32], strides = [1, 1]} : vector<8x64xf32> to vector<8x32xf32>
    %c32_47 = arith.constant 32 : index
    %c32_48 = arith.constant 32 : index
    %210 = vector.load %arg7[%c32_47, %c32_48] : memref<64x64xf32, #tpu.memory_space<vmem>>, vector<8x32xf32>
    tpu.vector_store %arg7[%c32_47, %c32_48], %209 {strides = array<i32>} : memref<64x64xf32, #tpu.memory_space<vmem>>, vector<8x32xf32>,
    %211 = vector.extract_strided_slice %84 {offsets = [32, 0], sizes = [8, 256], strides = [1, 1]} : vector<64x256xf32> to vector<8x256xf32>
    %212 = vector.extract_strided_slice %84 {offsets = [24, 0], sizes = [8, 256], strides = [1, 1]} : vector<64x256xf32> to vector<8x256xf32>
    %213 = vector.shape_cast %22 : vector<1x256xi1> to vector<1x256xi1>
    %214 = vector.broadcast %213 : vector<1x256xi1> to vector<8x256xi1>
    %215 = arith.select %214, %211, %212 : vector<8x256xi1>, vector<8x256xf32>
    %cst_49 = arith.constant dense<0.000000e+00> : vector<8x256xf32>
    %216 = tpu.matmul %203, %81, %cst_49 {dimension_numbers = #tpu.dot_dimension_numbers<[1], [0], [0], [1], [0, 0, 1, 1], [], []>} : vector<8x64xf32>, vector<64x256xf32>, vector<8x256xf32> -> vector<8x256xf32>
    %217 = arith.addf %215, %216 : vector<8x256xf32>
    %218 = vector.extract_strided_slice %217 {offsets = [0, 0], sizes = [8, 192], strides = [1, 1]} : vector<8x256xf32> to vector<8x192xf32>
    %219 = arith.negf %218 : vector<8x192xf32>
    %220 = math.exp %219 : vector<8x192xf32>
    %cst_50 = arith.constant 1.000000e+00 : f32
    %221 = vector.broadcast %cst_50 : f32 to vector<8x192xf32>
    %222 = arith.addf %221, %220 : vector<8x192xf32>
    %223 = arith.divf %221, %222 : vector<8x192xf32>
    %224 = vector.extract_strided_slice %217 {offsets = [0, 192], sizes = [8, 64], strides = [1, 1]} : vector<8x256xf32> to vector<8x64xf32>
    %225 = math.tanh %224 : vector<8x64xf32>
    %226 = vector.extract_strided_slice %223 {offsets = [0, 0], sizes = [8, 64], strides = [1, 1]} : vector<8x192xf32> to vector<8x64xf32>
    %227 = vector.extract_strided_slice %223 {offsets = [0, 64], sizes = [8, 64], strides = [1, 1]} : vector<8x192xf32> to vector<8x64xf32>
    %228 = vector.extract_strided_slice %223 {offsets = [0, 128], sizes = [8, 64], strides = [1, 1]} : vector<8x192xf32> to vector<8x64xf32>
    %229 = arith.mulf %227, %204 : vector<8x64xf32>
    %230 = arith.mulf %226, %225 : vector<8x64xf32>
    %231 = arith.addf %229, %230 : vector<8x64xf32>
    %232 = math.tanh %231 : vector<8x64xf32>
    %233 = arith.mulf %228, %232 : vector<8x64xf32>
    %234 = arith.select %52, %233, %203 : vector<8x64xi1>, vector<8x64xf32>
    %235 = arith.select %52, %231, %204 : vector<8x64xi1>, vector<8x64xf32>
    %cst_51 = arith.constant 0.000000e+00 : f32
    %236 = vector.broadcast %cst_51 : f32 to vector<8x64xf32>
    %237 = arith.select %52, %233, %236 : vector<8x64xi1>, vector<8x64xf32>
    %238 = vector.extract_strided_slice %237 {offsets = [0, 0], sizes = [8, 32], strides = [1, 1]} : vector<8x64xf32> to vector<8x32xf32>
    %c32_52 = arith.constant 32 : index
    %c0_53 = arith.constant 0 : index
    %239 = vector.load %arg7[%c32_52, %c0_53] : memref<64x64xf32, #tpu.memory_space<vmem>>, vector<8x32xf32>
    tpu.vector_store %arg7[%c32_52, %c0_53], %238 {strides = array<i32>} : memref<64x64xf32, #tpu.memory_space<vmem>>, vector<8x32xf32>,
    %240 = vector.extract_strided_slice %237 {offsets = [0, 32], sizes = [8, 32], strides = [1, 1]} : vector<8x64xf32> to vector<8x32xf32>
    %c24_54 = arith.constant 24 : index
    %c32_55 = arith.constant 32 : index
    %241 = vector.load %arg7[%c24_54, %c32_55] : memref<64x64xf32, #tpu.memory_space<vmem>>, vector<8x32xf32>
    tpu.vector_store %arg7[%c24_54, %c32_55], %240 {strides = array<i32>} : memref<64x64xf32, #tpu.memory_space<vmem>>, vector<8x32xf32>,
    %242 = vector.extract_strided_slice %84 {offsets = [40, 0], sizes = [8, 256], strides = [1, 1]} : vector<64x256xf32> to vector<8x256xf32>
    %243 = vector.extract_strided_slice %84 {offsets = [16, 0], sizes = [8, 256], strides = [1, 1]} : vector<64x256xf32> to vector<8x256xf32>
    %244 = vector.shape_cast %22 : vector<1x256xi1> to vector<1x256xi1>
    %245 = vector.broadcast %244 : vector<1x256xi1> to vector<8x256xi1>
    %246 = arith.select %245, %242, %243 : vector<8x256xi1>, vector<8x256xf32>
    %cst_56 = arith.constant dense<0.000000e+00> : vector<8x256xf32>
    %247 = tpu.matmul %234, %81, %cst_56 {dimension_numbers = #tpu.dot_dimension_numbers<[1], [0], [0], [1], [0, 0, 1, 1], [], []>} : vector<8x64xf32>, vector<64x256xf32>, vector<8x256xf32> -> vector<8x256xf32>
    %248 = arith.addf %246, %247 : vector<8x256xf32>
    %249 = vector.extract_strided_slice %248 {offsets = [0, 0], sizes = [8, 192], strides = [1, 1]} : vector<8x256xf32> to vector<8x192xf32>
    %250 = arith.negf %249 : vector<8x192xf32>
    %251 = math.exp %250 : vector<8x192xf32>
    %cst_57 = arith.constant 1.000000e+00 : f32
    %252 = vector.broadcast %cst_57 : f32 to vector<8x192xf32>
    %253 = arith.addf %252, %251 : vector<8x192xf32>
    %254 = arith.divf %252, %253 : vector<8x192xf32>
    %255 = vector.extract_strided_slice %248 {offsets = [0, 192], sizes = [8, 64], strides = [1, 1]} : vector<8x256xf32> to vector<8x64xf32>
    %256 = math.tanh %255 : vector<8x64xf32>
    %257 = vector.extract_strided_slice %254 {offsets = [0, 0], sizes = [8, 64], strides = [1, 1]} : vector<8x192xf32> to vector<8x64xf32>
    %258 = vector.extract_strided_slice %254 {offsets = [0, 64], sizes = [8, 64], strides = [1, 1]} : vector<8x192xf32> to vector<8x64xf32>
    %259 = vector.extract_strided_slice %254 {offsets = [0, 128], sizes = [8, 64], strides = [1, 1]} : vector<8x192xf32> to vector<8x64xf32>
    %260 = arith.mulf %258, %235 : vector<8x64xf32>
    %261 = arith.mulf %257, %256 : vector<8x64xf32>
    %262 = arith.addf %260, %261 : vector<8x64xf32>
    %263 = math.tanh %262 : vector<8x64xf32>
    %264 = arith.mulf %259, %263 : vector<8x64xf32>
    %265 = arith.select %58, %264, %234 : vector<8x64xi1>, vector<8x64xf32>
    %266 = arith.select %58, %262, %235 : vector<8x64xi1>, vector<8x64xf32>
    %cst_58 = arith.constant 0.000000e+00 : f32
    %267 = vector.broadcast %cst_58 : f32 to vector<8x64xf32>
    %268 = arith.select %58, %264, %267 : vector<8x64xi1>, vector<8x64xf32>
    %269 = vector.extract_strided_slice %268 {offsets = [0, 0], sizes = [8, 32], strides = [1, 1]} : vector<8x64xf32> to vector<8x32xf32>
    %c40_59 = arith.constant 40 : index
    %c0_60 = arith.constant 0 : index
    %270 = vector.load %arg7[%c40_59, %c0_60] : memref<64x64xf32, #tpu.memory_space<vmem>>, vector<8x32xf32>
    tpu.vector_store %arg7[%c40_59, %c0_60], %269 {strides = array<i32>} : memref<64x64xf32, #tpu.memory_space<vmem>>, vector<8x32xf32>,
    %271 = vector.extract_strided_slice %268 {offsets = [0, 32], sizes = [8, 32], strides = [1, 1]} : vector<8x64xf32> to vector<8x32xf32>
    %c16_61 = arith.constant 16 : index
    %c32_62 = arith.constant 32 : index
    %272 = vector.load %arg7[%c16_61, %c32_62] : memref<64x64xf32, #tpu.memory_space<vmem>>, vector<8x32xf32>
    tpu.vector_store %arg7[%c16_61, %c32_62], %271 {strides = array<i32>} : memref<64x64xf32, #tpu.memory_space<vmem>>, vector<8x32xf32>,
    %273 = vector.extract_strided_slice %84 {offsets = [48, 0], sizes = [8, 256], strides = [1, 1]} : vector<64x256xf32> to vector<8x256xf32>
    %274 = vector.extract_strided_slice %84 {offsets = [8, 0], sizes = [8, 256], strides = [1, 1]} : vector<64x256xf32> to vector<8x256xf32>
    %275 = vector.shape_cast %22 : vector<1x256xi1> to vector<1x256xi1>
    %276 = vector.broadcast %275 : vector<1x256xi1> to vector<8x256xi1>
    %277 = arith.select %276, %273, %274 : vector<8x256xi1>, vector<8x256xf32>
    %cst_63 = arith.constant dense<0.000000e+00> : vector<8x256xf32>
    %278 = tpu.matmul %265, %81, %cst_63 {dimension_numbers = #tpu.dot_dimension_numbers<[1], [0], [0], [1], [0, 0, 1, 1], [], []>} : vector<8x64xf32>, vector<64x256xf32>, vector<8x256xf32> -> vector<8x256xf32>
    %279 = arith.addf %277, %278 : vector<8x256xf32>
    %280 = vector.extract_strided_slice %279 {offsets = [0, 0], sizes = [8, 192], strides = [1, 1]} : vector<8x256xf32> to vector<8x192xf32>
    %281 = arith.negf %280 : vector<8x192xf32>
    %282 = math.exp %281 : vector<8x192xf32>
    %cst_64 = arith.constant 1.000000e+00 : f32
    %283 = vector.broadcast %cst_64 : f32 to vector<8x192xf32>
    %284 = arith.addf %283, %282 : vector<8x192xf32>
    %285 = arith.divf %283, %284 : vector<8x192xf32>
    %286 = vector.extract_strided_slice %279 {offsets = [0, 192], sizes = [8, 64], strides = [1, 1]} : vector<8x256xf32> to vector<8x64xf32>
    %287 = math.tanh %286 : vector<8x64xf32>
    %288 = vector.extract_strided_slice %285 {offsets = [0, 0], sizes = [8, 64], strides = [1, 1]} : vector<8x192xf32> to vector<8x64xf32>
    %289 = vector.extract_strided_slice %285 {offsets = [0, 64], sizes = [8, 64], strides = [1, 1]} : vector<8x192xf32> to vector<8x64xf32>
    %290 = vector.extract_strided_slice %285 {offsets = [0, 128], sizes = [8, 64], strides = [1, 1]} : vector<8x192xf32> to vector<8x64xf32>
    %291 = arith.mulf %289, %266 : vector<8x64xf32>
    %292 = arith.mulf %288, %287 : vector<8x64xf32>
    %293 = arith.addf %291, %292 : vector<8x64xf32>
    %294 = math.tanh %293 : vector<8x64xf32>
    %295 = arith.mulf %290, %294 : vector<8x64xf32>
    %296 = arith.select %64, %295, %265 : vector<8x64xi1>, vector<8x64xf32>
    %297 = arith.select %64, %293, %266 : vector<8x64xi1>, vector<8x64xf32>
    %cst_65 = arith.constant 0.000000e+00 : f32
    %298 = vector.broadcast %cst_65 : f32 to vector<8x64xf32>
    %299 = arith.select %64, %295, %298 : vector<8x64xi1>, vector<8x64xf32>
    %300 = vector.extract_strided_slice %299 {offsets = [0, 0], sizes = [8, 32], strides = [1, 1]} : vector<8x64xf32> to vector<8x32xf32>
    %c48_66 = arith.constant 48 : index
    %c0_67 = arith.constant 0 : index
    %301 = vector.load %arg7[%c48_66, %c0_67] : memref<64x64xf32, #tpu.memory_space<vmem>>, vector<8x32xf32>
    tpu.vector_store %arg7[%c48_66, %c0_67], %300 {strides = array<i32>} : memref<64x64xf32, #tpu.memory_space<vmem>>, vector<8x32xf32>,
    %302 = vector.extract_strided_slice %299 {offsets = [0, 32], sizes = [8, 32], strides = [1, 1]} : vector<8x64xf32> to vector<8x32xf32>
    %c8_68 = arith.constant 8 : index
    %c32_69 = arith.constant 32 : index
    %303 = vector.load %arg7[%c8_68, %c32_69] : memref<64x64xf32, #tpu.memory_space<vmem>>, vector<8x32xf32>
    tpu.vector_store %arg7[%c8_68, %c32_69], %302 {strides = array<i32>} : memref<64x64xf32, #tpu.memory_space<vmem>>, vector<8x32xf32>,
    %304 = vector.extract_strided_slice %84 {offsets = [56, 0], sizes = [8, 256], strides = [1, 1]} : vector<64x256xf32> to vector<8x256xf32>
    %305 = vector.extract_strided_slice %84 {offsets = [0, 0], sizes = [8, 256], strides = [1, 1]} : vector<64x256xf32> to vector<8x256xf32>
    %306 = vector.shape_cast %22 : vector<1x256xi1> to vector<1x256xi1>
    %307 = vector.broadcast %306 : vector<1x256xi1> to vector<8x256xi1>
    %308 = arith.select %307, %304, %305 : vector<8x256xi1>, vector<8x256xf32>
    %cst_70 = arith.constant dense<0.000000e+00> : vector<8x256xf32>
    %309 = tpu.matmul %296, %81, %cst_70 {dimension_numbers = #tpu.dot_dimension_numbers<[1], [0], [0], [1], [0, 0, 1, 1], [], []>} : vector<8x64xf32>, vector<64x256xf32>, vector<8x256xf32> -> vector<8x256xf32>
    %310 = arith.addf %308, %309 : vector<8x256xf32>
    %311 = vector.extract_strided_slice %310 {offsets = [0, 0], sizes = [8, 192], strides = [1, 1]} : vector<8x256xf32> to vector<8x192xf32>
    %312 = arith.negf %311 : vector<8x192xf32>
    %313 = math.exp %312 : vector<8x192xf32>
    %cst_71 = arith.constant 1.000000e+00 : f32
    %314 = vector.broadcast %cst_71 : f32 to vector<8x192xf32>
    %315 = arith.addf %314, %313 : vector<8x192xf32>
    %316 = arith.divf %314, %315 : vector<8x192xf32>
    %317 = vector.extract_strided_slice %310 {offsets = [0, 192], sizes = [8, 64], strides = [1, 1]} : vector<8x256xf32> to vector<8x64xf32>
    %318 = math.tanh %317 : vector<8x64xf32>
    %319 = vector.extract_strided_slice %316 {offsets = [0, 0], sizes = [8, 64], strides = [1, 1]} : vector<8x192xf32> to vector<8x64xf32>
    %320 = vector.extract_strided_slice %316 {offsets = [0, 64], sizes = [8, 64], strides = [1, 1]} : vector<8x192xf32> to vector<8x64xf32>
    %321 = vector.extract_strided_slice %316 {offsets = [0, 128], sizes = [8, 64], strides = [1, 1]} : vector<8x192xf32> to vector<8x64xf32>
    %322 = arith.mulf %320, %297 : vector<8x64xf32>
    %323 = arith.mulf %319, %318 : vector<8x64xf32>
    %324 = arith.addf %322, %323 : vector<8x64xf32>
    %325 = math.tanh %324 : vector<8x64xf32>
    %326 = arith.mulf %321, %325 : vector<8x64xf32>
    %cst_72 = arith.constant 0.000000e+00 : f32
    %327 = vector.broadcast %cst_72 : f32 to vector<8x64xf32>
    %328 = arith.select %70, %326, %327 : vector<8x64xi1>, vector<8x64xf32>
    %329 = vector.extract_strided_slice %328 {offsets = [0, 0], sizes = [8, 32], strides = [1, 1]} : vector<8x64xf32> to vector<8x32xf32>
    %c56_73 = arith.constant 56 : index
    %c0_74 = arith.constant 0 : index
    %330 = vector.load %arg7[%c56_73, %c0_74] : memref<64x64xf32, #tpu.memory_space<vmem>>, vector<8x32xf32>
    tpu.vector_store %arg7[%c56_73, %c0_74], %329 {strides = array<i32>} : memref<64x64xf32, #tpu.memory_space<vmem>>, vector<8x32xf32>,
    %331 = vector.extract_strided_slice %328 {offsets = [0, 32], sizes = [8, 32], strides = [1, 1]} : vector<8x64xf32> to vector<8x32xf32>
    %c0_75 = arith.constant 0 : index
    %c32_76 = arith.constant 32 : index
    %332 = vector.load %arg7[%c0_75, %c32_76] : memref<64x64xf32, #tpu.memory_space<vmem>>, vector<8x32xf32>
    tpu.vector_store %arg7[%c0_75, %c32_76], %331 {strides = array<i32>} : memref<64x64xf32, #tpu.memory_space<vmem>>, vector<8x32xf32>,
    %c0_77 = arith.constant 0 : index
    %c0_78 = arith.constant 0 : index
    %333 = vector.load %arg4[%c0_77, %c0_78] : memref<136x256xf32, #tpu.memory_space<vmem>>, vector<1x256xf32>
    %c8_79 = arith.constant 8 : index
    %c0_80 = arith.constant 0 : index
    %334 = vector.load %arg4[%c8_79, %c0_80] : memref<136x256xf32, #tpu.memory_space<vmem>>, vector<64x256xf32>
    %c72 = arith.constant 72 : index
    %c0_81 = arith.constant 0 : index
    %335 = vector.load %arg4[%c72, %c0_81] : memref<136x256xf32, #tpu.memory_space<vmem>>, vector<64x256xf32>
    %c0_82 = arith.constant 0 : index
    %c0_83 = arith.constant 0 : index
    %336 = vector.load %arg7[%c0_82, %c0_83] : memref<64x64xf32, #tpu.memory_space<vmem>>, vector<64x64xf32>
    %cst_84 = arith.constant dense<0.000000e+00> : vector<64x256xf32>
    %337 = tpu.matmul %336, %334, %cst_84 {dimension_numbers = #tpu.dot_dimension_numbers<[1], [0], [0], [1], [0, 0, 1, 1], [], []>} : vector<64x64xf32>, vector<64x256xf32>, vector<64x256xf32> -> vector<64x256xf32>
    %338 = vector.broadcast %333 : vector<1x256xf32> to vector<64x256xf32>
    %339 = arith.addf %337, %338 : vector<64x256xf32>
    %cst_85 = arith.constant 0.000000e+00 : f32
    %340 = vector.broadcast %cst_85 : f32 to vector<8x64xf32>
    %cst_86 = arith.constant 0.000000e+00 : f32
    %341 = vector.broadcast %cst_86 : f32 to vector<8x64xf32>
    %342 = vector.extract_strided_slice %339 {offsets = [0, 0], sizes = [8, 256], strides = [1, 1]} : vector<64x256xf32> to vector<8x256xf32>
    %343 = vector.extract_strided_slice %339 {offsets = [56, 0], sizes = [8, 256], strides = [1, 1]} : vector<64x256xf32> to vector<8x256xf32>
    %344 = vector.shape_cast %22 : vector<1x256xi1> to vector<1x256xi1>
    %345 = vector.broadcast %344 : vector<1x256xi1> to vector<8x256xi1>
    %346 = arith.select %345, %342, %343 : vector<8x256xi1>, vector<8x256xf32>
    %cst_87 = arith.constant dense<0.000000e+00> : vector<8x256xf32>
    %347 = tpu.matmul %340, %335, %cst_87 {dimension_numbers = #tpu.dot_dimension_numbers<[1], [0], [0], [1], [0, 0, 1, 1], [], []>} : vector<8x64xf32>, vector<64x256xf32>, vector<8x256xf32> -> vector<8x256xf32>
    %348 = arith.addf %346, %347 : vector<8x256xf32>
    %349 = vector.extract_strided_slice %348 {offsets = [0, 0], sizes = [8, 192], strides = [1, 1]} : vector<8x256xf32> to vector<8x192xf32>
    %350 = arith.negf %349 : vector<8x192xf32>
    %351 = math.exp %350 : vector<8x192xf32>
    %cst_88 = arith.constant 1.000000e+00 : f32
    %352 = vector.broadcast %cst_88 : f32 to vector<8x192xf32>
    %353 = arith.addf %352, %351 : vector<8x192xf32>
    %354 = arith.divf %352, %353 : vector<8x192xf32>
    %355 = vector.extract_strided_slice %348 {offsets = [0, 192], sizes = [8, 64], strides = [1, 1]} : vector<8x256xf32> to vector<8x64xf32>
    %356 = math.tanh %355 : vector<8x64xf32>
    %357 = vector.extract_strided_slice %354 {offsets = [0, 0], sizes = [8, 64], strides = [1, 1]} : vector<8x192xf32> to vector<8x64xf32>
    %358 = vector.extract_strided_slice %354 {offsets = [0, 64], sizes = [8, 64], strides = [1, 1]} : vector<8x192xf32> to vector<8x64xf32>
    %359 = vector.extract_strided_slice %354 {offsets = [0, 128], sizes = [8, 64], strides = [1, 1]} : vector<8x192xf32> to vector<8x64xf32>
    %360 = arith.mulf %358, %341 : vector<8x64xf32>
    %361 = arith.mulf %357, %356 : vector<8x64xf32>
    %362 = arith.addf %360, %361 : vector<8x64xf32>
    %363 = math.tanh %362 : vector<8x64xf32>
    %364 = arith.mulf %359, %363 : vector<8x64xf32>
    %365 = arith.select %28, %364, %340 : vector<8x64xi1>, vector<8x64xf32>
    %366 = arith.select %28, %362, %341 : vector<8x64xi1>, vector<8x64xf32>
    %367 = vector.extract_strided_slice %339 {offsets = [8, 0], sizes = [8, 256], strides = [1, 1]} : vector<64x256xf32> to vector<8x256xf32>
    %368 = vector.extract_strided_slice %339 {offsets = [48, 0], sizes = [8, 256], strides = [1, 1]} : vector<64x256xf32> to vector<8x256xf32>
    %369 = vector.shape_cast %22 : vector<1x256xi1> to vector<1x256xi1>
    %370 = vector.broadcast %369 : vector<1x256xi1> to vector<8x256xi1>
    %371 = arith.select %370, %367, %368 : vector<8x256xi1>, vector<8x256xf32>
    %cst_89 = arith.constant dense<0.000000e+00> : vector<8x256xf32>
    %372 = tpu.matmul %365, %335, %cst_89 {dimension_numbers = #tpu.dot_dimension_numbers<[1], [0], [0], [1], [0, 0, 1, 1], [], []>} : vector<8x64xf32>, vector<64x256xf32>, vector<8x256xf32> -> vector<8x256xf32>
    %373 = arith.addf %371, %372 : vector<8x256xf32>
    %374 = vector.extract_strided_slice %373 {offsets = [0, 0], sizes = [8, 192], strides = [1, 1]} : vector<8x256xf32> to vector<8x192xf32>
    %375 = arith.negf %374 : vector<8x192xf32>
    %376 = math.exp %375 : vector<8x192xf32>
    %cst_90 = arith.constant 1.000000e+00 : f32
    %377 = vector.broadcast %cst_90 : f32 to vector<8x192xf32>
    %378 = arith.addf %377, %376 : vector<8x192xf32>
    %379 = arith.divf %377, %378 : vector<8x192xf32>
    %380 = vector.extract_strided_slice %373 {offsets = [0, 192], sizes = [8, 64], strides = [1, 1]} : vector<8x256xf32> to vector<8x64xf32>
    %381 = math.tanh %380 : vector<8x64xf32>
    %382 = vector.extract_strided_slice %379 {offsets = [0, 0], sizes = [8, 64], strides = [1, 1]} : vector<8x192xf32> to vector<8x64xf32>
    %383 = vector.extract_strided_slice %379 {offsets = [0, 64], sizes = [8, 64], strides = [1, 1]} : vector<8x192xf32> to vector<8x64xf32>
    %384 = vector.extract_strided_slice %379 {offsets = [0, 128], sizes = [8, 64], strides = [1, 1]} : vector<8x192xf32> to vector<8x64xf32>
    %385 = arith.mulf %383, %366 : vector<8x64xf32>
    %386 = arith.mulf %382, %381 : vector<8x64xf32>
    %387 = arith.addf %385, %386 : vector<8x64xf32>
    %388 = math.tanh %387 : vector<8x64xf32>
    %389 = arith.mulf %384, %388 : vector<8x64xf32>
    %390 = arith.select %34, %389, %365 : vector<8x64xi1>, vector<8x64xf32>
    %391 = arith.select %34, %387, %366 : vector<8x64xi1>, vector<8x64xf32>
    %392 = vector.extract_strided_slice %339 {offsets = [16, 0], sizes = [8, 256], strides = [1, 1]} : vector<64x256xf32> to vector<8x256xf32>
    %393 = vector.extract_strided_slice %339 {offsets = [40, 0], sizes = [8, 256], strides = [1, 1]} : vector<64x256xf32> to vector<8x256xf32>
    %394 = vector.shape_cast %22 : vector<1x256xi1> to vector<1x256xi1>
    %395 = vector.broadcast %394 : vector<1x256xi1> to vector<8x256xi1>
    %396 = arith.select %395, %392, %393 : vector<8x256xi1>, vector<8x256xf32>
    %cst_91 = arith.constant dense<0.000000e+00> : vector<8x256xf32>
    %397 = tpu.matmul %390, %335, %cst_91 {dimension_numbers = #tpu.dot_dimension_numbers<[1], [0], [0], [1], [0, 0, 1, 1], [], []>} : vector<8x64xf32>, vector<64x256xf32>, vector<8x256xf32> -> vector<8x256xf32>
    %398 = arith.addf %396, %397 : vector<8x256xf32>
    %399 = vector.extract_strided_slice %398 {offsets = [0, 0], sizes = [8, 192], strides = [1, 1]} : vector<8x256xf32> to vector<8x192xf32>
    %400 = arith.negf %399 : vector<8x192xf32>
    %401 = math.exp %400 : vector<8x192xf32>
    %cst_92 = arith.constant 1.000000e+00 : f32
    %402 = vector.broadcast %cst_92 : f32 to vector<8x192xf32>
    %403 = arith.addf %402, %401 : vector<8x192xf32>
    %404 = arith.divf %402, %403 : vector<8x192xf32>
    %405 = vector.extract_strided_slice %398 {offsets = [0, 192], sizes = [8, 64], strides = [1, 1]} : vector<8x256xf32> to vector<8x64xf32>
    %406 = math.tanh %405 : vector<8x64xf32>
    %407 = vector.extract_strided_slice %404 {offsets = [0, 0], sizes = [8, 64], strides = [1, 1]} : vector<8x192xf32> to vector<8x64xf32>
    %408 = vector.extract_strided_slice %404 {offsets = [0, 64], sizes = [8, 64], strides = [1, 1]} : vector<8x192xf32> to vector<8x64xf32>
    %409 = vector.extract_strided_slice %404 {offsets = [0, 128], sizes = [8, 64], strides = [1, 1]} : vector<8x192xf32> to vector<8x64xf32>
    %410 = arith.mulf %408, %391 : vector<8x64xf32>
    %411 = arith.mulf %407, %406 : vector<8x64xf32>
    %412 = arith.addf %410, %411 : vector<8x64xf32>
    %413 = math.tanh %412 : vector<8x64xf32>
    %414 = arith.mulf %409, %413 : vector<8x64xf32>
    %415 = arith.select %40, %414, %390 : vector<8x64xi1>, vector<8x64xf32>
    %416 = arith.select %40, %412, %391 : vector<8x64xi1>, vector<8x64xf32>
    %417 = vector.extract_strided_slice %339 {offsets = [24, 0], sizes = [8, 256], strides = [1, 1]} : vector<64x256xf32> to vector<8x256xf32>
    %418 = vector.extract_strided_slice %339 {offsets = [32, 0], sizes = [8, 256], strides = [1, 1]} : vector<64x256xf32> to vector<8x256xf32>
    %419 = vector.shape_cast %22 : vector<1x256xi1> to vector<1x256xi1>
    %420 = vector.broadcast %419 : vector<1x256xi1> to vector<8x256xi1>
    %421 = arith.select %420, %417, %418 : vector<8x256xi1>, vector<8x256xf32>
    %cst_93 = arith.constant dense<0.000000e+00> : vector<8x256xf32>
    %422 = tpu.matmul %415, %335, %cst_93 {dimension_numbers = #tpu.dot_dimension_numbers<[1], [0], [0], [1], [0, 0, 1, 1], [], []>} : vector<8x64xf32>, vector<64x256xf32>, vector<8x256xf32> -> vector<8x256xf32>
    %423 = arith.addf %421, %422 : vector<8x256xf32>
    %424 = vector.extract_strided_slice %423 {offsets = [0, 0], sizes = [8, 192], strides = [1, 1]} : vector<8x256xf32> to vector<8x192xf32>
    %425 = arith.negf %424 : vector<8x192xf32>
    %426 = math.exp %425 : vector<8x192xf32>
    %cst_94 = arith.constant 1.000000e+00 : f32
    %427 = vector.broadcast %cst_94 : f32 to vector<8x192xf32>
    %428 = arith.addf %427, %426 : vector<8x192xf32>
    %429 = arith.divf %427, %428 : vector<8x192xf32>
    %430 = vector.extract_strided_slice %423 {offsets = [0, 192], sizes = [8, 64], strides = [1, 1]} : vector<8x256xf32> to vector<8x64xf32>
    %431 = math.tanh %430 : vector<8x64xf32>
    %432 = vector.extract_strided_slice %429 {offsets = [0, 0], sizes = [8, 64], strides = [1, 1]} : vector<8x192xf32> to vector<8x64xf32>
    %433 = vector.extract_strided_slice %429 {offsets = [0, 64], sizes = [8, 64], strides = [1, 1]} : vector<8x192xf32> to vector<8x64xf32>
    %434 = vector.extract_strided_slice %429 {offsets = [0, 128], sizes = [8, 64], strides = [1, 1]} : vector<8x192xf32> to vector<8x64xf32>
    %435 = arith.mulf %433, %416 : vector<8x64xf32>
    %436 = arith.mulf %432, %431 : vector<8x64xf32>
    %437 = arith.addf %435, %436 : vector<8x64xf32>
    %438 = math.tanh %437 : vector<8x64xf32>
    %439 = arith.mulf %434, %438 : vector<8x64xf32>
    %440 = arith.select %46, %439, %415 : vector<8x64xi1>, vector<8x64xf32>
    %441 = arith.select %46, %437, %416 : vector<8x64xi1>, vector<8x64xf32>
    %442 = vector.extract_strided_slice %339 {offsets = [32, 0], sizes = [8, 256], strides = [1, 1]} : vector<64x256xf32> to vector<8x256xf32>
    %443 = vector.extract_strided_slice %339 {offsets = [24, 0], sizes = [8, 256], strides = [1, 1]} : vector<64x256xf32> to vector<8x256xf32>
    %444 = vector.shape_cast %22 : vector<1x256xi1> to vector<1x256xi1>
    %445 = vector.broadcast %444 : vector<1x256xi1> to vector<8x256xi1>
    %446 = arith.select %445, %442, %443 : vector<8x256xi1>, vector<8x256xf32>
    %cst_95 = arith.constant dense<0.000000e+00> : vector<8x256xf32>
    %447 = tpu.matmul %440, %335, %cst_95 {dimension_numbers = #tpu.dot_dimension_numbers<[1], [0], [0], [1], [0, 0, 1, 1], [], []>} : vector<8x64xf32>, vector<64x256xf32>, vector<8x256xf32> -> vector<8x256xf32>
    %448 = arith.addf %446, %447 : vector<8x256xf32>
    %449 = vector.extract_strided_slice %448 {offsets = [0, 0], sizes = [8, 192], strides = [1, 1]} : vector<8x256xf32> to vector<8x192xf32>
    %450 = arith.negf %449 : vector<8x192xf32>
    %451 = math.exp %450 : vector<8x192xf32>
    %cst_96 = arith.constant 1.000000e+00 : f32
    %452 = vector.broadcast %cst_96 : f32 to vector<8x192xf32>
    %453 = arith.addf %452, %451 : vector<8x192xf32>
    %454 = arith.divf %452, %453 : vector<8x192xf32>
    %455 = vector.extract_strided_slice %448 {offsets = [0, 192], sizes = [8, 64], strides = [1, 1]} : vector<8x256xf32> to vector<8x64xf32>
    %456 = math.tanh %455 : vector<8x64xf32>
    %457 = vector.extract_strided_slice %454 {offsets = [0, 0], sizes = [8, 64], strides = [1, 1]} : vector<8x192xf32> to vector<8x64xf32>
    %458 = vector.extract_strided_slice %454 {offsets = [0, 64], sizes = [8, 64], strides = [1, 1]} : vector<8x192xf32> to vector<8x64xf32>
    %459 = vector.extract_strided_slice %454 {offsets = [0, 128], sizes = [8, 64], strides = [1, 1]} : vector<8x192xf32> to vector<8x64xf32>
    %460 = arith.mulf %458, %441 : vector<8x64xf32>
    %461 = arith.mulf %457, %456 : vector<8x64xf32>
    %462 = arith.addf %460, %461 : vector<8x64xf32>
    %463 = math.tanh %462 : vector<8x64xf32>
    %464 = arith.mulf %459, %463 : vector<8x64xf32>
    %465 = arith.select %52, %464, %440 : vector<8x64xi1>, vector<8x64xf32>
    %466 = arith.select %52, %462, %441 : vector<8x64xi1>, vector<8x64xf32>
    %467 = vector.extract_strided_slice %339 {offsets = [40, 0], sizes = [8, 256], strides = [1, 1]} : vector<64x256xf32> to vector<8x256xf32>
    %468 = vector.extract_strided_slice %339 {offsets = [16, 0], sizes = [8, 256], strides = [1, 1]} : vector<64x256xf32> to vector<8x256xf32>
    %469 = vector.shape_cast %22 : vector<1x256xi1> to vector<1x256xi1>
    %470 = vector.broadcast %469 : vector<1x256xi1> to vector<8x256xi1>
    %471 = arith.select %470, %467, %468 : vector<8x256xi1>, vector<8x256xf32>
    %cst_97 = arith.constant dense<0.000000e+00> : vector<8x256xf32>
    %472 = tpu.matmul %465, %335, %cst_97 {dimension_numbers = #tpu.dot_dimension_numbers<[1], [0], [0], [1], [0, 0, 1, 1], [], []>} : vector<8x64xf32>, vector<64x256xf32>, vector<8x256xf32> -> vector<8x256xf32>
    %473 = arith.addf %471, %472 : vector<8x256xf32>
    %474 = vector.extract_strided_slice %473 {offsets = [0, 0], sizes = [8, 192], strides = [1, 1]} : vector<8x256xf32> to vector<8x192xf32>
    %475 = arith.negf %474 : vector<8x192xf32>
    %476 = math.exp %475 : vector<8x192xf32>
    %cst_98 = arith.constant 1.000000e+00 : f32
    %477 = vector.broadcast %cst_98 : f32 to vector<8x192xf32>
    %478 = arith.addf %477, %476 : vector<8x192xf32>
    %479 = arith.divf %477, %478 : vector<8x192xf32>
    %480 = vector.extract_strided_slice %473 {offsets = [0, 192], sizes = [8, 64], strides = [1, 1]} : vector<8x256xf32> to vector<8x64xf32>
    %481 = math.tanh %480 : vector<8x64xf32>
    %482 = vector.extract_strided_slice %479 {offsets = [0, 0], sizes = [8, 64], strides = [1, 1]} : vector<8x192xf32> to vector<8x64xf32>
    %483 = vector.extract_strided_slice %479 {offsets = [0, 64], sizes = [8, 64], strides = [1, 1]} : vector<8x192xf32> to vector<8x64xf32>
    %484 = vector.extract_strided_slice %479 {offsets = [0, 128], sizes = [8, 64], strides = [1, 1]} : vector<8x192xf32> to vector<8x64xf32>
    %485 = arith.mulf %483, %466 : vector<8x64xf32>
    %486 = arith.mulf %482, %481 : vector<8x64xf32>
    %487 = arith.addf %485, %486 : vector<8x64xf32>
    %488 = math.tanh %487 : vector<8x64xf32>
    %489 = arith.mulf %484, %488 : vector<8x64xf32>
    %490 = arith.select %58, %489, %465 : vector<8x64xi1>, vector<8x64xf32>
    %491 = arith.select %58, %487, %466 : vector<8x64xi1>, vector<8x64xf32>
    %492 = vector.extract_strided_slice %339 {offsets = [48, 0], sizes = [8, 256], strides = [1, 1]} : vector<64x256xf32> to vector<8x256xf32>
    %493 = vector.extract_strided_slice %339 {offsets = [8, 0], sizes = [8, 256], strides = [1, 1]} : vector<64x256xf32> to vector<8x256xf32>
    %494 = vector.shape_cast %22 : vector<1x256xi1> to vector<1x256xi1>
    %495 = vector.broadcast %494 : vector<1x256xi1> to vector<8x256xi1>
    %496 = arith.select %495, %492, %493 : vector<8x256xi1>, vector<8x256xf32>
    %cst_99 = arith.constant dense<0.000000e+00> : vector<8x256xf32>
    %497 = tpu.matmul %490, %335, %cst_99 {dimension_numbers = #tpu.dot_dimension_numbers<[1], [0], [0], [1], [0, 0, 1, 1], [], []>} : vector<8x64xf32>, vector<64x256xf32>, vector<8x256xf32> -> vector<8x256xf32>
    %498 = arith.addf %496, %497 : vector<8x256xf32>
    %499 = vector.extract_strided_slice %498 {offsets = [0, 0], sizes = [8, 192], strides = [1, 1]} : vector<8x256xf32> to vector<8x192xf32>
    %500 = arith.negf %499 : vector<8x192xf32>
    %501 = math.exp %500 : vector<8x192xf32>
    %cst_100 = arith.constant 1.000000e+00 : f32
    %502 = vector.broadcast %cst_100 : f32 to vector<8x192xf32>
    %503 = arith.addf %502, %501 : vector<8x192xf32>
    %504 = arith.divf %502, %503 : vector<8x192xf32>
    %505 = vector.extract_strided_slice %498 {offsets = [0, 192], sizes = [8, 64], strides = [1, 1]} : vector<8x256xf32> to vector<8x64xf32>
    %506 = math.tanh %505 : vector<8x64xf32>
    %507 = vector.extract_strided_slice %504 {offsets = [0, 0], sizes = [8, 64], strides = [1, 1]} : vector<8x192xf32> to vector<8x64xf32>
    %508 = vector.extract_strided_slice %504 {offsets = [0, 64], sizes = [8, 64], strides = [1, 1]} : vector<8x192xf32> to vector<8x64xf32>
    %509 = vector.extract_strided_slice %504 {offsets = [0, 128], sizes = [8, 64], strides = [1, 1]} : vector<8x192xf32> to vector<8x64xf32>
    %510 = arith.mulf %508, %491 : vector<8x64xf32>
    %511 = arith.mulf %507, %506 : vector<8x64xf32>
    %512 = arith.addf %510, %511 : vector<8x64xf32>
    %513 = math.tanh %512 : vector<8x64xf32>
    %514 = arith.mulf %509, %513 : vector<8x64xf32>
    %515 = arith.select %64, %514, %490 : vector<8x64xi1>, vector<8x64xf32>
    %516 = arith.select %64, %512, %491 : vector<8x64xi1>, vector<8x64xf32>
    %517 = vector.extract_strided_slice %339 {offsets = [56, 0], sizes = [8, 256], strides = [1, 1]} : vector<64x256xf32> to vector<8x256xf32>
    %518 = vector.extract_strided_slice %339 {offsets = [0, 0], sizes = [8, 256], strides = [1, 1]} : vector<64x256xf32> to vector<8x256xf32>
    %519 = vector.shape_cast %22 : vector<1x256xi1> to vector<1x256xi1>
    %520 = vector.broadcast %519 : vector<1x256xi1> to vector<8x256xi1>
    %521 = arith.select %520, %517, %518 : vector<8x256xi1>, vector<8x256xf32>
    %cst_101 = arith.constant dense<0.000000e+00> : vector<8x256xf32>
    %522 = tpu.matmul %515, %335, %cst_101 {dimension_numbers = #tpu.dot_dimension_numbers<[1], [0], [0], [1], [0, 0, 1, 1], [], []>} : vector<8x64xf32>, vector<64x256xf32>, vector<8x256xf32> -> vector<8x256xf32>
    %523 = arith.addf %521, %522 : vector<8x256xf32>
    %524 = vector.extract_strided_slice %523 {offsets = [0, 0], sizes = [8, 192], strides = [1, 1]} : vector<8x256xf32> to vector<8x192xf32>
    %525 = arith.negf %524 : vector<8x192xf32>
    %526 = math.exp %525 : vector<8x192xf32>
    %cst_102 = arith.constant 1.000000e+00 : f32
    %527 = vector.broadcast %cst_102 : f32 to vector<8x192xf32>
    %528 = arith.addf %527, %526 : vector<8x192xf32>
    %529 = arith.divf %527, %528 : vector<8x192xf32>
    %530 = vector.extract_strided_slice %523 {offsets = [0, 192], sizes = [8, 64], strides = [1, 1]} : vector<8x256xf32> to vector<8x64xf32>
    %531 = math.tanh %530 : vector<8x64xf32>
    %532 = vector.extract_strided_slice %529 {offsets = [0, 0], sizes = [8, 64], strides = [1, 1]} : vector<8x192xf32> to vector<8x64xf32>
    %533 = vector.extract_strided_slice %529 {offsets = [0, 64], sizes = [8, 64], strides = [1, 1]} : vector<8x192xf32> to vector<8x64xf32>
    %534 = vector.extract_strided_slice %529 {offsets = [0, 128], sizes = [8, 64], strides = [1, 1]} : vector<8x192xf32> to vector<8x64xf32>
    %535 = arith.mulf %533, %516 : vector<8x64xf32>
    %536 = arith.mulf %532, %531 : vector<8x64xf32>
    %537 = arith.addf %535, %536 : vector<8x64xf32>
    %538 = math.tanh %537 : vector<8x64xf32>
    %539 = arith.mulf %534, %538 : vector<8x64xf32>
    %540 = arith.select %70, %539, %515 : vector<8x64xi1>, vector<8x64xf32>
    %c0_103 = arith.constant 0 : index
    %c0_104 = arith.constant 0 : index
    %541 = vector.load %arg5[%c0_103, %c0_104] : memref<72x128xf32, #tpu.memory_space<vmem>>, vector<64x128xf32>
    %c64 = arith.constant 64 : index
    %c0_105 = arith.constant 0 : index
    %542 = vector.load %arg5[%c64, %c0_105] : memref<72x128xf32, #tpu.memory_space<vmem>>, vector<1x128xf32>
    %cst_106 = arith.constant dense<0.000000e+00> : vector<8x128xf32>
    %543 = tpu.matmul %540, %541, %cst_106 {dimension_numbers = #tpu.dot_dimension_numbers<[1], [0], [0], [1], [0, 0, 1, 1], [], []>} : vector<8x64xf32>, vector<64x128xf32>, vector<8x128xf32> -> vector<8x128xf32>
    %544 = vector.broadcast %542 : vector<1x128xf32> to vector<8x128xf32>
    %545 = arith.addf %543, %544 : vector<8x128xf32>
    %546 = arith.negf %545 : vector<8x128xf32>
    %547 = math.exp %546 : vector<8x128xf32>
    %cst_107 = arith.constant 1.000000e+00 : f32
    %548 = vector.broadcast %cst_107 : f32 to vector<8x128xf32>
    %549 = arith.addf %548, %547 : vector<8x128xf32>
    %550 = arith.divf %548, %549 : vector<8x128xf32>
    %551 = arith.mulf %545, %550 : vector<8x128xf32>
    %c0_108 = arith.constant 0 : index
    %c0_109 = arith.constant 0 : index
    %552 = vector.load %arg6[%c0_108, %c0_109] : memref<8x128xf32, #tpu.memory_space<vmem>>, vector<8x128xf32>
    tpu.vector_store %arg6[%c0_108, %c0_109], %551 {strides = array<i32>} : memref<8x128xf32, #tpu.memory_space<vmem>>, vector<8x128xf32>,
    return
  }
}

</mosaic_0001>

<llo_original>
// kernel: seq_classifier_forward.1
$region0: #{seq_classifier_forward.1}
  #allocation0 [shape = 'u32[]', space=smem, size = 0x4, offset = 0x4, fixed_abs, tag = 'smem constant byte address 0x4 - core index']
  #allocation1 [shape = 'u32[144,128]{1,0:T(1,128)}', space=vmem, size = 0x12000, scoped, tag = 'internal scratch']
  #allocation2 [shape = 'f32[64,64]{1,0:T(8,128)}', space=vmem, size = 0x8000, scoped, tag = 'scratch operand']
  %s0 = inlined_call_operand.vmem [shape: s32[64,1], index: 0, kind: input, shape index: {}]
  %s1 = inlined_call_operand.vmem [shape: s32[8,1], index: 1, kind: input, shape index: {}]
  %s2 = inlined_call_operand.vmem [shape: f32[32,32], index: 2, kind: input, shape index: {}]
  %s3 = inlined_call_operand.hbm [shape: f32[104,256], index: 3, kind: input, shape index: {}]
  %s4 = inlined_call_operand.hbm [shape: f32[136,256], index: 4, kind: input, shape index: {}]
  %s5 = inlined_call_operand.vmem [shape: f32[72,128], index: 5, kind: input, shape index: {}]
  %s6 = inlined_call_operand.vmem [shape: f32[8,128], index: 6, kind: output, shape index: {}]
  %s7 = sld [smem:[#allocation0]]
  $region42: #{seq_classifier_forward.1} parent=0
    _
  %s9 = ssub.s32 1, %s7
  %s10 = scalar_select 0, %s9, %s7
  $region1: #{seq_classifier_forward.1} parent=0
    #allocation3 [shape = 'u8[106496]{0}', space=vmem, size = 0x1a000, scoped, tag = 'input window, operand 3, single buffered']
    #allocation4 [shape = 's32[1]{0}', space=sflag, size = 0x4, scoped, tag = 'scoped memory for seq_classifier_forward.1']
    #allocation5 [shape = 'u8[139264]{0}', space=vmem, size = 0x22000, scoped, tag = 'input window, operand 4, single buffered']
    #allocation6 [shape = 's32[1]{0}', space=sflag, size = 0x4, scoped, tag = 'scoped memory for seq_classifier_forward.1']
    %11 = vsyncpa [#allocation4], 0
    %12 = vsyncpa [#allocation6], 0
    // Predicated region
    $region2: #{seq_classifier_forward.1} parent=1 // pred_check
      _
    $region3: #{seq_classifier_forward.1} parent=1 // pred_check_branch
      %14 = sbr.rel (0) target = $region5
    $region4: #{seq_classifier_forward.1} parent=1 // pred_region
      _
    $region5: #{seq_classifier_forward.1} parent=1 // pred_fallthru
      _
    // Predicated region
    $region6: #{seq_classifier_forward.1} parent=1 // pred_check
      _
    $region7: #{seq_classifier_forward.1} parent=1 // pred_check_branch
      %16 = sbr.rel (0) target = $region9
    $region8: #{seq_classifier_forward.1} parent=1 // pred_region
      _
    $region9: #{seq_classifier_forward.1} parent=1 // pred_fallthru
      _
    // Predicated region
    $region10: #{seq_classifier_forward.1} parent=1 // pred_check
      _
    $region11: #{seq_classifier_forward.1} parent=1 // pred_check_branch
      %18 = sbr.rel (0) target = $region13
    $region12: #{seq_classifier_forward.1} parent=1 // pred_region
      _
    $region13: #{seq_classifier_forward.1} parent=1 // pred_fallthru
      _
    // Predicated region
    $region14: #{seq_classifier_forward.1} parent=1 // pred_check
      _
    $region15: #{seq_classifier_forward.1} parent=1 // pred_check_branch
      %20 = sbr.rel (0) target = $region17
    $region16: #{seq_classifier_forward.1} parent=1 // pred_region
      %s22 = ssub.s32 3328, 3328
      %23 = vsyncadd [#allocation4], %s22
      %s24 = sshll.u32 [#allocation3], 4
      %s25 = int_to_ptr.vmem [resolvable:$true] %s24
      %30 = dma.hbm_to_vmem [thread:$0]  %s3, 3328, %s25, [#allocation4], 256, 256, 16
    $region17: #{seq_classifier_forward.1} parent=1 // pred_fallthru
      _
    // Predicated region
    $region18: #{seq_classifier_forward.1} parent=1 // pred_check
      _
    $region19: #{seq_classifier_forward.1} parent=1 // pred_check_branch
      %32 = sbr.rel (0) target = $region21
    $region20: #{seq_classifier_forward.1} parent=1 // pred_region
      %s34 = ssub.s32 4352, 4352
      %35 = vsyncadd [#allocation6], %s34
      %s36 = sshll.u32 [#allocation5], 4
      %s37 = int_to_ptr.vmem [resolvable:$true] %s36
      %42 = dma.hbm_to_vmem [thread:$0]  %s4, 4352, %s37, [#allocation6], 256, 256, 16
    $region21: #{seq_classifier_forward.1} parent=1 // pred_fallthru
      _
    // Predicated region
    $region22: #{seq_classifier_forward.1} parent=1 // pred_check
      _
    $region23: #{seq_classifier_forward.1} parent=1 // pred_check_branch
      %44 = sbr.rel (0) target = $region25
    $region24: #{seq_classifier_forward.1} parent=1 // pred_region
      _
    $region25: #{seq_classifier_forward.1} parent=1 // pred_fallthru
      _
    // Predicated region
    $region26: #{seq_classifier_forward.1} parent=1 // pred_check
      _
    $region27: #{seq_classifier_forward.1} parent=1 // pred_check_branch
      %46 = sbr.rel (0) target = $region29
    $region28: #{seq_classifier_forward.1} parent=1 // pred_region
      %47 = dma.done [#allocation4], 3328
    $region29: #{seq_classifier_forward.1} parent=1 // pred_fallthru
      _
    // Predicated region
    $region30: #{seq_classifier_forward.1} parent=1 // pred_check
      _
    $region31: #{seq_classifier_forward.1} parent=1 // pred_check_branch
      %49 = sbr.rel (0) target = $region33
    $region32: #{seq_classifier_forward.1} parent=1 // pred_region
      %50 = dma.done [#allocation6], 4352
    $region33: #{seq_classifier_forward.1} parent=1 // pred_fallthru
      _
    %v51 = vld [vmem:[%s1] sm:$0xff]
    %v52 = vlaneseq
    %v53 = vand.u32 %v52, 127
    %vm54 = vcmp.lt.s32.totalorder %v53, 32
    %v55 = vadd.s32 %v53, 128
    %vm56 = vcmp.lt.s32.totalorder %v53, 0
    %v57 = vsub.s32 0, %v53
    %v58 = vsel %vm56, %v57, %v53
    %v59 = vshrl.u32 %v58, 6
    %v60 = vand.u32 %v58, 63
    %v61 = vsub.s32 0, %v60
    %v62 = vsel %vm56, %v61, %v60
    %vm63 = vcmp.lt.s32.totalorder %v55, 0
    %v64 = vsub.s32 0, %v55
    %v65 = vsel %vm63, %v64, %v55
    %v66 = vshrl.u32 %v65, 6
    %v67 = vand.u32 %v65, 63
    %v68 = vsub.s32 0, %v67
    %v69 = vsel %vm63, %v68, %v67
    %vm70 = vcmp.ne.s32.totalorder %v62, 0
    %vm71 = vcmp.ne.s32.totalorder %v69, 0
    %vm72 = vcmp.lt.s32.totalorder %v62, 0
    %vm73 = vcmp.lt.s32.totalorder %v69, 0
    %vm74 = vmand %vm72, %vm70
    %vm75 = vmand %vm73, %vm71
    %v76 = vadd.s32 %v62, 64
    %v77 = vadd.s32 %v69, 64
    %v78 = vsel %vm74, %v76, %v62
    %v79 = vsel %vm75, %v77, %v69
    %vm80 = vcmp.lt.s32.totalorder %v78, 32
    %vm81 = vcmp.lt.s32.totalorder %v79, 32
    %v82 = vsel %vm54, 0, 7
    %83 = vset.pattern.permute.xlu0 0
    %84 = vperm.xlu0 %83, %v51
    %v85 = vpop.permute.xlu0 %84
    %vm86 = vcmp.gt.s32.totalorder %v85, %v82
    %v87 = vsel %vm54, 1, 6
    %vm88 = vcmp.gt.s32.totalorder %v85, %v87
    %v89 = vsel %vm54, 2, 5
    %vm90 = vcmp.gt.s32.totalorder %v85, %v89
    %v91 = vsel %vm54, 3, 4
    %vm92 = vcmp.gt.s32.totalorder %v85, %v91
    %v93 = vsel %vm54, 4, 3
    %vm94 = vcmp.gt.s32.totalorder %v85, %v93
    %v95 = vsel %vm54, 5, 2
    %vm96 = vcmp.gt.s32.totalorder %v85, %v95
    %v97 = vsel %vm54, 6, 1
    %vm98 = vcmp.gt.s32.totalorder %v85, %v97
    %v99 = vsel %vm54, 7, 0
    %vm100 = vcmp.gt.s32.totalorder %v85, %v99
    %v101 = vld [vmem:[%s0] sm:$0xff]
    %v102 = vld [vmem:[%s0 + $0x8] sm:$0xff]
    %v103 = vld [vmem:[%s0 + $0x10] sm:$0xff]
    %v104 = vld [vmem:[%s0 + $0x18] sm:$0xff]
    %v105 = vld [vmem:[%s0 + $0x20] sm:$0xff]
    %v106 = vld [vmem:[%s0 + $0x28] sm:$0xff]
    %v107 = vld [vmem:[%s0 + $0x30] sm:$0xff]
    %v108 = vld [vmem:[%s0 + $0x38] sm:$0xff]
    %109 = vset.pattern.permute.xlu0 0
    %110 = vperm.xlu0 %109, %v101
    %v111 = vpop.permute.xlu0 %110
    %112 = vset.pattern.permute.xlu0 0
    %113 = vperm.xlu0 %112, %v102
    %v114 = vpop.permute.xlu0 %113
    %115 = vset.pattern.permute.xlu0 0
    %116 = vperm.xlu0 %115, %v103
    %v117 = vpop.permute.xlu0 %116
    %118 = vset.pattern.permute.xlu0 0
    %119 = vperm.xlu0 %118, %v104
    %v120 = vpop.permute.xlu0 %119
    %121 = vset.pattern.permute.xlu0 0
    %122 = vperm.xlu0 %121, %v105
    %v123 = vpop.permute.xlu0 %122
    %124 = vset.pattern.permute.xlu0 0
    %125 = vperm.xlu0 %124, %v106
    %v126 = vpop.permute.xlu0 %125
    %127 = vset.pattern.permute.xlu0 0
    %128 = vperm.xlu0 %127, %v107
    %v129 = vpop.permute.xlu0 %128
    %130 = vset.pattern.permute.xlu0 0
    %131 = vperm.xlu0 %130, %v108
    %v132 = vpop.permute.xlu0 %131
    %vm133 = vcmp.eq.s32.totalorder %v111, %v53
    %vm134 = vcmp.eq.s32.totalorder %v114, %v53
    %vm135 = vcmp.eq.s32.totalorder %v117, %v53
    %vm136 = vcmp.eq.s32.totalorder %v120, %v53
    %vm137 = vcmp.eq.s32.totalorder %v123, %v53
    %vm138 = vcmp.eq.s32.totalorder %v126, %v53
    %vm139 = vcmp.eq.s32.totalorder %v129, %v53
    %vm140 = vcmp.eq.s32.totalorder %v132, %v53
    %v141 = vsel %vm133, 1, 0
    %v142 = vsel %vm134, 1, 0
    %v143 = vsel %vm135, 1, 0
    %v144 = vsel %vm136, 1, 0
    %v145 = vsel %vm137, 1, 0
    %v146 = vsel %vm138, 1, 0
    %v147 = vsel %vm139, 1, 0
    %v148 = vsel %vm140, 1, 0
    %v149 = vcvt.s32.f32 %v141
    %v150 = vcvt.s32.f32 %v142
    %v151 = vcvt.s32.f32 %v143
    %v152 = vcvt.s32.f32 %v144
    %v153 = vcvt.s32.f32 %v145
    %v154 = vcvt.s32.f32 %v146
    %v155 = vcvt.s32.f32 %v147
    %v156 = vcvt.s32.f32 %v148
    %v157 = vld [vmem:[%s2] sm:$0xff]
    %v158 = vld [vmem:[%s2 + $0x8] sm:$0xff]
    %v159 = vld [vmem:[%s2 + $0x10] sm:$0xff]
    %v160 = vld [vmem:[%s2 + $0x18] sm:$0xff]
    %vm161 = vcmask 261120
    %v163 = vsel %vm161, %v149, 0
    %v166 = vsel %vm161, %v150, 0
    %v169 = vsel %vm161, %v151, 0
    %v172 = vsel %vm161, %v152, 0
    %v175 = vsel %vm161, %v153, 0
    %v178 = vsel %vm161, %v154, 0
    %v181 = vsel %vm161, %v155, 0
    %v184 = vsel %vm161, %v156, 0
    %186 = vmatprep.subr.mxu0 0.0
    %187 = vmatpush1.msra.mxu0 %v157
    %188 = vmatprep.subr.mxu0 0.0
    %189 = vmatpush1.msra.mxu0 %v158
    %190 = vmatprep.subr.mxu0 0.0
    %191 = vmatpush1.msra.mxu0 %v159
    %192 = vmatprep.subr.mxu0 0.0
    %193 = vmatpush1.msra.mxu0 %v160
    %194 = vmatprep.subr.mxu0 0.0
    %195 = vmatpush1.msra.mxu0 0.0
    %196 = vmatprep.subr.mxu0 0.0
    %197 = vmatpush1.msra.mxu0 0.0
    %198 = vmatprep.subr.mxu0 0.0
    %199 = vmatpush1.msra.mxu0 0.0
    %200 = vmatprep.subr.mxu0 0.0
    %201 = vmatpush1.msra.mxu0 0.0
    %202 = vmatprep.subr.mxu0 0.0
    %203 = vmatpush1.msra.mxu0 0.0
    %204 = vmatprep.subr.mxu0 0.0
    %205 = vmatpush1.msra.mxu0 0.0
    %206 = vmatprep.subr.mxu0 0.0
    %207 = vmatpush1.msra.mxu0 0.0
    %208 = vmatprep.subr.mxu0 0.0
    %209 = vmatpush1.msra.mxu0 0.0
    %210 = vmatprep.subr.mxu0 0.0
    %211 = vmatpush1.msra.mxu0 0.0
    %212 = vmatprep.subr.mxu0 0.0
    %213 = vmatpush1.msra.mxu0 0.0
    %214 = vmatprep.subr.mxu0 0.0
    %215 = vmatpush1.msra.mxu0 0.0
    %216 = vmatprep.subr.mxu0 0.0
    %217 = vmatpush1.msra.mxu0 0.0
    %218 = vmatprep.subr.mxu0 0.0
    %219 = vmatpush1.msra.mxu0 0.0
    %220 = vmatprep.subr.mxu0 0.0
    %221 = vmatpush1.msra.mxu0 0.0
    %222 = vmatprep.subr.mxu0 0.0
    %223 = vmatpush1.msra.mxu0 0.0
    %224 = vmatprep.subr.mxu0 0.0
    %225 = vmatpush1.msra.mxu0 0.0
    %226 = vmatprep.subr.mxu0 0.0
    %227 = vmatpush1.msra.mxu0 0.0
    %228 = vmatprep.subr.mxu0 0.0
    %229 = vmatpush1.msra.mxu0 0.0
    %230 = vmatprep.subr.mxu0 0.0
    %231 = vmatpush1.msra.mxu0 0.0
    %232 = vmatprep.subr.mxu0 0.0
    %233 = vmatpush1.msra.mxu0 0.0
    %234 = vmatprep.subr.mxu0 0.0
    %235 = vmatpush1.msra.mxu0 0.0
    %236 = vmatprep.subr.mxu0 0.0
    %237 = vmatpush1.msra.mxu0 0.0
    %238 = vmatprep.subr.mxu0 0.0
    %239 = vmatpush1.msra.mxu0 0.0
    %240 = vmatprep.subr.mxu0 0.0
    %241 = vmatpush1.msra.mxu0 0.0
    %242 = vmatprep.subr.mxu0 0.0
    %243 = vmatpush1.msra.mxu0 0.0
    %244 = vmatprep.subr.mxu0 0.0
    %245 = vmatpush1.msra.mxu0 0.0
    %246 = vmatprep.subr.mxu0 0.0
    %247 = vmatpush1.msra.mxu0 0.0
    %248 = vmatprep.subr.mxu0 0.0
    %249 = vmatpush1.msra.mxu0 0.0
    %250 = vmatprep.mubr.f32.mxu0 0.0
    %251 = vmatmul.mubr.f32.gmra.mrb[0].mxu0 %v163
    %v252 = vpop.f32.mrb[0].mxu0
    %v253 = vadd.f32 0.0, %v252
    %v254 = vpop.f32.mrb[0].mxu0
    %255 = vmatprep.mubr.f32.mxu0 0.0
    %256 = vmatmul.mubr.f32.gmra.mrb[0].mxu0 %v166
    %v257 = vpop.f32.mrb[0].mxu0
    %v258 = vadd.f32 0.0, %v257
    %v259 = vpop.f32.mrb[0].mxu0
    %260 = vmatprep.mubr.f32.mxu0 0.0
    %261 = vmatmul.mubr.f32.gmra.mrb[0].mxu0 %v169
    %v262 = vpop.f32.mrb[0].mxu0
    %v263 = vadd.f32 0.0, %v262
    %v264 = vpop.f32.mrb[0].mxu0
    %265 = vmatprep.mubr.f32.mxu0 0.0
    %266 = vmatmul.mubr.f32.gmra.mrb[0].mxu0 %v172
    %v267 = vpop.f32.mrb[0].mxu0
    %v268 = vadd.f32 0.0, %v267
    %v269 = vpop.f32.mrb[0].mxu0
    %270 = vmatprep.mubr.f32.mxu0 0.0
    %271 = vmatmul.mubr.f32.gmra.mrb[0].mxu0 %v175
    %v272 = vpop.f32.mrb[0].mxu0
    %v273 = vadd.f32 0.0, %v272
    %v274 = vpop.f32.mrb[0].mxu0
    %275 = vmatprep.mubr.f32.mxu0 0.0
    %276 = vmatmul.mubr.f32.gmra.mrb[0].mxu0 %v178
    %v277 = vpop.f32.mrb[0].mxu0
    %v278 = vadd.f32 0.0, %v277
    %v279 = vpop.f32.mrb[0].mxu0
    %280 = vmatprep.mubr.f32.mxu0 0.0
    %281 = vmatmul.mubr.f32.gmra.mrb[0].mxu0 %v181
    %v282 = vpop.f32.mrb[0].mxu0
    %v283 = vadd.f32 0.0, %v282
    %v284 = vpop.f32.mrb[0].mxu0
    %285 = vmatprep.mubr.f32.mxu0 0.0
    %286 = vmatmul.mubr.f32.gmra.mrb[0].mxu0 %v184
    %v287 = vpop.f32.mrb[0].mxu0
    %v288 = vadd.f32 0.0, %v287
    %v289 = vpop.f32.mrb[0].mxu0
    %290 = vdwg.mxu0
    %v291 = vld [vmem:[#allocation3] ss:$8 sm:$0x3]
    %v292 = vld [vmem:[#allocation3 + $0x10] sm:$0xff]
    %v293 = vld [vmem:[#allocation3 + $0x18] sm:$0xff]
    %v294 = vld [vmem:[#allocation3 + $0x20] sm:$0xff]
    %v295 = vld [vmem:[#allocation3 + $0x28] sm:$0xff]
    %v296 = vld [vmem:[#allocation3 + $0x30] sm:$0xff]
    %v297 = vld [vmem:[#allocation3 + $0x38] sm:$0xff]
    %v298 = vld [vmem:[#allocation3 + $0x40] sm:$0xff]
    %v299 = vld [vmem:[#allocation3 + $0x48] sm:$0xff]
    %v300 = vld [vmem:[#allocation3 + $0x50] sm:$0xff]
    %v301 = vld [vmem:[#allocation3 + $0x58] sm:$0xff]
    %v302 = vld [vmem:[#allocation3 + $0x60] sm:$0xff]
    %v303 = vld [vmem:[#allocation3 + $0x68] sm:$0xff]
    %v304 = vld [vmem:[#allocation3 + $0x70] sm:$0xff]
    %v305 = vld [vmem:[#allocation3 + $0x78] sm:$0xff]
    %v306 = vld [vmem:[#allocation3 + $0x80] sm:$0xff]
    %v307 = vld [vmem:[#allocation3 + $0x88] sm:$0xff]
    %v308 = vld [vmem:[#allocation3 + $0x90] sm:$0xff]
    %v309 = vld [vmem:[#allocation3 + $0x98] sm:$0xff]
    %v310 = vld [vmem:[#allocation3 + $0xa0] sm:$0xff]
    %v311 = vld [vmem:[#allocation3 + $0xa8] sm:$0xff]
    %v312 = vld [vmem:[#allocation3 + $0xb0] sm:$0xff]
    %v313 = vld [vmem:[#allocation3 + $0xb8] sm:$0xff]
    %v314 = vld [vmem:[#allocation3 + $0xc0] sm:$0xff]
    %v315 = vld [vmem:[#allocation3 + $0xc8] sm:$0xff]
    %v317 = vlaneseq
    %v318 = vshrl.u32 %v317, 7
    %v319 = vsub.s32 0, %v318
    %v320 = vrot.slane %v291, %v319
    %v321 = vlaneseq
    %v322 = vshrl.u32 %v321, 7
    %v323 = vsub.s32 1, %v322
    %v324 = vrot.slane %v291, %v323
    %v328 = vsel %vm161, %v253, 0
    %v331 = vsel %vm161, %v258, 0
    %v334 = vsel %vm161, %v263, 0
    %v337 = vsel %vm161, %v268, 0
    %v340 = vsel %vm161, %v273, 0
    %v343 = vsel %vm161, %v278, 0
    %v346 = vsel %vm161, %v283, 0
    %v349 = vsel %vm161, %v288, 0
    %351 = vmatprep.subr.mxu0 %v293
    %352 = vmatpush1.msra.mxu0 %v292
    %353 = vmatprep.subr.mxu0 %v295
    %354 = vmatpush1.msra.mxu0 %v294
    %355 = vmatprep.subr.mxu0 %v297
    %356 = vmatpush1.msra.mxu0 %v296
    %357 = vmatprep.subr.mxu0 %v299
    %358 = vmatpush1.msra.mxu0 %v298
    %359 = vmatprep.subr.mxu0 0.0
    %360 = vmatpush1.msra.mxu0 0.0
    %361 = vmatprep.subr.mxu0 0.0
    %362 = vmatpush1.msra.mxu0 0.0
    %363 = vmatprep.subr.mxu0 0.0
    %364 = vmatpush1.msra.mxu0 0.0
    %365 = vmatprep.subr.mxu0 0.0
    %366 = vmatpush1.msra.mxu0 0.0
    %367 = vmatprep.subr.mxu0 0.0
    %368 = vmatpush1.msra.mxu0 0.0
    %369 = vmatprep.subr.mxu0 0.0
    %370 = vmatpush1.msra.mxu0 0.0
    %371 = vmatprep.subr.mxu0 0.0
    %372 = vmatpush1.msra.mxu0 0.0
    %373 = vmatprep.subr.mxu0 0.0
    %374 = vmatpush1.msra.mxu0 0.0
    %375 = vmatprep.subr.mxu0 0.0
    %376 = vmatpush1.msra.mxu0 0.0
    %377 = vmatprep.subr.mxu0 0.0
    %378 = vmatpush1.msra.mxu0 0.0
    %379 = vmatprep.subr.mxu0 0.0
    %380 = vmatpush1.msra.mxu0 0.0
    %381 = vmatprep.subr.mxu0 0.0
    %382 = vmatpush1.msra.mxu0 0.0
    %383 = vmatprep.subr.mxu0 0.0
    %384 = vmatpush1.msra.mxu0 0.0
    %385 = vmatprep.subr.mxu0 0.0
    %386 = vmatpush1.msra.mxu0 0.0
    %387 = vmatprep.subr.mxu0 0.0
    %388 = vmatpush1.msra.mxu0 0.0
    %389 = vmatprep.subr.mxu0 0.0
    %390 = vmatpush1.msra.mxu0 0.0
    %391 = vmatprep.subr.mxu0 0.0
    %392 = vmatpush1.msra.mxu0 0.0
    %393 = vmatprep.subr.mxu0 0.0
    %394 = vmatpush1.msra.mxu0 0.0
    %395 = vmatprep.subr.mxu0 0.0
    %396 = vmatpush1.msra.mxu0 0.0
    %397 = vmatprep.subr.mxu0 0.0
    %398 = vmatpush1.msra.mxu0 0.0
    %399 = vmatprep.subr.mxu0 0.0
    %400 = vmatpush1.msra.mxu0 0.0
    %401 = vmatprep.subr.mxu0 0.0
    %402 = vmatpush1.msra.mxu0 0.0
    %403 = vmatprep.subr.mxu0 0.0
    %404 = vmatpush1.msra.mxu0 0.0
    %405 = vmatprep.subr.mxu0 0.0
    %406 = vmatpush1.msra.mxu0 0.0
    %407 = vmatprep.subr.mxu0 0.0
    %408 = vmatpush1.msra.mxu0 0.0
    %409 = vmatprep.subr.mxu0 0.0
    %410 = vmatpush1.msra.mxu0 0.0
    %411 = vmatprep.subr.mxu0 0.0
    %412 = vmatpush1.msra.mxu0 0.0
    %413 = vmatprep.subr.mxu0 0.0
    %414 = vmatpush1.msra.mxu0 0.0
    %415 = vmatprep.mubr.f32.mxu0 0.0
    %416 = vmatmul.mubr.f32.gmra.mrb[0].mxu0 %v328
    %v417 = vpop.f32.mrb[0].mxu0
    %v418 = vadd.f32 %v320, %v417
    %v419 = vpop.f32.mrb[0].mxu0
    %v420 = vadd.f32 %v324, %v419
    %421 = vmatprep.mubr.f32.mxu0 0.0
    %422 = vmatmul.mubr.f32.gmra.mrb[0].mxu0 %v331
    %v423 = vpop.f32.mrb[0].mxu0
    %v424 = vadd.f32 %v320, %v423
    %v425 = vpop.f32.mrb[0].mxu0
    %v426 = vadd.f32 %v324, %v425
    %427 = vmatprep.mubr.f32.mxu0 0.0
    %428 = vmatmul.mubr.f32.gmra.mrb[0].mxu0 %v334
    %v429 = vpop.f32.mrb[0].mxu0
    %v430 = vadd.f32 %v320, %v429
    %v431 = vpop.f32.mrb[0].mxu0
    %v432 = vadd.f32 %v324, %v431
    %433 = vmatprep.mubr.f32.mxu0 0.0
    %434 = vmatmul.mubr.f32.gmra.mrb[0].mxu0 %v337
    %v435 = vpop.f32.mrb[0].mxu0
    %v436 = vadd.f32 %v320, %v435
    %v437 = vpop.f32.mrb[0].mxu0
    %v438 = vadd.f32 %v324, %v437
    %439 = vmatprep.mubr.f32.mxu0 0.0
    %440 = vmatmul.mubr.f32.gmra.mrb[0].mxu0 %v340
    %v441 = vpop.f32.mrb[0].mxu0
    %v442 = vadd.f32 %v320, %v441
    %v443 = vpop.f32.mrb[0].mxu0
    %v444 = vadd.f32 %v324, %v443
    %445 = vmatprep.mubr.f32.mxu0 0.0
    %446 = vmatmul.mubr.f32.gmra.mrb[0].mxu0 %v343
    %v447 = vpop.f32.mrb[0].mxu0
    %v448 = vadd.f32 %v320, %v447
    %v449 = vpop.f32.mrb[0].mxu0
    %v450 = vadd.f32 %v324, %v449
    %451 = vmatprep.mubr.f32.mxu0 0.0
    %452 = vmatmul.mubr.f32.gmra.mrb[0].mxu0 %v346
    %v453 = vpop.f32.mrb[0].mxu0
    %v454 = vadd.f32 %v320, %v453
    %v455 = vpop.f32.mrb[0].mxu0
    %v456 = vadd.f32 %v324, %v455
    %457 = vmatprep.mubr.f32.mxu0 0.0
    %458 = vmatmul.mubr.f32.gmra.mrb[0].mxu0 %v349
    %v459 = vpop.f32.mrb[0].mxu0
    %v460 = vadd.f32 %v320, %v459
    %v461 = vpop.f32.mrb[0].mxu0
    %v462 = vadd.f32 %v324, %v461
    %463 = vdwg.mxu0
    %v464 = vsel %vm80, 1, 0
    %v465 = vsel %vm81, 1, 0
    %vm466 = vcmp.eq.s32.totalorder %v464, 1
    %vm467 = vcmp.eq.s32.totalorder %v465, 1
    %v468 = vsel %vm466, %v418, %v460
    %v469 = vsel %vm467, %v420, %v462
    %vm470 = vcmask 523264
    %v472 = vsel %vm470, 0.0, 0
    %474 = vmatprep.subr.mxu0 %v301
    %475 = vmatpush1.msra.mxu0 %v300
    %476 = vmatprep.subr.mxu0 %v303
    %477 = vmatpush1.msra.mxu0 %v302
    %478 = vmatprep.subr.mxu0 %v305
    %479 = vmatpush1.msra.mxu0 %v304
    %480 = vmatprep.subr.mxu0 %v307
    %481 = vmatpush1.msra.mxu0 %v306
    %482 = vmatprep.subr.mxu0 %v309
    %483 = vmatpush1.msra.mxu0 %v308
    %484 = vmatprep.subr.mxu0 %v311
    %485 = vmatpush1.msra.mxu0 %v310
    %486 = vmatprep.subr.mxu0 %v313
    %487 = vmatpush1.msra.mxu0 %v312
    %488 = vmatprep.subr.mxu0 %v315
    %489 = vmatpush1.msra.mxu0 %v314
    %490 = vmatprep.subr.mxu0 0.0
    %491 = vmatpush1.msra.mxu0 0.0
    %492 = vmatprep.subr.mxu0 0.0
    %493 = vmatpush1.msra.mxu0 0.0
    %494 = vmatprep.subr.mxu0 0.0
    %495 = vmatpush1.msra.mxu0 0.0
    %496 = vmatprep.subr.mxu0 0.0
    %497 = vmatpush1.msra.mxu0 0.0
    %498 = vmatprep.subr.mxu0 0.0
    %499 = vmatpush1.msra.mxu0 0.0
    %500 = vmatprep.subr.mxu0 0.0
    %501 = vmatpush1.msra.mxu0 0.0
    %502 = vmatprep.subr.mxu0 0.0
    %503 = vmatpush1.msra.mxu0 0.0
    %504 = vmatprep.subr.mxu0 0.0
    %505 = vmatpush1.msra.mxu0 0.0
    %506 = vmatprep.subr.mxu0 0.0
    %507 = vmatpush1.msra.mxu0 0.0
    %508 = vmatprep.subr.mxu0 0.0
    %509 = vmatpush1.msra.mxu0 0.0
    %510 = vmatprep.subr.mxu0 0.0
    %511 = vmatpush1.msra.mxu0 0.0
    %512 = vmatprep.subr.mxu0 0.0
    %513 = vmatpush1.msra.mxu0 0.0
    %514 = vmatprep.subr.mxu0 0.0
    %515 = vmatpush1.msra.mxu0 0.0
    %516 = vmatprep.subr.mxu0 0.0
    %517 = vmatpush1.msra.mxu0 0.0
    %518 = vmatprep.subr.mxu0 0.0
    %519 = vmatpush1.msra.mxu0 0.0
    %520 = vmatprep.subr.mxu0 0.0
    %521 = vmatpush1.msra.mxu0 0.0
    %522 = vmatprep.subr.mxu0 0.0
    %523 = vmatpush1.msra.mxu0 0.0
    %524 = vmatprep.subr.mxu0 0.0
    %525 = vmatpush1.msra.mxu0 0.0
    %526 = vmatprep.subr.mxu0 0.0
    %527 = vmatpush1.msra.mxu0 0.0
    %528 = vmatprep.subr.mxu0 0.0
    %529 = vmatpush1.msra.mxu0 0.0
    %530 = vmatprep.subr.mxu0 0.0
    %531 = vmatpush1.msra.mxu0 0.0
    %532 = vmatprep.subr.mxu0 0.0
    %533 = vmatpush1.msra.mxu0 0.0
    %534 = vmatprep.subr.mxu0 0.0
    %535 = vmatpush1.msra.mxu0 0.0
    %536 = vmatprep.subr.mxu0 0.0
    %537 = vmatpush1.msra.mxu0 0.0
    %538 = vmatprep.mubr.f32.mxu0 0.0
    %539 = vmatmul.mubr.f32.gmra.mrb[0].mxu0 %v472
    %v540 = vpop.f32.mrb[0].mxu0
    %v541 = vadd.f32 0.0, %v540
    %v542 = vpop.f32.mrb[0].mxu0
    %v543 = vadd.f32 0.0, %v542
    %544 = vdwg.mxu0
    %v545 = vadd.f32 %v468, %v541
    %v546 = vadd.f32 %v469, %v543
    %v547 = vxor.u32 %v545, 2147483648
    %v548 = vxor.u32 %v546, 2147483648
    %v549 = vmul.f32 %v547, 1.442695
    %v550 = vpow.pop %v549
    %v551 = vmul.f32 %v548, 1.442695
    %v552 = vpow.pop %v551
    %v553 = vadd.f32 %v550, 1.0
    %v554 = vadd.f32 %v552, 1.0
    %v555 = vrcp.pop %v553
    %v556 = vmul.f32 1.0, %v555
    %v557 = vrcp.pop %v554
    %v558 = vmul.f32 1.0, %v557
    %v559 = vtanh.pop %v546
    %v560 = vmul.f32 %v556, 0.0
    %562 = vrot.lane.b32.xlu0 %v559, 64
    %v563 = vpop.permute.xlu0 %562
    %v565 = vmul.f32 %v556, %v563
    %567 = vrot.lane.b32.xlu0 %v565, 64
    %v568 = vpop.permute.xlu0 %567
    %v570 = vadd.f32 %v560, %v568
    %v571 = vtanh.pop %v570
    %573 = vrot.lane.b32.xlu0 %v571, 64
    %v574 = vpop.permute.xlu0 %573
    %v576 = vmul.f32 %v558, %v574
    %v577 = vsel %vm86, %v576, 0.0
    %579 = vrot.lane.b32.xlu0 %v570, 64
    %v580 = vpop.permute.xlu0 %579
    %v582 = vsel %vm86, %v580, 0.0
    %583 = vst.msk [vmem:[#allocation2] sm:$0xff] %vm161, %v577
    %vm584 = vcmask 523520
    %585 = vst.msk [vmem:[#allocation2 + $0x38] sm:$0xff] %vm584, %v577
    %v586 = vsel %vm466, %v424, %v454
    %v587 = vsel %vm467, %v426, %v456
    %v589 = vsel %vm470, %v577, 0
    %591 = vmatprep.subr.mxu0 %v301
    %592 = vmatpush1.msra.mxu0 %v300
    %593 = vmatprep.subr.mxu0 %v303
    %594 = vmatpush1.msra.mxu0 %v302
    %595 = vmatprep.subr.mxu0 %v305
    %596 = vmatpush1.msra.mxu0 %v304
    %597 = vmatprep.subr.mxu0 %v307
    %598 = vmatpush1.msra.mxu0 %v306
    %599 = vmatprep.subr.mxu0 %v309
    %600 = vmatpush1.msra.mxu0 %v308
    %601 = vmatprep.subr.mxu0 %v311
    %602 = vmatpush1.msra.mxu0 %v310
    %603 = vmatprep.subr.mxu0 %v313
    %604 = vmatpush1.msra.mxu0 %v312
    %605 = vmatprep.subr.mxu0 %v315
    %606 = vmatpush1.msra.mxu0 %v314
    %607 = vmatprep.subr.mxu0 0.0
    %608 = vmatpush1.msra.mxu0 0.0
    %609 = vmatprep.subr.mxu0 0.0
    %610 = vmatpush1.msra.mxu0 0.0
    %611 = vmatprep.subr.mxu0 0.0
    %612 = vmatpush1.msra.mxu0 0.0
    %613 = vmatprep.subr.mxu0 0.0
    %614 = vmatpush1.msra.mxu0 0.0
    %615 = vmatprep.subr.mxu0 0.0
    %616 = vmatpush1.msra.mxu0 0.0
    %617 = vmatprep.subr.mxu0 0.0
    %618 = vmatpush1.msra.mxu0 0.0
    %619 = vmatprep.subr.mxu0 0.0
    %620 = vmatpush1.msra.mxu0 0.0
    %621 = vmatprep.subr.mxu0 0.0
    %622 = vmatpush1.msra.mxu0 0.0
    %623 = vmatprep.subr.mxu0 0.0
    %624 = vmatpush1.msra.mxu0 0.0
    %625 = vmatprep.subr.mxu0 0.0
    %626 = vmatpush1.msra.mxu0 0.0
    %627 = vmatprep.subr.mxu0 0.0
    %628 = vmatpush1.msra.mxu0 0.0
    %629 = vmatprep.subr.mxu0 0.0
    %630 = vmatpush1.msra.mxu0 0.0
    %631 = vmatprep.subr.mxu0 0.0
    %632 = vmatpush1.msra.mxu0 0.0
    %633 = vmatprep.subr.mxu0 0.0
    %634 = vmatpush1.msra.mxu0 0.0
    %635 = vmatprep.subr.mxu0 0.0
    %636 = vmatpush1.msra.mxu0 0.0
    %637 = vmatprep.subr.mxu0 0.0
    %638 = vmatpush1.msra.mxu0 0.0
    %639 = vmatprep.subr.mxu0 0.0
    %640 = vmatpush1.msra.mxu0 0.0
    %641 = vmatprep.subr.mxu0 0.0
    %642 = vmatpush1.msra.mxu0 0.0
    %643 = vmatprep.subr.mxu0 0.0
    %644 = vmatpush1.msra.mxu0 0.0
    %645 = vmatprep.subr.mxu0 0.0
    %646 = vmatpush1.msra.mxu0 0.0
    %647 = vmatprep.subr.mxu0 0.0
    %648 = vmatpush1.msra.mxu0 0.0
    %649 = vmatprep.subr.mxu0 0.0
    %650 = vmatpush1.msra.mxu0 0.0
    %651 = vmatprep.subr.mxu0 0.0
    %652 = vmatpush1.msra.mxu0 0.0
    %653 = vmatprep.subr.mxu0 0.0
    %654 = vmatpush1.msra.mxu0 0.0
    %655 = vmatprep.mubr.f32.mxu0 0.0
    %656 = vmatmul.mubr.f32.gmra.mrb[0].mxu0 %v589
    %v657 = vpop.f32.mrb[0].mxu0
    %v658 = vadd.f32 0.0, %v657
    %v659 = vpop.f32.mrb[0].mxu0
    %v660 = vadd.f32 0.0, %v659
    %661 = vdwg.mxu0
    %v662 = vadd.f32 %v586, %v658
    %v663 = vadd.f32 %v587, %v660
    %v664 = vxor.u32 %v662, 2147483648
    %v665 = vxor.u32 %v663, 2147483648
    %v666 = vmul.f32 %v664, 1.442695
    %v667 = vpow.pop %v666
    %v668 = vmul.f32 %v665, 1.442695
    %v669 = vpow.pop %v668
    %v670 = vadd.f32 %v667, 1.0
    %v671 = vadd.f32 %v669, 1.0
    %v672 = vrcp.pop %v670
    %v673 = vmul.f32 1.0, %v672
    %v674 = vrcp.pop %v671
    %v675 = vmul.f32 1.0, %v674
    %v676 = vtanh.pop %v663
    %678 = vrot.lane.b32.xlu0 %v582, 64
    %v679 = vpop.permute.xlu0 %678
    %v681 = vmul.f32 %v673, %v679
    %683 = vrot.lane.b32.xlu0 %v676, 64
    %v684 = vpop.permute.xlu0 %683
    %v686 = vmul.f32 %v673, %v684
    %688 = vrot.lane.b32.xlu0 %v686, 64
    %v689 = vpop.permute.xlu0 %688
    %v691 = vadd.f32 %v681, %v689
    %v692 = vtanh.pop %v691
    %694 = vrot.lane.b32.xlu0 %v692, 64
    %v695 = vpop.permute.xlu0 %694
    %v697 = vmul.f32 %v675, %v695
    %v698 = vsel %vm88, %v697, %v577
    %700 = vrot.lane.b32.xlu0 %v691, 64
    %v701 = vpop.permute.xlu0 %700
    %v703 = vsel %vm88, %v701, %v582
    %v704 = vsel %vm88, %v697, 0.0
    %705 = vst.msk [vmem:[#allocation2 + $0x8] sm:$0xff] %vm161, %v704
    %706 = vst.msk [vmem:[#allocation2 + $0x30] sm:$0xff] %vm584, %v704
    %v707 = vsel %vm466, %v430, %v448
    %v708 = vsel %vm467, %v432, %v450
    %v710 = vsel %vm470, %v698, 0
    %712 = vmatprep.subr.mxu0 %v301
    %713 = vmatpush1.msra.mxu0 %v300
    %714 = vmatprep.subr.mxu0 %v303
    %715 = vmatpush1.msra.mxu0 %v302
    %716 = vmatprep.subr.mxu0 %v305
    %717 = vmatpush1.msra.mxu0 %v304
    %718 = vmatprep.subr.mxu0 %v307
    %719 = vmatpush1.msra.mxu0 %v306
    %720 = vmatprep.subr.mxu0 %v309
    %721 = vmatpush1.msra.mxu0 %v308
    %722 = vmatprep.subr.mxu0 %v311
    %723 = vmatpush1.msra.mxu0 %v310
    %724 = vmatprep.subr.mxu0 %v313
    %725 = vmatpush1.msra.mxu0 %v312
    %726 = vmatprep.subr.mxu0 %v315
    %727 = vmatpush1.msra.mxu0 %v314
    %728 = vmatprep.subr.mxu0 0.0
    %729 = vmatpush1.msra.mxu0 0.0
    %730 = vmatprep.subr.mxu0 0.0
    %731 = vmatpush1.msra.mxu0 0.0
    %732 = vmatprep.subr.mxu0 0.0
    %733 = vmatpush1.msra.mxu0 0.0
    %734 = vmatprep.subr.mxu0 0.0
    %735 = vmatpush1.msra.mxu0 0.0
    %736 = vmatprep.subr.mxu0 0.0
    %737 = vmatpush1.msra.mxu0 0.0
    %738 = vmatprep.subr.mxu0 0.0
    %739 = vmatpush1.msra.mxu0 0.0
    %740 = vmatprep.subr.mxu0 0.0
    %741 = vmatpush1.msra.mxu0 0.0
    %742 = vmatprep.subr.mxu0 0.0
    %743 = vmatpush1.msra.mxu0 0.0
    %744 = vmatprep.subr.mxu0 0.0
    %745 = vmatpush1.msra.mxu0 0.0
    %746 = vmatprep.subr.mxu0 0.0
    %747 = vmatpush1.msra.mxu0 0.0
    %748 = vmatprep.subr.mxu0 0.0
    %749 = vmatpush1.msra.mxu0 0.0
    %750 = vmatprep.subr.mxu0 0.0
    %751 = vmatpush1.msra.mxu0 0.0
    %752 = vmatprep.subr.mxu0 0.0
    %753 = vmatpush1.msra.mxu0 0.0
    %754 = vmatprep.subr.mxu0 0.0
    %755 = vmatpush1.msra.mxu0 0.0
    %756 = vmatprep.subr.mxu0 0.0
    %757 = vmatpush1.msra.mxu0 0.0
    %758 = vmatprep.subr.mxu0 0.0
    %759 = vmatpush1.msra.mxu0 0.0
    %760 = vmatprep.subr.mxu0 0.0
    %761 = vmatpush1.msra.mxu0 0.0
    %762 = vmatprep.subr.mxu0 0.0
    %763 = vmatpush1.msra.mxu0 0.0
    %764 = vmatprep.subr.mxu0 0.0
    %765 = vmatpush1.msra.mxu0 0.0
    %766 = vmatprep.subr.mxu0 0.0
    %767 = vmatpush1.msra.mxu0 0.0
    %768 = vmatprep.subr.mxu0 0.0
    %769 = vmatpush1.msra.mxu0 0.0
    %770 = vmatprep.subr.mxu0 0.0
    %771 = vmatpush1.msra.mxu0 0.0
    %772 = vmatprep.subr.mxu0 0.0
    %773 = vmatpush1.msra.mxu0 0.0
    %774 = vmatprep.subr.mxu0 0.0
    %775 = vmatpush1.msra.mxu0 0.0
    %776 = vmatprep.mubr.f32.mxu0 0.0
    %777 = vmatmul.mubr.f32.gmra.mrb[0].mxu0 %v710
    %v778 = vpop.f32.mrb[0].mxu0
    %v779 = vadd.f32 0.0, %v778
    %v780 = vpop.f32.mrb[0].mxu0
    %v781 = vadd.f32 0.0, %v780
    %782 = vdwg.mxu0
    %v783 = vadd.f32 %v707, %v779
    %v784 = vadd.f32 %v708, %v781
    %v785 = vxor.u32 %v783, 2147483648
    %v786 = vxor.u32 %v784, 2147483648
    %v787 = vmul.f32 %v785, 1.442695
    %v788 = vpow.pop %v787
    %v789 = vmul.f32 %v786, 1.442695
    %v790 = vpow.pop %v789
    %v791 = vadd.f32 %v788, 1.0
    %v792 = vadd.f32 %v790, 1.0
    %v793 = vrcp.pop %v791
    %v794 = vmul.f32 1.0, %v793
    %v795 = vrcp.pop %v792
    %v796 = vmul.f32 1.0, %v795
    %v797 = vtanh.pop %v784
    %799 = vrot.lane.b32.xlu0 %v703, 64
    %v800 = vpop.permute.xlu0 %799
    %v802 = vmul.f32 %v794, %v800
    %804 = vrot.lane.b32.xlu0 %v797, 64
    %v805 = vpop.permute.xlu0 %804
    %v807 = vmul.f32 %v794, %v805
    %809 = vrot.lane.b32.xlu0 %v807, 64
    %v810 = vpop.permute.xlu0 %809
    %v812 = vadd.f32 %v802, %v810
    %v813 = vtanh.pop %v812
    %815 = vrot.lane.b32.xlu0 %v813, 64
    %v816 = vpop.permute.xlu0 %815
    %v818 = vmul.f32 %v796, %v816
    %v819 = vsel %vm90, %v818, %v698
    %821 = vrot.lane.b32.xlu0 %v812, 64
    %v822 = vpop.permute.xlu0 %821
    %v824 = vsel %vm90, %v822, %v703
    %v825 = vsel %vm90, %v818, 0.0
    %826 = vst.msk [vmem:[#allocation2 + $0x10] sm:$0xff] %vm161, %v825
    %827 = vst.msk [vmem:[#allocation2 + $0x28] sm:$0xff] %vm584, %v825
    %v828 = vsel %vm466, %v436, %v442
    %v829 = vsel %vm467, %v438, %v444
    %v831 = vsel %vm470, %v819, 0
    %833 = vmatprep.subr.mxu0 %v301
    %834 = vmatpush1.msra.mxu0 %v300
    %835 = vmatprep.subr.mxu0 %v303
    %836 = vmatpush1.msra.mxu0 %v302
    %837 = vmatprep.subr.mxu0 %v305
    %838 = vmatpush1.msra.mxu0 %v304
    %839 = vmatprep.subr.mxu0 %v307
    %840 = vmatpush1.msra.mxu0 %v306
    %841 = vmatprep.subr.mxu0 %v309
    %842 = vmatpush1.msra.mxu0 %v308
    %843 = vmatprep.subr.mxu0 %v311
    %844 = vmatpush1.msra.mxu0 %v310
    %845 = vmatprep.subr.mxu0 %v313
    %846 = vmatpush1.msra.mxu0 %v312
    %847 = vmatprep.subr.mxu0 %v315
    %848 = vmatpush1.msra.mxu0 %v314
    %849 = vmatprep.subr.mxu0 0.0
    %850 = vmatpush1.msra.mxu0 0.0
    %851 = vmatprep.subr.mxu0 0.0
    %852 = vmatpush1.msra.mxu0 0.0
    %853 = vmatprep.subr.mxu0 0.0
    %854 = vmatpush1.msra.mxu0 0.0
    %855 = vmatprep.subr.mxu0 0.0
    %856 = vmatpush1.msra.mxu0 0.0
    %857 = vmatprep.subr.mxu0 0.0
    %858 = vmatpush1.msra.mxu0 0.0
    %859 = vmatprep.subr.mxu0 0.0
    %860 = vmatpush1.msra.mxu0 0.0
    %861 = vmatprep.subr.mxu0 0.0
    %862 = vmatpush1.msra.mxu0 0.0
    %863 = vmatprep.subr.mxu0 0.0
    %864 = vmatpush1.msra.mxu0 0.0
    %865 = vmatprep.subr.mxu0 0.0
    %866 = vmatpush1.msra.mxu0 0.0
    %867 = vmatprep.subr.mxu0 0.0
    %868 = vmatpush1.msra.mxu0 0.0
    %869 = vmatprep.subr.mxu0 0.0
    %870 = vmatpush1.msra.mxu0 0.0
    %871 = vmatprep.subr.mxu0 0.0
    %872 = vmatpush1.msra.mxu0 0.0
    %873 = vmatprep.subr.mxu0 0.0
    %874 = vmatpush1.msra.mxu0 0.0
    %875 = vmatprep.subr.mxu0 0.0
    %876 = vmatpush1.msra.mxu0 0.0
    %877 = vmatprep.subr.mxu0 0.0
    %878 = vmatpush1.msra.mxu0 0.0
    %879 = vmatprep.subr.mxu0 0.0
    %880 = vmatpush1.msra.mxu0 0.0
    %881 = vmatprep.subr.mxu0 0.0
    %882 = vmatpush1.msra.mxu0 0.0
    %883 = vmatprep.subr.mxu0 0.0
    %884 = vmatpush1.msra.mxu0 0.0
    %885 = vmatprep.subr.mxu0 0.0
    %886 = vmatpush1.msra.mxu0 0.0
    %887 = vmatprep.subr.mxu0 0.0
    %888 = vmatpush1.msra.mxu0 0.0
    %889 = vmatprep.subr.mxu0 0.0
    %890 = vmatpush1.msra.mxu0 0.0
    %891 = vmatprep.subr.mxu0 0.0
    %892 = vmatpush1.msra.mxu0 0.0
    %893 = vmatprep.subr.mxu0 0.0
    %894 = vmatpush1.msra.mxu0 0.0
    %895 = vmatprep.subr.mxu0 0.0
    %896 = vmatpush1.msra.mxu0 0.0
    %897 = vmatprep.mubr.f32.mxu0 0.0
    %898 = vmatmul.mubr.f32.gmra.mrb[0].mxu0 %v831
    %v899 = vpop.f32.mrb[0].mxu0
    %v900 = vadd.f32 0.0, %v899
    %v901 = vpop.f32.mrb[0].mxu0
    %v902 = vadd.f32 0.0, %v901
    %903 = vdwg.mxu0
    %v904 = vadd.f32 %v828, %v900
    %v905 = vadd.f32 %v829, %v902
    %v906 = vxor.u32 %v904, 2147483648
    %v907 = vxor.u32 %v905, 2147483648
    %v908 = vmul.f32 %v906, 1.442695
    %v909 = vpow.pop %v908
    %v910 = vmul.f32 %v907, 1.442695
    %v911 = vpow.pop %v910
    %v912 = vadd.f32 %v909, 1.0
    %v913 = vadd.f32 %v911, 1.0
    %v914 = vrcp.pop %v912
    %v915 = vmul.f32 1.0, %v914
    %v916 = vrcp.pop %v913
    %v917 = vmul.f32 1.0, %v916
    %v918 = vtanh.pop %v905
    %920 = vrot.lane.b32.xlu0 %v824, 64
    %v921 = vpop.permute.xlu0 %920
    %v923 = vmul.f32 %v915, %v921
    %925 = vrot.lane.b32.xlu0 %v918, 64
    %v926 = vpop.permute.xlu0 %925
    %v928 = vmul.f32 %v915, %v926
    %930 = vrot.lane.b32.xlu0 %v928, 64
    %v931 = vpop.permute.xlu0 %930
    %v933 = vadd.f32 %v923, %v931
    %v934 = vtanh.pop %v933
    %936 = vrot.lane.b32.xlu0 %v934, 64
    %v937 = vpop.permute.xlu0 %936
    %v939 = vmul.f32 %v917, %v937
    %v940 = vsel %vm92, %v939, %v819
    %942 = vrot.lane.b32.xlu0 %v933, 64
    %v943 = vpop.permute.xlu0 %942
    %v945 = vsel %vm92, %v943, %v824
    %v946 = vsel %vm92, %v939, 0.0
    %947 = vst.msk [vmem:[#allocation2 + $0x18] sm:$0xff] %vm161, %v946
    %948 = vst.msk [vmem:[#allocation2 + $0x20] sm:$0xff] %vm584, %v946
    %v949 = vsel %vm466, %v442, %v436
    %v950 = vsel %vm467, %v444, %v438
    %v952 = vsel %vm470, %v940, 0
    %954 = vmatprep.subr.mxu0 %v301
    %955 = vmatpush1.msra.mxu0 %v300
    %956 = vmatprep.subr.mxu0 %v303
    %957 = vmatpush1.msra.mxu0 %v302
    %958 = vmatprep.subr.mxu0 %v305
    %959 = vmatpush1.msra.mxu0 %v304
    %960 = vmatprep.subr.mxu0 %v307
    %961 = vmatpush1.msra.mxu0 %v306
    %962 = vmatprep.subr.mxu0 %v309
    %963 = vmatpush1.msra.mxu0 %v308
    %964 = vmatprep.subr.mxu0 %v311
    %965 = vmatpush1.msra.mxu0 %v310
    %966 = vmatprep.subr.mxu0 %v313
    %967 = vmatpush1.msra.mxu0 %v312
    %968 = vmatprep.subr.mxu0 %v315
    %969 = vmatpush1.msra.mxu0 %v314
    %970 = vmatprep.subr.mxu0 0.0
    %971 = vmatpush1.msra.mxu0 0.0
    %972 = vmatprep.subr.mxu0 0.0
    %973 = vmatpush1.msra.mxu0 0.0
    %974 = vmatprep.subr.mxu0 0.0
    %975 = vmatpush1.msra.mxu0 0.0
    %976 = vmatprep.subr.mxu0 0.0
    %977 = vmatpush1.msra.mxu0 0.0
    %978 = vmatprep.subr.mxu0 0.0
    %979 = vmatpush1.msra.mxu0 0.0
    %980 = vmatprep.subr.mxu0 0.0
    %981 = vmatpush1.msra.mxu0 0.0
    %982 = vmatprep.subr.mxu0 0.0
    %983 = vmatpush1.msra.mxu0 0.0
    %984 = vmatprep.subr.mxu0 0.0
    %985 = vmatpush1.msra.mxu0 0.0
    %986 = vmatprep.subr.mxu0 0.0
    %987 = vmatpush1.msra.mxu0 0.0
    %988 = vmatprep.subr.mxu0 0.0
    %989 = vmatpush1.msra.mxu0 0.0
    %990 = vmatprep.subr.mxu0 0.0
    %991 = vmatpush1.msra.mxu0 0.0
    %992 = vmatprep.subr.mxu0 0.0
    %993 = vmatpush1.msra.mxu0 0.0
    %994 = vmatprep.subr.mxu0 0.0
    %995 = vmatpush1.msra.mxu0 0.0
    %996 = vmatprep.subr.mxu0 0.0
    %997 = vmatpush1.msra.mxu0 0.0
    %998 = vmatprep.subr.mxu0 0.0
    %999 = vmatpush1.msra.mxu0 0.0
    %1000 = vmatprep.subr.mxu0 0.0
    %1001 = vmatpush1.msra.mxu0 0.0
    %1002 = vmatprep.subr.mxu0 0.0
    %1003 = vmatpush1.msra.mxu0 0.0
    %1004 = vmatprep.subr.mxu0 0.0
    %1005 = vmatpush1.msra.mxu0 0.0
    %1006 = vmatprep.subr.mxu0 0.0
    %1007 = vmatpush1.msra.mxu0 0.0
    %1008 = vmatprep.subr.mxu0 0.0
    %1009 = vmatpush1.msra.mxu0 0.0
    %1010 = vmatprep.subr.mxu0 0.0
    %1011 = vmatpush1.msra.mxu0 0.0
    %1012 = vmatprep.subr.mxu0 0.0
    %1013 = vmatpush1.msra.mxu0 0.0
    %1014 = vmatprep.subr.mxu0 0.0
    %1015 = vmatpush1.msra.mxu0 0.0
    %1016 = vmatprep.subr.mxu0 0.0
    %1017 = vmatpush1.msra.mxu0 0.0
    %1018 = vmatprep.mubr.f32.mxu0 0.0
    %1019 = vmatmul.mubr.f32.gmra.mrb[0].mxu0 %v952
    %v1020 = vpop.f32.mrb[0].mxu0
    %v1021 = vadd.f32 0.0, %v1020
    %v1022 = vpop.f32.mrb[0].mxu0
    %v1023 = vadd.f32 0.0, %v1022
    %1024 = vdwg.mxu0
    %v1025 = vadd.f32 %v949, %v1021
    %v1026 = vadd.f32 %v950, %v1023
    %v1027 = vxor.u32 %v1025, 2147483648
    %v1028 = vxor.u32 %v1026, 2147483648
    %v1029 = vmul.f32 %v1027, 1.442695
    %v1030 = vpow.pop %v1029
    %v1031 = vmul.f32 %v1028, 1.442695
    %v1032 = vpow.pop %v1031
    %v1033 = vadd.f32 %v1030, 1.0
    %v1034 = vadd.f32 %v1032, 1.0
    %v1035 = vrcp.pop %v1033
    %v1036 = vmul.f32 1.0, %v1035
    %v1037 = vrcp.pop %v1034
    %v1038 = vmul.f32 1.0, %v1037
    %v1039 = vtanh.pop %v1026
    %1041 = vrot.lane.b32.xlu0 %v945, 64
    %v1042 = vpop.permute.xlu0 %1041
    %v1044 = vmul.f32 %v1036, %v1042
    %1046 = vrot.lane.b32.xlu0 %v1039, 64
    %v1047 = vpop.permute.xlu0 %1046
    %v1049 = vmul.f32 %v1036, %v1047
    %1051 = vrot.lane.b32.xlu0 %v1049, 64
    %v1052 = vpop.permute.xlu0 %1051
    %v1054 = vadd.f32 %v1044, %v1052
    %v1055 = vtanh.pop %v1054
    %1057 = vrot.lane.b32.xlu0 %v1055, 64
    %v1058 = vpop.permute.xlu0 %1057
    %v1060 = vmul.f32 %v1038, %v1058
    %v1061 = vsel %vm94, %v1060, %v940
    %1063 = vrot.lane.b32.xlu0 %v1054, 64
    %v1064 = vpop.permute.xlu0 %1063
    %v1066 = vsel %vm94, %v1064, %v945
    %v1067 = vsel %vm94, %v1060, 0.0
    %1068 = vst.msk [vmem:[#allocation2 + $0x20] sm:$0xff] %vm161, %v1067
    %1069 = vst.msk [vmem:[#allocation2 + $0x18] sm:$0xff] %vm584, %v1067
    %v1070 = vsel %vm466, %v448, %v430
    %v1071 = vsel %vm467, %v450, %v432
    %v1073 = vsel %vm470, %v1061, 0
    %1075 = vmatprep.subr.mxu0 %v301
    %1076 = vmatpush1.msra.mxu0 %v300
    %1077 = vmatprep.subr.mxu0 %v303
    %1078 = vmatpush1.msra.mxu0 %v302
    %1079 = vmatprep.subr.mxu0 %v305
    %1080 = vmatpush1.msra.mxu0 %v304
    %1081 = vmatprep.subr.mxu0 %v307
    %1082 = vmatpush1.msra.mxu0 %v306
    %1083 = vmatprep.subr.mxu0 %v309
    %1084 = vmatpush1.msra.mxu0 %v308
    %1085 = vmatprep.subr.mxu0 %v311
    %1086 = vmatpush1.msra.mxu0 %v310
    %1087 = vmatprep.subr.mxu0 %v313
    %1088 = vmatpush1.msra.mxu0 %v312
    %1089 = vmatprep.subr.mxu0 %v315
    %1090 = vmatpush1.msra.mxu0 %v314
    %1091 = vmatprep.subr.mxu0 0.0
    %1092 = vmatpush1.msra.mxu0 0.0
    %1093 = vmatprep.subr.mxu0 0.0
    %1094 = vmatpush1.msra.mxu0 0.0
    %1095 = vmatprep.subr.mxu0 0.0
    %1096 = vmatpush1.msra.mxu0 0.0
    %1097 = vmatprep.subr.mxu0 0.0
    %1098 = vmatpush1.msra.mxu0 0.0
    %1099 = vmatprep.subr.mxu0 0.0
    %1100 = vmatpush1.msra.mxu0 0.0
    %1101 = vmatprep.subr.mxu0 0.0
    %1102 = vmatpush1.msra.mxu0 0.0
    %1103 = vmatprep.subr.mxu0 0.0
    %1104 = vmatpush1.msra.mxu0 0.0
    %1105 = vmatprep.subr.mxu0 0.0
    %1106 = vmatpush1.msra.mxu0 0.0
    %1107 = vmatprep.subr.mxu0 0.0
    %1108 = vmatpush1.msra.mxu0 0.0
    %1109 = vmatprep.subr.mxu0 0.0
    %1110 = vmatpush1.msra.mxu0 0.0
    %1111 = vmatprep.subr.mxu0 0.0
    %1112 = vmatpush1.msra.mxu0 0.0
    %1113 = vmatprep.subr.mxu0 0.0
    %1114 = vmatpush1.msra.mxu0 0.0
    %1115 = vmatprep.subr.mxu0 0.0
    %1116 = vmatpush1.msra.mxu0 0.0
    %1117 = vmatprep.subr.mxu0 0.0
    %1118 = vmatpush1.msra.mxu0 0.0
    %1119 = vmatprep.subr.mxu0 0.0
    %1120 = vmatpush1.msra.mxu0 0.0
    %1121 = vmatprep.subr.mxu0 0.0
    %1122 = vmatpush1.msra.mxu0 0.0
    %1123 = vmatprep.subr.mxu0 0.0
    %1124 = vmatpush1.msra.mxu0 0.0
    %1125 = vmatprep.subr.mxu0 0.0
    %1126 = vmatpush1.msra.mxu0 0.0
    %1127 = vmatprep.subr.mxu0 0.0
    %1128 = vmatpush1.msra.mxu0 0.0
    %1129 = vmatprep.subr.mxu0 0.0
    %1130 = vmatpush1.msra.mxu0 0.0
    %1131 = vmatprep.subr.mxu0 0.0
    %1132 = vmatpush1.msra.mxu0 0.0
    %1133 = vmatprep.subr.mxu0 0.0
    %1134 = vmatpush1.msra.mxu0 0.0
    %1135 = vmatprep.subr.mxu0 0.0
    %1136 = vmatpush1.msra.mxu0 0.0
    %1137 = vmatprep.subr.mxu0 0.0
    %1138 = vmatpush1.msra.mxu0 0.0
    %1139 = vmatprep.mubr.f32.mxu0 0.0
    %1140 = vmatmul.mubr.f32.gmra.mrb[0].mxu0 %v1073
    %v1141 = vpop.f32.mrb[0].mxu0
    %v1142 = vadd.f32 0.0, %v1141
    %v1143 = vpop.f32.mrb[0].mxu0
    %v1144 = vadd.f32 0.0, %v1143
    %1145 = vdwg.mxu0
    %v1146 = vadd.f32 %v1070, %v1142
    %v1147 = vadd.f32 %v1071, %v1144
    %v1148 = vxor.u32 %v1146, 2147483648
    %v1149 = vxor.u32 %v1147, 2147483648
    %v1150 = vmul.f32 %v1148, 1.442695
    %v1151 = vpow.pop %v1150
    %v1152 = vmul.f32 %v1149, 1.442695
    %v1153 = vpow.pop %v1152
    %v1154 = vadd.f32 %v1151, 1.0
    %v1155 = vadd.f32 %v1153, 1.0
    %v1156 = vrcp.pop %v1154
    %v1157 = vmul.f32 1.0, %v1156
    %v1158 = vrcp.pop %v1155
    %v1159 = vmul.f32 1.0, %v1158
    %v1160 = vtanh.pop %v1147
    %1162 = vrot.lane.b32.xlu0 %v1066, 64
    %v1163 = vpop.permute.xlu0 %1162
    %v1165 = vmul.f32 %v1157, %v1163
    %1167 = vrot.lane.b32.xlu0 %v1160, 64
    %v1168 = vpop.permute.xlu0 %1167
    %v1170 = vmul.f32 %v1157, %v1168
    %1172 = vrot.lane.b32.xlu0 %v1170, 64
    %v1173 = vpop.permute.xlu0 %1172
    %v1175 = vadd.f32 %v1165, %v1173
    %v1176 = vtanh.pop %v1175
    %1178 = vrot.lane.b32.xlu0 %v1176, 64
    %v1179 = vpop.permute.xlu0 %1178
    %v1181 = vmul.f32 %v1159, %v1179
    %v1182 = vsel %vm96, %v1181, %v1061
    %1184 = vrot.lane.b32.xlu0 %v1175, 64
    %v1185 = vpop.permute.xlu0 %1184
    %v1187 = vsel %vm96, %v1185, %v1066
    %v1188 = vsel %vm96, %v1181, 0.0
    %1189 = vst.msk [vmem:[#allocation2 + $0x28] sm:$0xff] %vm161, %v1188
    %1190 = vst.msk [vmem:[#allocation2 + $0x10] sm:$0xff] %vm584, %v1188
    %v1191 = vsel %vm466, %v454, %v424
    %v1192 = vsel %vm467, %v456, %v426
    %v1194 = vsel %vm470, %v1182, 0
    %1196 = vmatprep.subr.mxu0 %v301
    %1197 = vmatpush1.msra.mxu0 %v300
    %1198 = vmatprep.subr.mxu0 %v303
    %1199 = vmatpush1.msra.mxu0 %v302
    %1200 = vmatprep.subr.mxu0 %v305
    %1201 = vmatpush1.msra.mxu0 %v304
    %1202 = vmatprep.subr.mxu0 %v307
    %1203 = vmatpush1.msra.mxu0 %v306
    %1204 = vmatprep.subr.mxu0 %v309
    %1205 = vmatpush1.msra.mxu0 %v308
    %1206 = vmatprep.subr.mxu0 %v311
    %1207 = vmatpush1.msra.mxu0 %v310
    %1208 = vmatprep.subr.mxu0 %v313
    %1209 = vmatpush1.msra.mxu0 %v312
    %1210 = vmatprep.subr.mxu0 %v315
    %1211 = vmatpush1.msra.mxu0 %v314
    %1212 = vmatprep.subr.mxu0 0.0
    %1213 = vmatpush1.msra.mxu0 0.0
    %1214 = vmatprep.subr.mxu0 0.0
    %1215 = vmatpush1.msra.mxu0 0.0
    %1216 = vmatprep.subr.mxu0 0.0
    %1217 = vmatpush1.msra.mxu0 0.0
    %1218 = vmatprep.subr.mxu0 0.0
    %1219 = vmatpush1.msra.mxu0 0.0
    %1220 = vmatprep.subr.mxu0 0.0
    %1221 = vmatpush1.msra.mxu0 0.0
    %1222 = vmatprep.subr.mxu0 0.0
    %1223 = vmatpush1.msra.mxu0 0.0
    %1224 = vmatprep.subr.mxu0 0.0
    %1225 = vmatpush1.msra.mxu0 0.0
    %1226 = vmatprep.subr.mxu0 0.0
    %1227 = vmatpush1.msra.mxu0 0.0
    %1228 = vmatprep.subr.mxu0 0.0
    %1229 = vmatpush1.msra.mxu0 0.0
    %1230 = vmatprep.subr.mxu0 0.0
    %1231 = vmatpush1.msra.mxu0 0.0
    %1232 = vmatprep.subr.mxu0 0.0
    %1233 = vmatpush1.msra.mxu0 0.0
    %1234 = vmatprep.subr.mxu0 0.0
    %1235 = vmatpush1.msra.mxu0 0.0
    %1236 = vmatprep.subr.mxu0 0.0
    %1237 = vmatpush1.msra.mxu0 0.0
    %1238 = vmatprep.subr.mxu0 0.0
    %1239 = vmatpush1.msra.mxu0 0.0
    %1240 = vmatprep.subr.mxu0 0.0
    %1241 = vmatpush1.msra.mxu0 0.0
    %1242 = vmatprep.subr.mxu0 0.0
    %1243 = vmatpush1.msra.mxu0 0.0
    %1244 = vmatprep.subr.mxu0 0.0
    %1245 = vmatpush1.msra.mxu0 0.0
    %1246 = vmatprep.subr.mxu0 0.0
    %1247 = vmatpush1.msra.mxu0 0.0
    %1248 = vmatprep.subr.mxu0 0.0
    %1249 = vmatpush1.msra.mxu0 0.0
    %1250 = vmatprep.subr.mxu0 0.0
    %1251 = vmatpush1.msra.mxu0 0.0
    %1252 = vmatprep.subr.mxu0 0.0
    %1253 = vmatpush1.msra.mxu0 0.0
    %1254 = vmatprep.subr.mxu0 0.0
    %1255 = vmatpush1.msra.mxu0 0.0
    %1256 = vmatprep.subr.mxu0 0.0
    %1257 = vmatpush1.msra.mxu0 0.0
    %1258 = vmatprep.subr.mxu0 0.0
    %1259 = vmatpush1.msra.mxu0 0.0
    %1260 = vmatprep.mubr.f32.mxu0 0.0
    %1261 = vmatmul.mubr.f32.gmra.mrb[0].mxu0 %v1194
    %v1262 = vpop.f32.mrb[0].mxu0
    %v1263 = vadd.f32 0.0, %v1262
    %v1264 = vpop.f32.mrb[0].mxu0
    %v1265 = vadd.f32 0.0, %v1264
    %1266 = vdwg.mxu0
    %v1267 = vadd.f32 %v1191, %v1263
    %v1268 = vadd.f32 %v1192, %v1265
    %v1269 = vxor.u32 %v1267, 2147483648
    %v1270 = vxor.u32 %v1268, 2147483648
    %v1271 = vmul.f32 %v1269, 1.442695
    %v1272 = vpow.pop %v1271
    %v1273 = vmul.f32 %v1270, 1.442695
    %v1274 = vpow.pop %v1273
    %v1275 = vadd.f32 %v1272, 1.0
    %v1276 = vadd.f32 %v1274, 1.0
    %v1277 = vrcp.pop %v1275
    %v1278 = vmul.f32 1.0, %v1277
    %v1279 = vrcp.pop %v1276
    %v1280 = vmul.f32 1.0, %v1279
    %v1281 = vtanh.pop %v1268
    %1283 = vrot.lane.b32.xlu0 %v1187, 64
    %v1284 = vpop.permute.xlu0 %1283
    %v1286 = vmul.f32 %v1278, %v1284
    %1288 = vrot.lane.b32.xlu0 %v1281, 64
    %v1289 = vpop.permute.xlu0 %1288
    %v1291 = vmul.f32 %v1278, %v1289
    %1293 = vrot.lane.b32.xlu0 %v1291, 64
    %v1294 = vpop.permute.xlu0 %1293
    %v1296 = vadd.f32 %v1286, %v1294
    %v1297 = vtanh.pop %v1296
    %1299 = vrot.lane.b32.xlu0 %v1297, 64
    %v1300 = vpop.permute.xlu0 %1299
    %v1302 = vmul.f32 %v1280, %v1300
    %v1303 = vsel %vm98, %v1302, %v1182
    %1305 = vrot.lane.b32.xlu0 %v1296, 64
    %v1306 = vpop.permute.xlu0 %1305
    %v1308 = vsel %vm98, %v1306, %v1187
    %v1309 = vsel %vm98, %v1302, 0.0
    %1310 = vst.msk [vmem:[#allocation2 + $0x30] sm:$0xff] %vm161, %v1309
    %1311 = vst.msk [vmem:[#allocation2 + $0x8] sm:$0xff] %vm584, %v1309
    %v1312 = vsel %vm466, %v460, %v418
    %v1313 = vsel %vm467, %v462, %v420
    %v1315 = vsel %vm470, %v1303, 0
    %1317 = vmatprep.subr.mxu0 %v301
    %1318 = vmatpush1.msra.mxu0 %v300
    %1319 = vmatprep.subr.mxu0 %v303
    %1320 = vmatpush1.msra.mxu0 %v302
    %1321 = vmatprep.subr.mxu0 %v305
    %1322 = vmatpush1.msra.mxu0 %v304
    %1323 = vmatprep.subr.mxu0 %v307
    %1324 = vmatpush1.msra.mxu0 %v306
    %1325 = vmatprep.subr.mxu0 %v309
    %1326 = vmatpush1.msra.mxu0 %v308
    %1327 = vmatprep.subr.mxu0 %v311
    %1328 = vmatpush1.msra.mxu0 %v310
    %1329 = vmatprep.subr.mxu0 %v313
    %1330 = vmatpush1.msra.mxu0 %v312
    %1331 = vmatprep.subr.mxu0 %v315
    %1332 = vmatpush1.msra.mxu0 %v314
    %1333 = vmatprep.subr.mxu0 0.0
    %1334 = vmatpush1.msra.mxu0 0.0
    %1335 = vmatprep.subr.mxu0 0.0
    %1336 = vmatpush1.msra.mxu0 0.0
    %1337 = vmatprep.subr.mxu0 0.0
    %1338 = vmatpush1.msra.mxu0 0.0
    %1339 = vmatprep.subr.mxu0 0.0
    %1340 = vmatpush1.msra.mxu0 0.0
    %1341 = vmatprep.subr.mxu0 0.0
    %1342 = vmatpush1.msra.mxu0 0.0
    %1343 = vmatprep.subr.mxu0 0.0
    %1344 = vmatpush1.msra.mxu0 0.0
    %1345 = vmatprep.subr.mxu0 0.0
    %1346 = vmatpush1.msra.mxu0 0.0
    %1347 = vmatprep.subr.mxu0 0.0
    %1348 = vmatpush1.msra.mxu0 0.0
    %1349 = vmatprep.subr.mxu0 0.0
    %1350 = vmatpush1.msra.mxu0 0.0
    %1351 = vmatprep.subr.mxu0 0.0
    %1352 = vmatpush1.msra.mxu0 0.0
    %1353 = vmatprep.subr.mxu0 0.0
    %1354 = vmatpush1.msra.mxu0 0.0
    %1355 = vmatprep.subr.mxu0 0.0
    %1356 = vmatpush1.msra.mxu0 0.0
    %1357 = vmatprep.subr.mxu0 0.0
    %1358 = vmatpush1.msra.mxu0 0.0
    %1359 = vmatprep.subr.mxu0 0.0
    %1360 = vmatpush1.msra.mxu0 0.0
    %1361 = vmatprep.subr.mxu0 0.0
    %1362 = vmatpush1.msra.mxu0 0.0
    %1363 = vmatprep.subr.mxu0 0.0
    %1364 = vmatpush1.msra.mxu0 0.0
    %1365 = vmatprep.subr.mxu0 0.0
    %1366 = vmatpush1.msra.mxu0 0.0
    %1367 = vmatprep.subr.mxu0 0.0
    %1368 = vmatpush1.msra.mxu0 0.0
    %1369 = vmatprep.subr.mxu0 0.0
    %1370 = vmatpush1.msra.mxu0 0.0
    %1371 = vmatprep.subr.mxu0 0.0
    %1372 = vmatpush1.msra.mxu0 0.0
    %1373 = vmatprep.subr.mxu0 0.0
    %1374 = vmatpush1.msra.mxu0 0.0
    %1375 = vmatprep.subr.mxu0 0.0
    %1376 = vmatpush1.msra.mxu0 0.0
    %1377 = vmatprep.subr.mxu0 0.0
    %1378 = vmatpush1.msra.mxu0 0.0
    %1379 = vmatprep.subr.mxu0 0.0
    %1380 = vmatpush1.msra.mxu0 0.0
    %1381 = vmatprep.mubr.f32.mxu0 0.0
    %1382 = vmatmul.mubr.f32.gmra.mrb[0].mxu0 %v1315
    %v1383 = vpop.f32.mrb[0].mxu0
    %v1384 = vadd.f32 0.0, %v1383
    %v1385 = vpop.f32.mrb[0].mxu0
    %v1386 = vadd.f32 0.0, %v1385
    %1387 = vdwg.mxu0
    %v1388 = vadd.f32 %v1312, %v1384
    %v1389 = vadd.f32 %v1313, %v1386
    %v1390 = vxor.u32 %v1388, 2147483648
    %v1391 = vxor.u32 %v1389, 2147483648
    %v1392 = vmul.f32 %v1390, 1.442695
    %v1393 = vpow.pop %v1392
    %v1394 = vmul.f32 %v1391, 1.442695
    %v1395 = vpow.pop %v1394
    %v1396 = vadd.f32 %v1393, 1.0
    %v1397 = vadd.f32 %v1395, 1.0
    %v1398 = vrcp.pop %v1396
    %v1399 = vmul.f32 1.0, %v1398
    %v1400 = vrcp.pop %v1397
    %v1401 = vmul.f32 1.0, %v1400
    %v1402 = vtanh.pop %v1389
    %1404 = vrot.lane.b32.xlu0 %v1308, 64
    %v1405 = vpop.permute.xlu0 %1404
    %v1407 = vmul.f32 %v1399, %v1405
    %1409 = vrot.lane.b32.xlu0 %v1402, 64
    %v1410 = vpop.permute.xlu0 %1409
    %v1412 = vmul.f32 %v1399, %v1410
    %1414 = vrot.lane.b32.xlu0 %v1412, 64
    %v1415 = vpop.permute.xlu0 %1414
    %v1417 = vadd.f32 %v1407, %v1415
    %v1418 = vtanh.pop %v1417
    %1420 = vrot.lane.b32.xlu0 %v1418, 64
    %v1421 = vpop.permute.xlu0 %1420
    %v1423 = vmul.f32 %v1401, %v1421
    %v1424 = vsel %vm100, %v1423, 0.0
    %1425 = vst.msk [vmem:[#allocation2 + $0x38] sm:$0xff] %vm161, %v1424
    %1426 = vst.msk [vmem:[#allocation2] sm:$0xff] %vm584, %v1424
    %v1427 = vld [vmem:[#allocation5] ss:$8 sm:$0x3]
    %v1428 = vld [vmem:[#allocation5 + $0x10] sm:$0xff]
    %v1429 = vld [vmem:[#allocation5 + $0x18] sm:$0xff]
    %v1430 = vld [vmem:[#allocation5 + $0x20] sm:$0xff]
    %v1431 = vld [vmem:[#allocation5 + $0x28] sm:$0xff]
    %v1432 = vld [vmem:[#allocation5 + $0x30] sm:$0xff]
    %v1433 = vld [vmem:[#allocation5 + $0x38] sm:$0xff]
    %v1434 = vld [vmem:[#allocation5 + $0x40] sm:$0xff]
    %v1435 = vld [vmem:[#allocation5 + $0x48] sm:$0xff]
    %v1436 = vld [vmem:[#allocation5 + $0x50] sm:$0xff]
    %v1437 = vld [vmem:[#allocation5 + $0x58] sm:$0xff]
    %v1438 = vld [vmem:[#allocation5 + $0x60] sm:$0xff]
    %v1439 = vld [vmem:[#allocation5 + $0x68] sm:$0xff]
    %v1440 = vld [vmem:[#allocation5 + $0x70] sm:$0xff]
    %v1441 = vld [vmem:[#allocation5 + $0x78] sm:$0xff]
    %v1442 = vld [vmem:[#allocation5 + $0x80] sm:$0xff]
    %v1443 = vld [vmem:[#allocation5 + $0x88] sm:$0xff]
    %v1444 = vld [vmem:[#allocation5 + $0x90] sm:$0xff]
    %v1445 = vld [vmem:[#allocation5 + $0x98] sm:$0xff]
    %v1446 = vld [vmem:[#allocation5 + $0xa0] sm:$0xff]
    %v1447 = vld [vmem:[#allocation5 + $0xa8] sm:$0xff]
    %v1448 = vld [vmem:[#allocation5 + $0xb0] sm:$0xff]
    %v1449 = vld [vmem:[#allocation5 + $0xb8] sm:$0xff]
    %v1450 = vld [vmem:[#allocation5 + $0xc0] sm:$0xff]
    %v1451 = vld [vmem:[#allocation5 + $0xc8] sm:$0xff]
    %v1452 = vld [vmem:[#allocation5 + $0xd0] sm:$0xff]
    %v1453 = vld [vmem:[#allocation5 + $0xd8] sm:$0xff]
    %v1454 = vld [vmem:[#allocation5 + $0xe0] sm:$0xff]
    %v1455 = vld [vmem:[#allocation5 + $0xe8] sm:$0xff]
    %v1456 = vld [vmem:[#allocation5 + $0xf0] sm:$0xff]
    %v1457 = vld [vmem:[#allocation5 + $0xf8] sm:$0xff]
    %v1458 = vld [vmem:[#allocation5 + $0x100] sm:$0xff]
    %v1459 = vld [vmem:[#allocation5 + $0x108] sm:$0xff]
    %v1460 = vld [vmem:[#allocation2] sm:$0xff]
    %v1461 = vld [vmem:[#allocation2 + $0x8] sm:$0xff]
    %v1462 = vld [vmem:[#allocation2 + $0x10] sm:$0xff]
    %v1463 = vld [vmem:[#allocation2 + $0x18] sm:$0xff]
    %v1464 = vld [vmem:[#allocation2 + $0x20] sm:$0xff]
    %v1465 = vld [vmem:[#allocation2 + $0x28] sm:$0xff]
    %v1466 = vld [vmem:[#allocation2 + $0x30] sm:$0xff]
    %v1467 = vld [vmem:[#allocation2 + $0x38] sm:$0xff]
    %v1469 = vlaneseq
    %v1470 = vshrl.u32 %v1469, 7
    %v1471 = vsub.s32 0, %v1470
    %v1472 = vrot.slane %v1427, %v1471
    %v1473 = vlaneseq
    %v1474 = vshrl.u32 %v1473, 7
    %v1475 = vsub.s32 1, %v1474
    %v1476 = vrot.slane %v1427, %v1475
    %v1480 = vsel %vm470, %v1460, 0
    %v1483 = vsel %vm470, %v1461, 0
    %v1486 = vsel %vm470, %v1462, 0
    %v1489 = vsel %vm470, %v1463, 0
    %v1492 = vsel %vm470, %v1464, 0
    %v1495 = vsel %vm470, %v1465, 0
    %v1498 = vsel %vm470, %v1466, 0
    %v1501 = vsel %vm470, %v1467, 0
    %1503 = vmatprep.subr.mxu0 %v1429
    %1504 = vmatpush1.msra.mxu0 %v1428
    %1505 = vmatprep.subr.mxu0 %v1431
    %1506 = vmatpush1.msra.mxu0 %v1430
    %1507 = vmatprep.subr.mxu0 %v1433
    %1508 = vmatpush1.msra.mxu0 %v1432
    %1509 = vmatprep.subr.mxu0 %v1435
    %1510 = vmatpush1.msra.mxu0 %v1434
    %1511 = vmatprep.subr.mxu0 %v1437
    %1512 = vmatpush1.msra.mxu0 %v1436
    %1513 = vmatprep.subr.mxu0 %v1439
    %1514 = vmatpush1.msra.mxu0 %v1438
    %1515 = vmatprep.subr.mxu0 %v1441
    %1516 = vmatpush1.msra.mxu0 %v1440
    %1517 = vmatprep.subr.mxu0 %v1443
    %1518 = vmatpush1.msra.mxu0 %v1442
    %1519 = vmatprep.subr.mxu0 0.0
    %1520 = vmatpush1.msra.mxu0 0.0
    %1521 = vmatprep.subr.mxu0 0.0
    %1522 = vmatpush1.msra.mxu0 0.0
    %1523 = vmatprep.subr.mxu0 0.0
    %1524 = vmatpush1.msra.mxu0 0.0
    %1525 = vmatprep.subr.mxu0 0.0
    %1526 = vmatpush1.msra.mxu0 0.0
    %1527 = vmatprep.subr.mxu0 0.0
    %1528 = vmatpush1.msra.mxu0 0.0
    %1529 = vmatprep.subr.mxu0 0.0
    %1530 = vmatpush1.msra.mxu0 0.0
    %1531 = vmatprep.subr.mxu0 0.0
    %1532 = vmatpush1.msra.mxu0 0.0
    %1533 = vmatprep.subr.mxu0 0.0
    %1534 = vmatpush1.msra.mxu0 0.0
    %1535 = vmatprep.subr.mxu0 0.0
    %1536 = vmatpush1.msra.mxu0 0.0
    %1537 = vmatprep.subr.mxu0 0.0
    %1538 = vmatpush1.msra.mxu0 0.0
    %1539 = vmatprep.subr.mxu0 0.0
    %1540 = vmatpush1.msra.mxu0 0.0
    %1541 = vmatprep.subr.mxu0 0.0
    %1542 = vmatpush1.msra.mxu0 0.0
    %1543 = vmatprep.subr.mxu0 0.0
    %1544 = vmatpush1.msra.mxu0 0.0
    %1545 = vmatprep.subr.mxu0 0.0
    %1546 = vmatpush1.msra.mxu0 0.0
    %1547 = vmatprep.subr.mxu0 0.0
    %1548 = vmatpush1.msra.mxu0 0.0
    %1549 = vmatprep.subr.mxu0 0.0
    %1550 = vmatpush1.msra.mxu0 0.0
    %1551 = vmatprep.subr.mxu0 0.0
    %1552 = vmatpush1.msra.mxu0 0.0
    %1553 = vmatprep.subr.mxu0 0.0
    %1554 = vmatpush1.msra.mxu0 0.0
    %1555 = vmatprep.subr.mxu0 0.0
    %1556 = vmatpush1.msra.mxu0 0.0
    %1557 = vmatprep.subr.mxu0 0.0
    %1558 = vmatpush1.msra.mxu0 0.0
    %1559 = vmatprep.subr.mxu0 0.0
    %1560 = vmatpush1.msra.mxu0 0.0
    %1561 = vmatprep.subr.mxu0 0.0
    %1562 = vmatpush1.msra.mxu0 0.0
    %1563 = vmatprep.subr.mxu0 0.0
    %1564 = vmatpush1.msra.mxu0 0.0
    %1565 = vmatprep.subr.mxu0 0.0
    %1566 = vmatpush1.msra.mxu0 0.0
    %1567 = vmatprep.mubr.f32.mxu0 0.0
    %1568 = vmatmul.mubr.f32.gmra.mrb[0].mxu0 %v1480
    %v1569 = vpop.f32.mrb[0].mxu0
    %v1570 = vadd.f32 %v1472, %v1569
    %v1571 = vpop.f32.mrb[0].mxu0
    %v1572 = vadd.f32 %v1476, %v1571
    %1573 = vmatprep.mubr.f32.mxu0 0.0
    %1574 = vmatmul.mubr.f32.gmra.mrb[0].mxu0 %v1483
    %v1575 = vpop.f32.mrb[0].mxu0
    %v1576 = vadd.f32 %v1472, %v1575
    %v1577 = vpop.f32.mrb[0].mxu0
    %v1578 = vadd.f32 %v1476, %v1577
    %1579 = vmatprep.mubr.f32.mxu0 0.0
    %1580 = vmatmul.mubr.f32.gmra.mrb[0].mxu0 %v1486
    %v1581 = vpop.f32.mrb[0].mxu0
    %v1582 = vadd.f32 %v1472, %v1581
    %v1583 = vpop.f32.mrb[0].mxu0
    %v1584 = vadd.f32 %v1476, %v1583
    %1585 = vmatprep.mubr.f32.mxu0 0.0
    %1586 = vmatmul.mubr.f32.gmra.mrb[0].mxu0 %v1489
    %v1587 = vpop.f32.mrb[0].mxu0
    %v1588 = vadd.f32 %v1472, %v1587
    %v1589 = vpop.f32.mrb[0].mxu0
    %v1590 = vadd.f32 %v1476, %v1589
    %1591 = vmatprep.mubr.f32.mxu0 0.0
    %1592 = vmatmul.mubr.f32.gmra.mrb[0].mxu0 %v1492
    %v1593 = vpop.f32.mrb[0].mxu0
    %v1594 = vadd.f32 %v1472, %v1593
    %v1595 = vpop.f32.mrb[0].mxu0
    %v1596 = vadd.f32 %v1476, %v1595
    %1597 = vmatprep.mubr.f32.mxu0 0.0
    %1598 = vmatmul.mubr.f32.gmra.mrb[0].mxu0 %v1495
    %v1599 = vpop.f32.mrb[0].mxu0
    %v1600 = vadd.f32 %v1472, %v1599
    %v1601 = vpop.f32.mrb[0].mxu0
    %v1602 = vadd.f32 %v1476, %v1601
    %1603 = vmatprep.mubr.f32.mxu0 0.0
    %1604 = vmatmul.mubr.f32.gmra.mrb[0].mxu0 %v1498
    %v1605 = vpop.f32.mrb[0].mxu0
    %v1606 = vadd.f32 %v1472, %v1605
    %v1607 = vpop.f32.mrb[0].mxu0
    %v1608 = vadd.f32 %v1476, %v1607
    %1609 = vmatprep.mubr.f32.mxu0 0.0
    %1610 = vmatmul.mubr.f32.gmra.mrb[0].mxu0 %v1501
    %v1611 = vpop.f32.mrb[0].mxu0
    %v1612 = vadd.f32 %v1472, %v1611
    %v1613 = vpop.f32.mrb[0].mxu0
    %v1614 = vadd.f32 %v1476, %v1613
    %1615 = vdwg.mxu0
    %v1616 = vsel %vm466, %v1570, %v1612
    %v1617 = vsel %vm467, %v1572, %v1614
    %1618 = vmatprep.subr.mxu0 %v1445
    %1619 = vmatpush1.msra.mxu0 %v1444
    %1620 = vmatprep.subr.mxu0 %v1447
    %1621 = vmatpush1.msra.mxu0 %v1446
    %1622 = vmatprep.subr.mxu0 %v1449
    %1623 = vmatpush1.msra.mxu0 %v1448
    %1624 = vmatprep.subr.mxu0 %v1451
    %1625 = vmatpush1.msra.mxu0 %v1450
    %1626 = vmatprep.subr.mxu0 %v1453
    %1627 = vmatpush1.msra.mxu0 %v1452
    %1628 = vmatprep.subr.mxu0 %v1455
    %1629 = vmatpush1.msra.mxu0 %v1454
    %1630 = vmatprep.subr.mxu0 %v1457
    %1631 = vmatpush1.msra.mxu0 %v1456
    %1632 = vmatprep.subr.mxu0 %v1459
    %1633 = vmatpush1.msra.mxu0 %v1458
    %1634 = vmatprep.subr.mxu0 0.0
    %1635 = vmatpush1.msra.mxu0 0.0
    %1636 = vmatprep.subr.mxu0 0.0
    %1637 = vmatpush1.msra.mxu0 0.0
    %1638 = vmatprep.subr.mxu0 0.0
    %1639 = vmatpush1.msra.mxu0 0.0
    %1640 = vmatprep.subr.mxu0 0.0
    %1641 = vmatpush1.msra.mxu0 0.0
    %1642 = vmatprep.subr.mxu0 0.0
    %1643 = vmatpush1.msra.mxu0 0.0
    %1644 = vmatprep.subr.mxu0 0.0
    %1645 = vmatpush1.msra.mxu0 0.0
    %1646 = vmatprep.subr.mxu0 0.0
    %1647 = vmatpush1.msra.mxu0 0.0
    %1648 = vmatprep.subr.mxu0 0.0
    %1649 = vmatpush1.msra.mxu0 0.0
    %1650 = vmatprep.subr.mxu0 0.0
    %1651 = vmatpush1.msra.mxu0 0.0
    %1652 = vmatprep.subr.mxu0 0.0
    %1653 = vmatpush1.msra.mxu0 0.0
    %1654 = vmatprep.subr.mxu0 0.0
    %1655 = vmatpush1.msra.mxu0 0.0
    %1656 = vmatprep.subr.mxu0 0.0
    %1657 = vmatpush1.msra.mxu0 0.0
    %1658 = vmatprep.subr.mxu0 0.0
    %1659 = vmatpush1.msra.mxu0 0.0
    %1660 = vmatprep.subr.mxu0 0.0
    %1661 = vmatpush1.msra.mxu0 0.0
    %1662 = vmatprep.subr.mxu0 0.0
    %1663 = vmatpush1.msra.mxu0 0.0
    %1664 = vmatprep.subr.mxu0 0.0
    %1665 = vmatpush1.msra.mxu0 0.0
    %1666 = vmatprep.subr.mxu0 0.0
    %1667 = vmatpush1.msra.mxu0 0.0
    %1668 = vmatprep.subr.mxu0 0.0
    %1669 = vmatpush1.msra.mxu0 0.0
    %1670 = vmatprep.subr.mxu0 0.0
    %1671 = vmatpush1.msra.mxu0 0.0
    %1672 = vmatprep.subr.mxu0 0.0
    %1673 = vmatpush1.msra.mxu0 0.0
    %1674 = vmatprep.subr.mxu0 0.0
    %1675 = vmatpush1.msra.mxu0 0.0
    %1676 = vmatprep.subr.mxu0 0.0
    %1677 = vmatpush1.msra.mxu0 0.0
    %1678 = vmatprep.subr.mxu0 0.0
    %1679 = vmatpush1.msra.mxu0 0.0
    %1680 = vmatprep.subr.mxu0 0.0
    %1681 = vmatpush1.msra.mxu0 0.0
    %1682 = vmatprep.mubr.f32.mxu0 0.0
    %1683 = vmatmul.mubr.f32.gmra.mrb[0].mxu0 %v472
    %v1684 = vpop.f32.mrb[0].mxu0
    %v1685 = vadd.f32 0.0, %v1684
    %v1686 = vpop.f32.mrb[0].mxu0
    %v1687 = vadd.f32 0.0, %v1686
    %1688 = vdwg.mxu0
    %v1689 = vadd.f32 %v1616, %v1685
    %v1690 = vadd.f32 %v1617, %v1687
    %v1691 = vxor.u32 %v1689, 2147483648
    %v1692 = vxor.u32 %v1690, 2147483648
    %v1693 = vmul.f32 %v1691, 1.442695
    %v1694 = vpow.pop %v1693
    %v1695 = vmul.f32 %v1692, 1.442695
    %v1696 = vpow.pop %v1695
    %v1697 = vadd.f32 %v1694, 1.0
    %v1698 = vadd.f32 %v1696, 1.0
    %v1699 = vrcp.pop %v1697
    %v1700 = vmul.f32 1.0, %v1699
    %v1701 = vrcp.pop %v1698
    %v1702 = vmul.f32 1.0, %v1701
    %v1703 = vtanh.pop %v1690
    %v1704 = vmul.f32 %v1700, 0.0
    %1706 = vrot.lane.b32.xlu0 %v1703, 64
    %v1707 = vpop.permute.xlu0 %1706
    %v1709 = vmul.f32 %v1700, %v1707
    %1711 = vrot.lane.b32.xlu0 %v1709, 64
    %v1712 = vpop.permute.xlu0 %1711
    %v1714 = vadd.f32 %v1704, %v1712
    %v1715 = vtanh.pop %v1714
    %1717 = vrot.lane.b32.xlu0 %v1715, 64
    %v1718 = vpop.permute.xlu0 %1717
    %v1720 = vmul.f32 %v1702, %v1718
    %v1721 = vsel %vm86, %v1720, 0.0
    %1723 = vrot.lane.b32.xlu0 %v1714, 64
    %v1724 = vpop.permute.xlu0 %1723
    %v1726 = vsel %vm86, %v1724, 0.0
    %v1727 = vsel %vm466, %v1576, %v1606
    %v1728 = vsel %vm467, %v1578, %v1608
    %v1730 = vsel %vm470, %v1721, 0
    %1732 = vmatprep.subr.mxu0 %v1445
    %1733 = vmatpush1.msra.mxu0 %v1444
    %1734 = vmatprep.subr.mxu0 %v1447
    %1735 = vmatpush1.msra.mxu0 %v1446
    %1736 = vmatprep.subr.mxu0 %v1449
    %1737 = vmatpush1.msra.mxu0 %v1448
    %1738 = vmatprep.subr.mxu0 %v1451
    %1739 = vmatpush1.msra.mxu0 %v1450
    %1740 = vmatprep.subr.mxu0 %v1453
    %1741 = vmatpush1.msra.mxu0 %v1452
    %1742 = vmatprep.subr.mxu0 %v1455
    %1743 = vmatpush1.msra.mxu0 %v1454
    %1744 = vmatprep.subr.mxu0 %v1457
    %1745 = vmatpush1.msra.mxu0 %v1456
    %1746 = vmatprep.subr.mxu0 %v1459
    %1747 = vmatpush1.msra.mxu0 %v1458
    %1748 = vmatprep.subr.mxu0 0.0
    %1749 = vmatpush1.msra.mxu0 0.0
    %1750 = vmatprep.subr.mxu0 0.0
    %1751 = vmatpush1.msra.mxu0 0.0
    %1752 = vmatprep.subr.mxu0 0.0
    %1753 = vmatpush1.msra.mxu0 0.0
    %1754 = vmatprep.subr.mxu0 0.0
    %1755 = vmatpush1.msra.mxu0 0.0
    %1756 = vmatprep.subr.mxu0 0.0
    %1757 = vmatpush1.msra.mxu0 0.0
    %1758 = vmatprep.subr.mxu0 0.0
    %1759 = vmatpush1.msra.mxu0 0.0
    %1760 = vmatprep.subr.mxu0 0.0
    %1761 = vmatpush1.msra.mxu0 0.0
    %1762 = vmatprep.subr.mxu0 0.0
    %1763 = vmatpush1.msra.mxu0 0.0
    %1764 = vmatprep.subr.mxu0 0.0
    %1765 = vmatpush1.msra.mxu0 0.0
    %1766 = vmatprep.subr.mxu0 0.0
    %1767 = vmatpush1.msra.mxu0 0.0
    %1768 = vmatprep.subr.mxu0 0.0
    %1769 = vmatpush1.msra.mxu0 0.0
    %1770 = vmatprep.subr.mxu0 0.0
    %1771 = vmatpush1.msra.mxu0 0.0
    %1772 = vmatprep.subr.mxu0 0.0
    %1773 = vmatpush1.msra.mxu0 0.0
    %1774 = vmatprep.subr.mxu0 0.0
    %1775 = vmatpush1.msra.mxu0 0.0
    %1776 = vmatprep.subr.mxu0 0.0
    %1777 = vmatpush1.msra.mxu0 0.0
    %1778 = vmatprep.subr.mxu0 0.0
    %1779 = vmatpush1.msra.mxu0 0.0
    %1780 = vmatprep.subr.mxu0 0.0
    %1781 = vmatpush1.msra.mxu0 0.0
    %1782 = vmatprep.subr.mxu0 0.0
    %1783 = vmatpush1.msra.mxu0 0.0
    %1784 = vmatprep.subr.mxu0 0.0
    %1785 = vmatpush1.msra.mxu0 0.0
    %1786 = vmatprep.subr.mxu0 0.0
    %1787 = vmatpush1.msra.mxu0 0.0
    %1788 = vmatprep.subr.mxu0 0.0
    %1789 = vmatpush1.msra.mxu0 0.0
    %1790 = vmatprep.subr.mxu0 0.0
    %1791 = vmatpush1.msra.mxu0 0.0
    %1792 = vmatprep.subr.mxu0 0.0
    %1793 = vmatpush1.msra.mxu0 0.0
    %1794 = vmatprep.subr.mxu0 0.0
    %1795 = vmatpush1.msra.mxu0 0.0
    %1796 = vmatprep.mubr.f32.mxu0 0.0
    %1797 = vmatmul.mubr.f32.gmra.mrb[0].mxu0 %v1730
    %v1798 = vpop.f32.mrb[0].mxu0
    %v1799 = vadd.f32 0.0, %v1798
    %v1800 = vpop.f32.mrb[0].mxu0
    %v1801 = vadd.f32 0.0, %v1800
    %1802 = vdwg.mxu0
    %v1803 = vadd.f32 %v1727, %v1799
    %v1804 = vadd.f32 %v1728, %v1801
    %v1805 = vxor.u32 %v1803, 2147483648
    %v1806 = vxor.u32 %v1804, 2147483648
    %v1807 = vmul.f32 %v1805, 1.442695
    %v1808 = vpow.pop %v1807
    %v1809 = vmul.f32 %v1806, 1.442695
    %v1810 = vpow.pop %v1809
    %v1811 = vadd.f32 %v1808, 1.0
    %v1812 = vadd.f32 %v1810, 1.0
    %v1813 = vrcp.pop %v1811
    %v1814 = vmul.f32 1.0, %v1813
    %v1815 = vrcp.pop %v1812
    %v1816 = vmul.f32 1.0, %v1815
    %v1817 = vtanh.pop %v1804
    %1819 = vrot.lane.b32.xlu0 %v1726, 64
    %v1820 = vpop.permute.xlu0 %1819
    %v1822 = vmul.f32 %v1814, %v1820
    %1824 = vrot.lane.b32.xlu0 %v1817, 64
    %v1825 = vpop.permute.xlu0 %1824
    %v1827 = vmul.f32 %v1814, %v1825
    %1829 = vrot.lane.b32.xlu0 %v1827, 64
    %v1830 = vpop.permute.xlu0 %1829
    %v1832 = vadd.f32 %v1822, %v1830
    %v1833 = vtanh.pop %v1832
    %1835 = vrot.lane.b32.xlu0 %v1833, 64
    %v1836 = vpop.permute.xlu0 %1835
    %v1838 = vmul.f32 %v1816, %v1836
    %v1839 = vsel %vm88, %v1838, %v1721
    %1841 = vrot.lane.b32.xlu0 %v1832, 64
    %v1842 = vpop.permute.xlu0 %1841
    %v1844 = vsel %vm88, %v1842, %v1726
    %v1845 = vsel %vm466, %v1582, %v1600
    %v1846 = vsel %vm467, %v1584, %v1602
    %v1848 = vsel %vm470, %v1839, 0
    %1850 = vmatprep.subr.mxu0 %v1445
    %1851 = vmatpush1.msra.mxu0 %v1444
    %1852 = vmatprep.subr.mxu0 %v1447
    %1853 = vmatpush1.msra.mxu0 %v1446
    %1854 = vmatprep.subr.mxu0 %v1449
    %1855 = vmatpush1.msra.mxu0 %v1448
    %1856 = vmatprep.subr.mxu0 %v1451
    %1857 = vmatpush1.msra.mxu0 %v1450
    %1858 = vmatprep.subr.mxu0 %v1453
    %1859 = vmatpush1.msra.mxu0 %v1452
    %1860 = vmatprep.subr.mxu0 %v1455
    %1861 = vmatpush1.msra.mxu0 %v1454
    %1862 = vmatprep.subr.mxu0 %v1457
    %1863 = vmatpush1.msra.mxu0 %v1456
    %1864 = vmatprep.subr.mxu0 %v1459
    %1865 = vmatpush1.msra.mxu0 %v1458
    %1866 = vmatprep.subr.mxu0 0.0
    %1867 = vmatpush1.msra.mxu0 0.0
    %1868 = vmatprep.subr.mxu0 0.0
    %1869 = vmatpush1.msra.mxu0 0.0
    %1870 = vmatprep.subr.mxu0 0.0
    %1871 = vmatpush1.msra.mxu0 0.0
    %1872 = vmatprep.subr.mxu0 0.0
    %1873 = vmatpush1.msra.mxu0 0.0
    %1874 = vmatprep.subr.mxu0 0.0
    %1875 = vmatpush1.msra.mxu0 0.0
    %1876 = vmatprep.subr.mxu0 0.0
    %1877 = vmatpush1.msra.mxu0 0.0
    %1878 = vmatprep.subr.mxu0 0.0
    %1879 = vmatpush1.msra.mxu0 0.0
    %1880 = vmatprep.subr.mxu0 0.0
    %1881 = vmatpush1.msra.mxu0 0.0
    %1882 = vmatprep.subr.mxu0 0.0
    %1883 = vmatpush1.msra.mxu0 0.0
    %1884 = vmatprep.subr.mxu0 0.0
    %1885 = vmatpush1.msra.mxu0 0.0
    %1886 = vmatprep.subr.mxu0 0.0
    %1887 = vmatpush1.msra.mxu0 0.0
    %1888 = vmatprep.subr.mxu0 0.0
    %1889 = vmatpush1.msra.mxu0 0.0
    %1890 = vmatprep.subr.mxu0 0.0
    %1891 = vmatpush1.msra.mxu0 0.0
    %1892 = vmatprep.subr.mxu0 0.0
    %1893 = vmatpush1.msra.mxu0 0.0
    %1894 = vmatprep.subr.mxu0 0.0
    %1895 = vmatpush1.msra.mxu0 0.0
    %1896 = vmatprep.subr.mxu0 0.0
    %1897 = vmatpush1.msra.mxu0 0.0
    %1898 = vmatprep.subr.mxu0 0.0
    %1899 = vmatpush1.msra.mxu0 0.0
    %1900 = vmatprep.subr.mxu0 0.0
    %1901 = vmatpush1.msra.mxu0 0.0
    %1902 = vmatprep.subr.mxu0 0.0
    %1903 = vmatpush1.msra.mxu0 0.0
    %1904 = vmatprep.subr.mxu0 0.0
    %1905 = vmatpush1.msra.mxu0 0.0
    %1906 = vmatprep.subr.mxu0 0.0
    %1907 = vmatpush1.msra.mxu0 0.0
    %1908 = vmatprep.subr.mxu0 0.0
    %1909 = vmatpush1.msra.mxu0 0.0
    %1910 = vmatprep.subr.mxu0 0.0
    %1911 = vmatpush1.msra.mxu0 0.0
    %1912 = vmatprep.subr.mxu0 0.0
    %1913 = vmatpush1.msra.mxu0 0.0
    %1914 = vmatprep.mubr.f32.mxu0 0.0
    %1915 = vmatmul.mubr.f32.gmra.mrb[0].mxu0 %v1848
    %v1916 = vpop.f32.mrb[0].mxu0
    %v1917 = vadd.f32 0.0, %v1916
    %v1918 = vpop.f32.mrb[0].mxu0
    %v1919 = vadd.f32 0.0, %v1918
    %1920 = vdwg.mxu0
    %v1921 = vadd.f32 %v1845, %v1917
    %v1922 = vadd.f32 %v1846, %v1919
    %v1923 = vxor.u32 %v1921, 2147483648
    %v1924 = vxor.u32 %v1922, 2147483648
    %v1925 = vmul.f32 %v1923, 1.442695
    %v1926 = vpow.pop %v1925
    %v1927 = vmul.f32 %v1924, 1.442695
    %v1928 = vpow.pop %v1927
    %v1929 = vadd.f32 %v1926, 1.0
    %v1930 = vadd.f32 %v1928, 1.0
    %v1931 = vrcp.pop %v1929
    %v1932 = vmul.f32 1.0, %v1931
    %v1933 = vrcp.pop %v1930
    %v1934 = vmul.f32 1.0, %v1933
    %v1935 = vtanh.pop %v1922
    %1937 = vrot.lane.b32.xlu0 %v1844, 64
    %v1938 = vpop.permute.xlu0 %1937
    %v1940 = vmul.f32 %v1932, %v1938
    %1942 = vrot.lane.b32.xlu0 %v1935, 64
    %v1943 = vpop.permute.xlu0 %1942
    %v1945 = vmul.f32 %v1932, %v1943
    %1947 = vrot.lane.b32.xlu0 %v1945, 64
    %v1948 = vpop.permute.xlu0 %1947
    %v1950 = vadd.f32 %v1940, %v1948
    %v1951 = vtanh.pop %v1950
    %1953 = vrot.lane.b32.xlu0 %v1951, 64
    %v1954 = vpop.permute.xlu0 %1953
    %v1956 = vmul.f32 %v1934, %v1954
    %v1957 = vsel %vm90, %v1956, %v1839
    %1959 = vrot.lane.b32.xlu0 %v1950, 64
    %v1960 = vpop.permute.xlu0 %1959
    %v1962 = vsel %vm90, %v1960, %v1844
    %v1963 = vsel %vm466, %v1588, %v1594
    %v1964 = vsel %vm467, %v1590, %v1596
    %v1966 = vsel %vm470, %v1957, 0
    %1968 = vmatprep.subr.mxu0 %v1445
    %1969 = vmatpush1.msra.mxu0 %v1444
    %1970 = vmatprep.subr.mxu0 %v1447
    %1971 = vmatpush1.msra.mxu0 %v1446
    %1972 = vmatprep.subr.mxu0 %v1449
    %1973 = vmatpush1.msra.mxu0 %v1448
    %1974 = vmatprep.subr.mxu0 %v1451
    %1975 = vmatpush1.msra.mxu0 %v1450
    %1976 = vmatprep.subr.mxu0 %v1453
    %1977 = vmatpush1.msra.mxu0 %v1452
    %1978 = vmatprep.subr.mxu0 %v1455
    %1979 = vmatpush1.msra.mxu0 %v1454
    %1980 = vmatprep.subr.mxu0 %v1457
    %1981 = vmatpush1.msra.mxu0 %v1456
    %1982 = vmatprep.subr.mxu0 %v1459
    %1983 = vmatpush1.msra.mxu0 %v1458
    %1984 = vmatprep.subr.mxu0 0.0
    %1985 = vmatpush1.msra.mxu0 0.0
    %1986 = vmatprep.subr.mxu0 0.0
    %1987 = vmatpush1.msra.mxu0 0.0
    %1988 = vmatprep.subr.mxu0 0.0
    %1989 = vmatpush1.msra.mxu0 0.0
    %1990 = vmatprep.subr.mxu0 0.0
    %1991 = vmatpush1.msra.mxu0 0.0
    %1992 = vmatprep.subr.mxu0 0.0
    %1993 = vmatpush1.msra.mxu0 0.0
    %1994 = vmatprep.subr.mxu0 0.0
    %1995 = vmatpush1.msra.mxu0 0.0
    %1996 = vmatprep.subr.mxu0 0.0
    %1997 = vmatpush1.msra.mxu0 0.0
    %1998 = vmatprep.subr.mxu0 0.0
    %1999 = vmatpush1.msra.mxu0 0.0
    %2000 = vmatprep.subr.mxu0 0.0
    %2001 = vmatpush1.msra.mxu0 0.0
    %2002 = vmatprep.subr.mxu0 0.0
    %2003 = vmatpush1.msra.mxu0 0.0
    %2004 = vmatprep.subr.mxu0 0.0
    %2005 = vmatpush1.msra.mxu0 0.0
    %2006 = vmatprep.subr.mxu0 0.0
    %2007 = vmatpush1.msra.mxu0 0.0
    %2008 = vmatprep.subr.mxu0 0.0
    %2009 = vmatpush1.msra.mxu0 0.0
    %2010 = vmatprep.subr.mxu0 0.0
    %2011 = vmatpush1.msra.mxu0 0.0
    %2012 = vmatprep.subr.mxu0 0.0
    %2013 = vmatpush1.msra.mxu0 0.0
    %2014 = vmatprep.subr.mxu0 0.0
    %2015 = vmatpush1.msra.mxu0 0.0
    %2016 = vmatprep.subr.mxu0 0.0
    %2017 = vmatpush1.msra.mxu0 0.0
    %2018 = vmatprep.subr.mxu0 0.0
    %2019 = vmatpush1.msra.mxu0 0.0
    %2020 = vmatprep.subr.mxu0 0.0
    %2021 = vmatpush1.msra.mxu0 0.0
    %2022 = vmatprep.subr.mxu0 0.0
    %2023 = vmatpush1.msra.mxu0 0.0
    %2024 = vmatprep.subr.mxu0 0.0
    %2025 = vmatpush1.msra.mxu0 0.0
    %2026 = vmatprep.subr.mxu0 0.0
    %2027 = vmatpush1.msra.mxu0 0.0
    %2028 = vmatprep.subr.mxu0 0.0
    %2029 = vmatpush1.msra.mxu0 0.0
    %2030 = vmatprep.subr.mxu0 0.0
    %2031 = vmatpush1.msra.mxu0 0.0
    %2032 = vmatprep.mubr.f32.mxu0 0.0
    %2033 = vmatmul.mubr.f32.gmra.mrb[0].mxu0 %v1966
    %v2034 = vpop.f32.mrb[0].mxu0
    %v2035 = vadd.f32 0.0, %v2034
    %v2036 = vpop.f32.mrb[0].mxu0
    %v2037 = vadd.f32 0.0, %v2036
    %2038 = vdwg.mxu0
    %v2039 = vadd.f32 %v1963, %v2035
    %v2040 = vadd.f32 %v1964, %v2037
    %v2041 = vxor.u32 %v2039, 2147483648
    %v2042 = vxor.u32 %v2040, 2147483648
    %v2043 = vmul.f32 %v2041, 1.442695
    %v2044 = vpow.pop %v2043
    %v2045 = vmul.f32 %v2042, 1.442695
    %v2046 = vpow.pop %v2045
    %v2047 = vadd.f32 %v2044, 1.0
    %v2048 = vadd.f32 %v2046, 1.0
    %v2049 = vrcp.pop %v2047
    %v2050 = vmul.f32 1.0, %v2049
    %v2051 = vrcp.pop %v2048
    %v2052 = vmul.f32 1.0, %v2051
    %v2053 = vtanh.pop %v2040
    %2055 = vrot.lane.b32.xlu0 %v1962, 64
    %v2056 = vpop.permute.xlu0 %2055
    %v2058 = vmul.f32 %v2050, %v2056
    %2060 = vrot.lane.b32.xlu0 %v2053, 64
    %v2061 = vpop.permute.xlu0 %2060
    %v2063 = vmul.f32 %v2050, %v2061
    %2065 = vrot.lane.b32.xlu0 %v2063, 64
    %v2066 = vpop.permute.xlu0 %2065
    %v2068 = vadd.f32 %v2058, %v2066
    %v2069 = vtanh.pop %v2068
    %2071 = vrot.lane.b32.xlu0 %v2069, 64
    %v2072 = vpop.permute.xlu0 %2071
    %v2074 = vmul.f32 %v2052, %v2072
    %v2075 = vsel %vm92, %v2074, %v1957
    %2077 = vrot.lane.b32.xlu0 %v2068, 64
    %v2078 = vpop.permute.xlu0 %2077
    %v2080 = vsel %vm92, %v2078, %v1962
    %v2081 = vsel %vm466, %v1594, %v1588
    %v2082 = vsel %vm467, %v1596, %v1590
    %v2084 = vsel %vm470, %v2075, 0
    %2086 = vmatprep.subr.mxu0 %v1445
    %2087 = vmatpush1.msra.mxu0 %v1444
    %2088 = vmatprep.subr.mxu0 %v1447
    %2089 = vmatpush1.msra.mxu0 %v1446
    %2090 = vmatprep.subr.mxu0 %v1449
    %2091 = vmatpush1.msra.mxu0 %v1448
    %2092 = vmatprep.subr.mxu0 %v1451
    %2093 = vmatpush1.msra.mxu0 %v1450
    %2094 = vmatprep.subr.mxu0 %v1453
    %2095 = vmatpush1.msra.mxu0 %v1452
    %2096 = vmatprep.subr.mxu0 %v1455
    %2097 = vmatpush1.msra.mxu0 %v1454
    %2098 = vmatprep.subr.mxu0 %v1457
    %2099 = vmatpush1.msra.mxu0 %v1456
    %2100 = vmatprep.subr.mxu0 %v1459
    %2101 = vmatpush1.msra.mxu0 %v1458
    %2102 = vmatprep.subr.mxu0 0.0
    %2103 = vmatpush1.msra.mxu0 0.0
    %2104 = vmatprep.subr.mxu0 0.0
    %2105 = vmatpush1.msra.mxu0 0.0
    %2106 = vmatprep.subr.mxu0 0.0
    %2107 = vmatpush1.msra.mxu0 0.0
    %2108 = vmatprep.subr.mxu0 0.0
    %2109 = vmatpush1.msra.mxu0 0.0
    %2110 = vmatprep.subr.mxu0 0.0
    %2111 = vmatpush1.msra.mxu0 0.0
    %2112 = vmatprep.subr.mxu0 0.0
    %2113 = vmatpush1.msra.mxu0 0.0
    %2114 = vmatprep.subr.mxu0 0.0
    %2115 = vmatpush1.msra.mxu0 0.0
    %2116 = vmatprep.subr.mxu0 0.0
    %2117 = vmatpush1.msra.mxu0 0.0
    %2118 = vmatprep.subr.mxu0 0.0
    %2119 = vmatpush1.msra.mxu0 0.0
    %2120 = vmatprep.subr.mxu0 0.0
    %2121 = vmatpush1.msra.mxu0 0.0
    %2122 = vmatprep.subr.mxu0 0.0
    %2123 = vmatpush1.msra.mxu0 0.0
    %2124 = vmatprep.subr.mxu0 0.0
    %2125 = vmatpush1.msra.mxu0 0.0
    %2126 = vmatprep.subr.mxu0 0.0
    %2127 = vmatpush1.msra.mxu0 0.0
    %2128 = vmatprep.subr.mxu0 0.0
    %2129 = vmatpush1.msra.mxu0 0.0
    %2130 = vmatprep.subr.mxu0 0.0
    %2131 = vmatpush1.msra.mxu0 0.0
    %2132 = vmatprep.subr.mxu0 0.0
    %2133 = vmatpush1.msra.mxu0 0.0
    %2134 = vmatprep.subr.mxu0 0.0
    %2135 = vmatpush1.msra.mxu0 0.0
    %2136 = vmatprep.subr.mxu0 0.0
    %2137 = vmatpush1.msra.mxu0 0.0
    %2138 = vmatprep.subr.mxu0 0.0
    %2139 = vmatpush1.msra.mxu0 0.0
    %2140 = vmatprep.subr.mxu0 0.0
    %2141 = vmatpush1.msra.mxu0 0.0
    %2142 = vmatprep.subr.mxu0 0.0
    %2143 = vmatpush1.msra.mxu0 0.0
    %2144 = vmatprep.subr.mxu0 0.0
    %2145 = vmatpush1.msra.mxu0 0.0
    %2146 = vmatprep.subr.mxu0 0.0
    %2147 = vmatpush1.msra.mxu0 0.0
    %2148 = vmatprep.subr.mxu0 0.0
    %2149 = vmatpush1.msra.mxu0 0.0
    %2150 = vmatprep.mubr.f32.mxu0 0.0
    %2151 = vmatmul.mubr.f32.gmra.mrb[0].mxu0 %v2084
    %v2152 = vpop.f32.mrb[0].mxu0
    %v2153 = vadd.f32 0.0, %v2152
    %v2154 = vpop.f32.mrb[0].mxu0
    %v2155 = vadd.f32 0.0, %v2154
    %2156 = vdwg.mxu0
    %v2157 = vadd.f32 %v2081, %v2153
    %v2158 = vadd.f32 %v2082, %v2155
    %v2159 = vxor.u32 %v2157, 2147483648
    %v2160 = vxor.u32 %v2158, 2147483648
    %v2161 = vmul.f32 %v2159, 1.442695
    %v2162 = vpow.pop %v2161
    %v2163 = vmul.f32 %v2160, 1.442695
    %v2164 = vpow.pop %v2163
    %v2165 = vadd.f32 %v2162, 1.0
    %v2166 = vadd.f32 %v2164, 1.0
    %v2167 = vrcp.pop %v2165
    %v2168 = vmul.f32 1.0, %v2167
    %v2169 = vrcp.pop %v2166
    %v2170 = vmul.f32 1.0, %v2169
    %v2171 = vtanh.pop %v2158
    %2173 = vrot.lane.b32.xlu0 %v2080, 64
    %v2174 = vpop.permute.xlu0 %2173
    %v2176 = vmul.f32 %v2168, %v2174
    %2178 = vrot.lane.b32.xlu0 %v2171, 64
    %v2179 = vpop.permute.xlu0 %2178
    %v2181 = vmul.f32 %v2168, %v2179
    %2183 = vrot.lane.b32.xlu0 %v2181, 64
    %v2184 = vpop.permute.xlu0 %2183
    %v2186 = vadd.f32 %v2176, %v2184
    %v2187 = vtanh.pop %v2186
    %2189 = vrot.lane.b32.xlu0 %v2187, 64
    %v2190 = vpop.permute.xlu0 %2189
    %v2192 = vmul.f32 %v2170, %v2190
    %v2193 = vsel %vm94, %v2192, %v2075
    %2195 = vrot.lane.b32.xlu0 %v2186, 64
    %v2196 = vpop.permute.xlu0 %2195
    %v2198 = vsel %vm94, %v2196, %v2080
    %v2199 = vsel %vm466, %v1600, %v1582
    %v2200 = vsel %vm467, %v1602, %v1584
    %v2202 = vsel %vm470, %v2193, 0
    %2204 = vmatprep.subr.mxu0 %v1445
    %2205 = vmatpush1.msra.mxu0 %v1444
    %2206 = vmatprep.subr.mxu0 %v1447
    %2207 = vmatpush1.msra.mxu0 %v1446
    %2208 = vmatprep.subr.mxu0 %v1449
    %2209 = vmatpush1.msra.mxu0 %v1448
    %2210 = vmatprep.subr.mxu0 %v1451
    %2211 = vmatpush1.msra.mxu0 %v1450
    %2212 = vmatprep.subr.mxu0 %v1453
    %2213 = vmatpush1.msra.mxu0 %v1452
    %2214 = vmatprep.subr.mxu0 %v1455
    %2215 = vmatpush1.msra.mxu0 %v1454
    %2216 = vmatprep.subr.mxu0 %v1457
    %2217 = vmatpush1.msra.mxu0 %v1456
    %2218 = vmatprep.subr.mxu0 %v1459
    %2219 = vmatpush1.msra.mxu0 %v1458
    %2220 = vmatprep.subr.mxu0 0.0
    %2221 = vmatpush1.msra.mxu0 0.0
    %2222 = vmatprep.subr.mxu0 0.0
    %2223 = vmatpush1.msra.mxu0 0.0
    %2224 = vmatprep.subr.mxu0 0.0
    %2225 = vmatpush1.msra.mxu0 0.0
    %2226 = vmatprep.subr.mxu0 0.0
    %2227 = vmatpush1.msra.mxu0 0.0
    %2228 = vmatprep.subr.mxu0 0.0
    %2229 = vmatpush1.msra.mxu0 0.0
    %2230 = vmatprep.subr.mxu0 0.0
    %2231 = vmatpush1.msra.mxu0 0.0
    %2232 = vmatprep.subr.mxu0 0.0
    %2233 = vmatpush1.msra.mxu0 0.0
    %2234 = vmatprep.subr.mxu0 0.0
    %2235 = vmatpush1.msra.mxu0 0.0
    %2236 = vmatprep.subr.mxu0 0.0
    %2237 = vmatpush1.msra.mxu0 0.0
    %2238 = vmatprep.subr.mxu0 0.0
    %2239 = vmatpush1.msra.mxu0 0.0
    %2240 = vmatprep.subr.mxu0 0.0
    %2241 = vmatpush1.msra.mxu0 0.0
    %2242 = vmatprep.subr.mxu0 0.0
    %2243 = vmatpush1.msra.mxu0 0.0
    %2244 = vmatprep.subr.mxu0 0.0
    %2245 = vmatpush1.msra.mxu0 0.0
    %2246 = vmatprep.subr.mxu0 0.0
    %2247 = vmatpush1.msra.mxu0 0.0
    %2248 = vmatprep.subr.mxu0 0.0
    %2249 = vmatpush1.msra.mxu0 0.0
    %2250 = vmatprep.subr.mxu0 0.0
    %2251 = vmatpush1.msra.mxu0 0.0
    %2252 = vmatprep.subr.mxu0 0.0
    %2253 = vmatpush1.msra.mxu0 0.0
    %2254 = vmatprep.subr.mxu0 0.0
    %2255 = vmatpush1.msra.mxu0 0.0
    %2256 = vmatprep.subr.mxu0 0.0
    %2257 = vmatpush1.msra.mxu0 0.0
    %2258 = vmatprep.subr.mxu0 0.0
    %2259 = vmatpush1.msra.mxu0 0.0
    %2260 = vmatprep.subr.mxu0 0.0
    %2261 = vmatpush1.msra.mxu0 0.0
    %2262 = vmatprep.subr.mxu0 0.0
    %2263 = vmatpush1.msra.mxu0 0.0
    %2264 = vmatprep.subr.mxu0 0.0
    %2265 = vmatpush1.msra.mxu0 0.0
    %2266 = vmatprep.subr.mxu0 0.0
    %2267 = vmatpush1.msra.mxu0 0.0
    %2268 = vmatprep.mubr.f32.mxu0 0.0
    %2269 = vmatmul.mubr.f32.gmra.mrb[0].mxu0 %v2202
    %v2270 = vpop.f32.mrb[0].mxu0
    %v2271 = vadd.f32 0.0, %v2270
    %v2272 = vpop.f32.mrb[0].mxu0
    %v2273 = vadd.f32 0.0, %v2272
    %2274 = vdwg.mxu0
    %v2275 = vadd.f32 %v2199, %v2271
    %v2276 = vadd.f32 %v2200, %v2273
    %v2277 = vxor.u32 %v2275, 2147483648
    %v2278 = vxor.u32 %v2276, 2147483648
    %v2279 = vmul.f32 %v2277, 1.442695
    %v2280 = vpow.pop %v2279
    %v2281 = vmul.f32 %v2278, 1.442695
    %v2282 = vpow.pop %v2281
    %v2283 = vadd.f32 %v2280, 1.0
    %v2284 = vadd.f32 %v2282, 1.0
    %v2285 = vrcp.pop %v2283
    %v2286 = vmul.f32 1.0, %v2285
    %v2287 = vrcp.pop %v2284
    %v2288 = vmul.f32 1.0, %v2287
    %v2289 = vtanh.pop %v2276
    %2291 = vrot.lane.b32.xlu0 %v2198, 64
    %v2292 = vpop.permute.xlu0 %2291
    %v2294 = vmul.f32 %v2286, %v2292
    %2296 = vrot.lane.b32.xlu0 %v2289, 64
    %v2297 = vpop.permute.xlu0 %2296
    %v2299 = vmul.f32 %v2286, %v2297
    %2301 = vrot.lane.b32.xlu0 %v2299, 64
    %v2302 = vpop.permute.xlu0 %2301
    %v2304 = vadd.f32 %v2294, %v2302
    %v2305 = vtanh.pop %v2304
    %2307 = vrot.lane.b32.xlu0 %v2305, 64
    %v2308 = vpop.permute.xlu0 %2307
    %v2310 = vmul.f32 %v2288, %v2308
    %v2311 = vsel %vm96, %v2310, %v2193
    %2313 = vrot.lane.b32.xlu0 %v2304, 64
    %v2314 = vpop.permute.xlu0 %2313
    %v2316 = vsel %vm96, %v2314, %v2198
    %v2317 = vsel %vm466, %v1606, %v1576
    %v2318 = vsel %vm467, %v1608, %v1578
    %v2320 = vsel %vm470, %v2311, 0
    %2322 = vmatprep.subr.mxu0 %v1445
    %2323 = vmatpush1.msra.mxu0 %v1444
    %2324 = vmatprep.subr.mxu0 %v1447
    %2325 = vmatpush1.msra.mxu0 %v1446
    %2326 = vmatprep.subr.mxu0 %v1449
    %2327 = vmatpush1.msra.mxu0 %v1448
    %2328 = vmatprep.subr.mxu0 %v1451
    %2329 = vmatpush1.msra.mxu0 %v1450
    %2330 = vmatprep.subr.mxu0 %v1453
    %2331 = vmatpush1.msra.mxu0 %v1452
    %2332 = vmatprep.subr.mxu0 %v1455
    %2333 = vmatpush1.msra.mxu0 %v1454
    %2334 = vmatprep.subr.mxu0 %v1457
    %2335 = vmatpush1.msra.mxu0 %v1456
    %2336 = vmatprep.subr.mxu0 %v1459
    %2337 = vmatpush1.msra.mxu0 %v1458
    %2338 = vmatprep.subr.mxu0 0.0
    %2339 = vmatpush1.msra.mxu0 0.0
    %2340 = vmatprep.subr.mxu0 0.0
    %2341 = vmatpush1.msra.mxu0 0.0
    %2342 = vmatprep.subr.mxu0 0.0
    %2343 = vmatpush1.msra.mxu0 0.0
    %2344 = vmatprep.subr.mxu0 0.0
    %2345 = vmatpush1.msra.mxu0 0.0
    %2346 = vmatprep.subr.mxu0 0.0
    %2347 = vmatpush1.msra.mxu0 0.0
    %2348 = vmatprep.subr.mxu0 0.0
    %2349 = vmatpush1.msra.mxu0 0.0
    %2350 = vmatprep.subr.mxu0 0.0
    %2351 = vmatpush1.msra.mxu0 0.0
    %2352 = vmatprep.subr.mxu0 0.0
    %2353 = vmatpush1.msra.mxu0 0.0
    %2354 = vmatprep.subr.mxu0 0.0
    %2355 = vmatpush1.msra.mxu0 0.0
    %2356 = vmatprep.subr.mxu0 0.0
    %2357 = vmatpush1.msra.mxu0 0.0
    %2358 = vmatprep.subr.mxu0 0.0
    %2359 = vmatpush1.msra.mxu0 0.0
    %2360 = vmatprep.subr.mxu0 0.0
    %2361 = vmatpush1.msra.mxu0 0.0
    %2362 = vmatprep.subr.mxu0 0.0
    %2363 = vmatpush1.msra.mxu0 0.0
    %2364 = vmatprep.subr.mxu0 0.0
    %2365 = vmatpush1.msra.mxu0 0.0
    %2366 = vmatprep.subr.mxu0 0.0
    %2367 = vmatpush1.msra.mxu0 0.0
    %2368 = vmatprep.subr.mxu0 0.0
    %2369 = vmatpush1.msra.mxu0 0.0
    %2370 = vmatprep.subr.mxu0 0.0
    %2371 = vmatpush1.msra.mxu0 0.0
    %2372 = vmatprep.subr.mxu0 0.0
    %2373 = vmatpush1.msra.mxu0 0.0
    %2374 = vmatprep.subr.mxu0 0.0
    %2375 = vmatpush1.msra.mxu0 0.0
    %2376 = vmatprep.subr.mxu0 0.0
    %2377 = vmatpush1.msra.mxu0 0.0
    %2378 = vmatprep.subr.mxu0 0.0
    %2379 = vmatpush1.msra.mxu0 0.0
    %2380 = vmatprep.subr.mxu0 0.0
    %2381 = vmatpush1.msra.mxu0 0.0
    %2382 = vmatprep.subr.mxu0 0.0
    %2383 = vmatpush1.msra.mxu0 0.0
    %2384 = vmatprep.subr.mxu0 0.0
    %2385 = vmatpush1.msra.mxu0 0.0
    %2386 = vmatprep.mubr.f32.mxu0 0.0
    %2387 = vmatmul.mubr.f32.gmra.mrb[0].mxu0 %v2320
    %v2388 = vpop.f32.mrb[0].mxu0
    %v2389 = vadd.f32 0.0, %v2388
    %v2390 = vpop.f32.mrb[0].mxu0
    %v2391 = vadd.f32 0.0, %v2390
    %2392 = vdwg.mxu0
    %v2393 = vadd.f32 %v2317, %v2389
    %v2394 = vadd.f32 %v2318, %v2391
    %v2395 = vxor.u32 %v2393, 2147483648
    %v2396 = vxor.u32 %v2394, 2147483648
    %v2397 = vmul.f32 %v2395, 1.442695
    %v2398 = vpow.pop %v2397
    %v2399 = vmul.f32 %v2396, 1.442695
    %v2400 = vpow.pop %v2399
    %v2401 = vadd.f32 %v2398, 1.0
    %v2402 = vadd.f32 %v2400, 1.0
    %v2403 = vrcp.pop %v2401
    %v2404 = vmul.f32 1.0, %v2403
    %v2405 = vrcp.pop %v2402
    %v2406 = vmul.f32 1.0, %v2405
    %v2407 = vtanh.pop %v2394
    %2409 = vrot.lane.b32.xlu0 %v2316, 64
    %v2410 = vpop.permute.xlu0 %2409
    %v2412 = vmul.f32 %v2404, %v2410
    %2414 = vrot.lane.b32.xlu0 %v2407, 64
    %v2415 = vpop.permute.xlu0 %2414
    %v2417 = vmul.f32 %v2404, %v2415
    %2419 = vrot.lane.b32.xlu0 %v2417, 64
    %v2420 = vpop.permute.xlu0 %2419
    %v2422 = vadd.f32 %v2412, %v2420
    %v2423 = vtanh.pop %v2422
    %2425 = vrot.lane.b32.xlu0 %v2423, 64
    %v2426 = vpop.permute.xlu0 %2425
    %v2428 = vmul.f32 %v2406, %v2426
    %v2429 = vsel %vm98, %v2428, %v2311
    %2431 = vrot.lane.b32.xlu0 %v2422, 64
    %v2432 = vpop.permute.xlu0 %2431
    %v2434 = vsel %vm98, %v2432, %v2316
    %v2435 = vsel %vm466, %v1612, %v1570
    %v2436 = vsel %vm467, %v1614, %v1572
    %v2438 = vsel %vm470, %v2429, 0
    %2440 = vmatprep.subr.mxu0 %v1445
    %2441 = vmatpush1.msra.mxu0 %v1444
    %2442 = vmatprep.subr.mxu0 %v1447
    %2443 = vmatpush1.msra.mxu0 %v1446
    %2444 = vmatprep.subr.mxu0 %v1449
    %2445 = vmatpush1.msra.mxu0 %v1448
    %2446 = vmatprep.subr.mxu0 %v1451
    %2447 = vmatpush1.msra.mxu0 %v1450
    %2448 = vmatprep.subr.mxu0 %v1453
    %2449 = vmatpush1.msra.mxu0 %v1452
    %2450 = vmatprep.subr.mxu0 %v1455
    %2451 = vmatpush1.msra.mxu0 %v1454
    %2452 = vmatprep.subr.mxu0 %v1457
    %2453 = vmatpush1.msra.mxu0 %v1456
    %2454 = vmatprep.subr.mxu0 %v1459
    %2455 = vmatpush1.msra.mxu0 %v1458
    %2456 = vmatprep.subr.mxu0 0.0
    %2457 = vmatpush1.msra.mxu0 0.0
    %2458 = vmatprep.subr.mxu0 0.0
    %2459 = vmatpush1.msra.mxu0 0.0
    %2460 = vmatprep.subr.mxu0 0.0
    %2461 = vmatpush1.msra.mxu0 0.0
    %2462 = vmatprep.subr.mxu0 0.0
    %2463 = vmatpush1.msra.mxu0 0.0
    %2464 = vmatprep.subr.mxu0 0.0
    %2465 = vmatpush1.msra.mxu0 0.0
    %2466 = vmatprep.subr.mxu0 0.0
    %2467 = vmatpush1.msra.mxu0 0.0
    %2468 = vmatprep.subr.mxu0 0.0
    %2469 = vmatpush1.msra.mxu0 0.0
    %2470 = vmatprep.subr.mxu0 0.0
    %2471 = vmatpush1.msra.mxu0 0.0
    %2472 = vmatprep.subr.mxu0 0.0
    %2473 = vmatpush1.msra.mxu0 0.0
    %2474 = vmatprep.subr.mxu0 0.0
    %2475 = vmatpush1.msra.mxu0 0.0
    %2476 = vmatprep.subr.mxu0 0.0
    %2477 = vmatpush1.msra.mxu0 0.0
    %2478 = vmatprep.subr.mxu0 0.0
    %2479 = vmatpush1.msra.mxu0 0.0
    %2480 = vmatprep.subr.mxu0 0.0
    %2481 = vmatpush1.msra.mxu0 0.0
    %2482 = vmatprep.subr.mxu0 0.0
    %2483 = vmatpush1.msra.mxu0 0.0
    %2484 = vmatprep.subr.mxu0 0.0
    %2485 = vmatpush1.msra.mxu0 0.0
    %2486 = vmatprep.subr.mxu0 0.0
    %2487 = vmatpush1.msra.mxu0 0.0
    %2488 = vmatprep.subr.mxu0 0.0
    %2489 = vmatpush1.msra.mxu0 0.0
    %2490 = vmatprep.subr.mxu0 0.0
    %2491 = vmatpush1.msra.mxu0 0.0
    %2492 = vmatprep.subr.mxu0 0.0
    %2493 = vmatpush1.msra.mxu0 0.0
    %2494 = vmatprep.subr.mxu0 0.0
    %2495 = vmatpush1.msra.mxu0 0.0
    %2496 = vmatprep.subr.mxu0 0.0
    %2497 = vmatpush1.msra.mxu0 0.0
    %2498 = vmatprep.subr.mxu0 0.0
    %2499 = vmatpush1.msra.mxu0 0.0
    %2500 = vmatprep.subr.mxu0 0.0
    %2501 = vmatpush1.msra.mxu0 0.0
    %2502 = vmatprep.subr.mxu0 0.0
    %2503 = vmatpush1.msra.mxu0 0.0
    %2504 = vmatprep.mubr.f32.mxu0 0.0
    %2505 = vmatmul.mubr.f32.gmra.mrb[0].mxu0 %v2438
    %v2506 = vpop.f32.mrb[0].mxu0
    %v2507 = vadd.f32 0.0, %v2506
    %v2508 = vpop.f32.mrb[0].mxu0
    %v2509 = vadd.f32 0.0, %v2508
    %2510 = vdwg.mxu0
    %v2511 = vadd.f32 %v2435, %v2507
    %v2512 = vadd.f32 %v2436, %v2509
    %v2513 = vxor.u32 %v2511, 2147483648
    %v2514 = vxor.u32 %v2512, 2147483648
    %v2515 = vmul.f32 %v2513, 1.442695
    %v2516 = vpow.pop %v2515
    %v2517 = vmul.f32 %v2514, 1.442695
    %v2518 = vpow.pop %v2517
    %v2519 = vadd.f32 %v2516, 1.0
    %v2520 = vadd.f32 %v2518, 1.0
    %v2521 = vrcp.pop %v2519
    %v2522 = vmul.f32 1.0, %v2521
    %v2523 = vrcp.pop %v2520
    %v2524 = vmul.f32 1.0, %v2523
    %v2525 = vtanh.pop %v2512
    %2527 = vrot.lane.b32.xlu0 %v2434, 64
    %v2528 = vpop.permute.xlu0 %2527
    %v2530 = vmul.f32 %v2522, %v2528
    %2532 = vrot.lane.b32.xlu0 %v2525, 64
    %v2533 = vpop.permute.xlu0 %2532
    %v2535 = vmul.f32 %v2522, %v2533
    %2537 = vrot.lane.b32.xlu0 %v2535, 64
    %v2538 = vpop.permute.xlu0 %2537
    %v2540 = vadd.f32 %v2530, %v2538
    %v2541 = vtanh.pop %v2540
    %2543 = vrot.lane.b32.xlu0 %v2541, 64
    %v2544 = vpop.permute.xlu0 %2543
    %v2546 = vmul.f32 %v2524, %v2544
    %v2547 = vsel %vm100, %v2546, %v2429
    %v2548 = vld [vmem:[%s5] sm:$0xff]
    %v2549 = vld [vmem:[%s5 + $0x8] sm:$0xff]
    %v2550 = vld [vmem:[%s5 + $0x10] sm:$0xff]
    %v2551 = vld [vmem:[%s5 + $0x18] sm:$0xff]
    %v2552 = vld [vmem:[%s5 + $0x20] sm:$0xff]
    %v2553 = vld [vmem:[%s5 + $0x28] sm:$0xff]
    %v2554 = vld [vmem:[%s5 + $0x30] sm:$0xff]
    %v2555 = vld [vmem:[%s5 + $0x38] sm:$0xff]
    %v2556 = vld [vmem:[%s5 + $0x40] sm:$0x1]
    %v2557 = vlaneseq
    %v2558 = vshrl.u32 %v2557, 7
    %v2559 = vsub.s32 0, %v2558
    %v2560 = vrot.slane %v2556, %v2559
    %v2562 = vsel %vm470, %v2547, 0
    %2564 = vmatprep.subr.mxu0 0.0
    %2565 = vmatpush1.msra.mxu0 %v2548
    %2566 = vmatprep.subr.mxu0 0.0
    %2567 = vmatpush1.msra.mxu0 %v2549
    %2568 = vmatprep.subr.mxu0 0.0
    %2569 = vmatpush1.msra.mxu0 %v2550
    %2570 = vmatprep.subr.mxu0 0.0
    %2571 = vmatpush1.msra.mxu0 %v2551
    %2572 = vmatprep.subr.mxu0 0.0
    %2573 = vmatpush1.msra.mxu0 %v2552
    %2574 = vmatprep.subr.mxu0 0.0
    %2575 = vmatpush1.msra.mxu0 %v2553
    %2576 = vmatprep.subr.mxu0 0.0
    %2577 = vmatpush1.msra.mxu0 %v2554
    %2578 = vmatprep.subr.mxu0 0.0
    %2579 = vmatpush1.msra.mxu0 %v2555
    %2580 = vmatprep.subr.mxu0 0.0
    %2581 = vmatpush1.msra.mxu0 0.0
    %2582 = vmatprep.subr.mxu0 0.0
    %2583 = vmatpush1.msra.mxu0 0.0
    %2584 = vmatprep.subr.mxu0 0.0
    %2585 = vmatpush1.msra.mxu0 0.0
    %2586 = vmatprep.subr.mxu0 0.0
    %2587 = vmatpush1.msra.mxu0 0.0
    %2588 = vmatprep.subr.mxu0 0.0
    %2589 = vmatpush1.msra.mxu0 0.0
    %2590 = vmatprep.subr.mxu0 0.0
    %2591 = vmatpush1.msra.mxu0 0.0
    %2592 = vmatprep.subr.mxu0 0.0
    %2593 = vmatpush1.msra.mxu0 0.0
    %2594 = vmatprep.subr.mxu0 0.0
    %2595 = vmatpush1.msra.mxu0 0.0
    %2596 = vmatprep.subr.mxu0 0.0
    %2597 = vmatpush1.msra.mxu0 0.0
    %2598 = vmatprep.subr.mxu0 0.0
    %2599 = vmatpush1.msra.mxu0 0.0
    %2600 = vmatprep.subr.mxu0 0.0
    %2601 = vmatpush1.msra.mxu0 0.0
    %2602 = vmatprep.subr.mxu0 0.0
    %2603 = vmatpush1.msra.mxu0 0.0
    %2604 = vmatprep.subr.mxu0 0.0
    %2605 = vmatpush1.msra.mxu0 0.0
    %2606 = vmatprep.subr.mxu0 0.0
    %2607 = vmatpush1.msra.mxu0 0.0
    %2608 = vmatprep.subr.mxu0 0.0
    %2609 = vmatpush1.msra.mxu0 0.0
    %2610 = vmatprep.subr.mxu0 0.0
    %2611 = vmatpush1.msra.mxu0 0.0
    %2612 = vmatprep.subr.mxu0 0.0
    %2613 = vmatpush1.msra.mxu0 0.0
    %2614 = vmatprep.subr.mxu0 0.0
    %2615 = vmatpush1.msra.mxu0 0.0
    %2616 = vmatprep.subr.mxu0 0.0
    %2617 = vmatpush1.msra.mxu0 0.0
    %2618 = vmatprep.subr.mxu0 0.0
    %2619 = vmatpush1.msra.mxu0 0.0
    %2620 = vmatprep.subr.mxu0 0.0
    %2621 = vmatpush1.msra.mxu0 0.0
    %2622 = vmatprep.subr.mxu0 0.0
    %2623 = vmatpush1.msra.mxu0 0.0
    %2624 = vmatprep.subr.mxu0 0.0
    %2625 = vmatpush1.msra.mxu0 0.0
    %2626 = vmatprep.subr.mxu0 0.0
    %2627 = vmatpush1.msra.mxu0 0.0
    %2628 = vmatprep.mubr.f32.mxu0 0.0
    %2629 = vmatmul.mubr.f32.gmra.mrb[0].mxu0 %v2562
    %v2630 = vpop.f32.mrb[0].mxu0
    %v2631 = vadd.f32 %v2560, %v2630
    %v2632 = vpop.f32.mrb[0].mxu0
    %2633 = vdwg.mxu0
    %v2634 = vxor.u32 %v2631, 2147483648
    %v2635 = vmul.f32 %v2634, 1.442695
    %v2636 = vpow.pop %v2635
    %v2637 = vadd.f32 %v2636, 1.0
    %v2638 = vrcp.pop %v2637
    %v2639 = vmul.f32 1.0, %v2638
    %v2640 = vmul.f32 %v2631, %v2639
    %2641 = vst [vmem:[%s6] sm:$0xff] %v2640
    // Predicated region
    $region34: #{seq_classifier_forward.1} parent=1 // pred_check
      _
    $region35: #{seq_classifier_forward.1} parent=1 // pred_check_branch
      %2643 = sbr.rel (0) target = $region37
    $region36: #{seq_classifier_forward.1} parent=1 // pred_region
      _
    $region37: #{seq_classifier_forward.1} parent=1 // pred_fallthru
      _
    // Predicated region
    $region38: #{seq_classifier_forward.1} parent=1 // pred_check
      _
    $region39: #{seq_classifier_forward.1} parent=1 // pred_check_branch
      %2645 = sbr.rel (0) target = $region41
    $region40: #{seq_classifier_forward.1} parent=1 // pred_region
      _
    $region41: #{seq_classifier_forward.1} parent=1 // pred_fallthru
      _
    %2646 = vsyncpa [#allocation4], 1
    %2647 = vsyncpa [#allocation6], 1

</llo_original>
